<compile_context>
chip_gen: v6e
topology: v6e:2x2x1
jax: 0.10.0
libtpu: 0.0.40
codegen_flags: <defaults>
</compile_context>

<pallas_src>
import jax
import jax.numpy as jnp
from jax.experimental import pallas as pl
from jax.experimental.pallas import tpu as pltpu


_CIN_PAD = 8      # input channels padded 3 -> 8
_OUT_PAD = 128    # fc3 outputs padded 9 -> 128 (lane-dense store)


# ----------------------------------------------------------------------------
# Kernel: one grid step == (TB batch elements, tN points).
# ----------------------------------------------------------------------------
def stn3d_kernel(x_ref,             # (TB, tN, 8)        bf16
                 w1_ref, b1_ref,    # (8, 64)    bf16,   (1, 64)   f32
                 w2_ref, b2_ref,    # (64, 128)  bf16,   (1, 128)  f32
                 w3_ref, b3_ref,    # (128,1024) bf16,   (1, 1024) f32
                 f1_ref, c1_ref,    # (1024,512) bf16,   (1, 512)  f32
                 f2_ref, c2_ref,    # (512, 256) bf16,   (1, 256)  f32
                 f3_ref, c3_ref,    # (256, 128) bf16,   (1, 128)  f32 (iden folded in)
                 o_ref,             # (TB, 128) f32
                 gmax_ref):         # (TB, 1024) f32 scratch: running max over chunks
    k = pl.program_id(1)

    @pl.when(k == 0)
    def _init():
        gmax_ref[...] = jnp.full(gmax_ref.shape, -jnp.inf, gmax_ref.dtype)

    tb, tn, cin = x_ref.shape
    x = x_ref[...].reshape(tb * tn, cin)                                   # bf16

    # Point-wise MLP (conv1/bn1/relu -> conv2/bn2/relu -> conv3/bn3/relu),
    # flattened over (TB*tN) rows so the MXU sees tall matmuls.
    h = jnp.dot(x, w1_ref[...], preferred_element_type=jnp.float32) + b1_ref[...]
    h = jnp.maximum(h, 0.0).astype(jnp.bfloat16)
    h = jnp.dot(h, w2_ref[...], preferred_element_type=jnp.float32) + b2_ref[...]
    h = jnp.maximum(h, 0.0).astype(jnp.bfloat16)
    h = jnp.dot(h, w3_ref[...], preferred_element_type=jnp.float32) + b3_ref[...]
    h = jnp.maximum(h, 0.0)                                                # (TB*tN, 1024) f32

    # Per-sample max-pool over this chunk of points; running max across chunks.
    gmax_ref[...] = jnp.maximum(gmax_ref[...],
                                jnp.max(h.reshape(tb, tn, -1), axis=1))

    @pl.when(k == pl.num_programs(1) - 1)
    def _finalize():
        # FC head: fc1/bn4/relu -> fc2/bn5/relu -> fc3 (+ identity, folded in c3).
        g = gmax_ref[...].astype(jnp.bfloat16)                             # (TB, 1024)
        g = jnp.dot(g, f1_ref[...], preferred_element_type=jnp.float32) + c1_ref[...]
        g = jnp.maximum(g, 0.0).astype(jnp.bfloat16)
        g = jnp.dot(g, f2_ref[...], preferred_element_type=jnp.float32) + c2_ref[...]
        g = jnp.maximum(g, 0.0).astype(jnp.bfloat16)
        g = jnp.dot(g, f3_ref[...], preferred_element_type=jnp.float32) + c3_ref[...]
        o_ref[...] = g                                                     # lane-dense (TB,128)


# ----------------------------------------------------------------------------
# Wrapper
# ----------------------------------------------------------------------------
def _const_spec(shape):
    # Whole-array block, same block for every grid step (constant weights).
    return pl.BlockSpec(shape, lambda b, k: (0,) * len(shape))


def _choose_point_tile(n, target):
    """Largest divisor of n that is <= target and a multiple of 8; else n."""
    if n <= target:
        return n
    for t in range(min(target, n), 0, -1):
        if n % t == 0 and t % 8 == 0:
            return t
    return n


def stn3d_forward(x_ncl, packed, *, tb_target=8, tn_target=256):
    """x_ncl: (B, 3, N) float32, PyTorch NCL layout. Returns (B, 3, 3) float32."""
    B, C, N = x_ncl.shape
    assert C == 3
    (w1, b1, w2, b2, w3, b3, f1, c1, f2, c2, f3, c3) = packed

    # channels-last + pad channels 3 -> 8 (w1 rows 3..7 are zero) + bf16.
    x = jnp.transpose(x_ncl, (0, 2, 1))                                    # (B, N, 3)
    x = jnp.pad(x, ((0, 0), (0, 0), (0, _CIN_PAD - C))).astype(jnp.bfloat16)

    # Batch tile: multiple of 8 (or the whole batch); pad batch if needed.
    tb = B if B <= tb_target else tb_target
    b_pad = -B % tb
    if b_pad:
        x = jnp.pad(x, ((0, b_pad), (0, 0), (0, 0)))
    Bp = B + b_pad

    # Point tile: divides N and is a multiple of 8 (or the whole N axis).
    tn = _choose_point_tile(N, tn_target)
    nk = N // tn

    weight_specs = [_const_spec(p.shape) for p in packed]

    flops = (2 * Bp * N * (_CIN_PAD * 64 + 64 * 128 + 128 * 1024)
             + 2 * Bp * (1024 * 512 + 512 * 256 + 256 * _OUT_PAD))
    bytes_accessed = (int(x.size) * 2
                      + sum(int(p.size) * p.dtype.itemsize for p in packed)
                      + Bp * _OUT_PAD * 4)

    out = pl.pallas_call(
        stn3d_kernel,
        out_shape=jax.ShapeDtypeStruct((Bp, _OUT_PAD), jnp.float32),
        grid=(Bp // tb, nk),
        in_specs=[pl.BlockSpec((tb, tn, _CIN_PAD), lambda b, k: (b, k, 0))]
                 + weight_specs,
        out_specs=pl.BlockSpec((tb, _OUT_PAD), lambda b, k: (b, 0)),
        scratch_shapes=[pltpu.VMEM((tb, 1024), jnp.float32)],
        compiler_params=pltpu.CompilerParams(
            dimension_semantics=("parallel", "arbitrary")),
        cost_estimate=pl.CostEstimate(flops=int(flops), transcendentals=0,
                                      bytes_accessed=int(bytes_accessed)),
    )(x, w1, b1, w2, b2, w3, b3, f1, c1, f2, c2, f3, c3)

    return out[:B, :9].reshape(B, 3, 3)


# ----------------------------------------------------------------------------
# Parameter construction (glue: BN folded into weight/bias, then packed/bf16)
# ----------------------------------------------------------------------------
def _fold_bn(w, b, gamma, beta, mean, var, eps=1e-5):
    """y = BN(x @ w + b)  ->  y = x @ w' + b'   (inference-mode BN)."""
    scale = gamma / jnp.sqrt(var + eps)           # (Cout,)
    w_f = w * scale[None, :]                      # (Cin, Cout)
    b_f = (b - mean) * scale + beta               # (Cout,)
    return w_f, b_f.reshape(1, -1)


def make_params(key):
    """Logical f32 params (BN already folded); weights stored (Cin, Cout)."""
    dims = [(3, 64), (64, 128), (128, 1024), (1024, 512), (512, 256), (256, 9)]
    keys = jax.random.split(key, 6 * 6)
    ki = iter(range(len(keys)))

    def layer(cin, cout, with_bn):
        w = 0.1 * jax.random.normal(keys[next(ki)], (cin, cout), jnp.float32)
        b = 0.1 * jax.random.normal(keys[next(ki)], (cout,), jnp.float32)
        if with_bn:
            gamma = 1.0 + 0.1 * jax.random.normal(keys[next(ki)], (cout,), jnp.float32)
            beta = 0.1 * jax.random.normal(keys[next(ki)], (cout,), jnp.float32)
            mean = 0.1 * jax.random.normal(keys[next(ki)], (cout,), jnp.float32)
            var = jnp.abs(1.0 + 0.1 * jax.random.normal(
                keys[next(ki)], (cout,), jnp.float32))
            return _fold_bn(w, b, gamma, beta, mean, var)
        return w, b.reshape(1, -1)

    w1, b1 = layer(*dims[0], True)   # conv1 + bn1
    w2, b2 = layer(*dims[1], True)   # conv2 + bn2
    w3, b3 = layer(*dims[2], True)   # conv3 + bn3
    f1, c1 = layer(*dims[3], True)   # fc1  + bn4
    f2, c2 = layer(*dims[4], True)   # fc2  + bn5
    f3, c3 = layer(*dims[5], False)  # fc3  (no bn)

    iden = jnp.array([[1., 0., 0., 0., 1., 0., 0., 0., 1.]], jnp.float32)
    return (w1, b1, w2, b2, w3, b3, f1, c1, f2, c2, f3, c3, iden)


def pack_params(params_f32):
    """Kernel-side params: bf16 weights, padded w1/fc3, identity folded into fc3 bias."""
    (w1, b1, w2, b2, w3, b3, f1, c1, f2, c2, f3, c3, iden) = params_f32
    w1p = jnp.pad(w1, ((0, _CIN_PAD - w1.shape[0]), (0, 0)))              # (8, 64)
    f3p = jnp.pad(f3, ((0, 0), (0, _OUT_PAD - f3.shape[1])))              # (256, 128)
    c3p = jnp.pad(c3 + iden, ((0, 0), (0, _OUT_PAD - c3.shape[1])))       # (1, 128)
    bf = lambda a: a.astype(jnp.bfloat16)
    return (bf(w1p), b1, bf(w2), b2, bf(w3), b3,
            bf(f1), c1, bf(f2), c2, bf(f3p), c3p)


# Pure-JAX reference (weights round-tripped through bf16 to match the kernel's
# weight quantization; activations stay f32, so only bf16-activation rounding
# remains as a difference).
def stn3d_ref(x_ncl, params_f32):
    (w1, b1, w2, b2, w3, b3, f1, c1, f2, c2, f3, c3, iden) = params_f32
    q = lambda a: a.astype(jnp.bfloat16).astype(jnp.float32)
    x = jnp.transpose(x_ncl, (0, 2, 1))
    x = x.astype(jnp.bfloat16).astype(jnp.float32)
    h = jax.nn.relu(x @ q(w1) + b1)
    h = jax.nn.relu(h @ q(w2) + b2)
    h = jax.nn.relu(h @ q(w3) + b3)
    g = jnp.max(h, axis=1)                                                # (B, 1024)
    g = jax.nn.relu(g @ q(f1) + c1)
    g = jax.nn.relu(g @ q(f2) + c2)
    g = g @ q(f3) + c3 + iden
    return g.reshape(-1, 3, 3)


if __name__ == "__main__":
    key = jax.random.PRNGKey(0)
    k_param, k_x, k_x2 = jax.random.split(key, 3)

    params_f32 = make_params(k_param)
    packed = pack_params(params_f32)

    # Small demo shape (single grid step).
    B, N = 2, 16
    x = jax.random.normal(k_x, (B, 3, N), jnp.float32)        # PyTorch NCL layout
    out = jax.block_until_ready(stn3d_forward(x, packed))
    ref = stn3d_ref(x, params_f32)
    assert out.shape == (B, 3, 3)
    assert jnp.allclose(out, ref, atol=5e-2, rtol=5e-2), \
        float(jnp.max(jnp.abs(out - ref)))

    # Slightly larger shape to exercise the batch-tile + point-chunk pipeline
    # (2 batch tiles x 2 point chunks, running-max accumulator path).
    B2, N2 = 16, 64
    x2 = jax.random.normal(k_x2, (B2, 3, N2), jnp.float32)
    out2 = jax.block_until_ready(stn3d_forward(x2, packed, tb_target=8, tn_target=32))
    ref2 = stn3d_ref(x2, params_f32)
    assert out2.shape == (B2, 3, 3)
    assert jnp.allclose(out2, ref2, atol=5e-2, rtol=5e-2), \
        float(jnp.max(jnp.abs(out2 - ref2)))

    print("KERNEL_OK")
</pallas_src>

<mosaic_0001>
module attributes {stable_mosaic.version = 11 : i64} {
  func.func @stn3d_kernel(%arg0: i32, %arg1: i32, %arg2: memref<2x16x8xbf16, #tpu.memory_space<vmem>>, %arg3: memref<8x64xbf16, #tpu.memory_space<vmem>>, %arg4: memref<1x64xf32, #tpu.memory_space<vmem>>, %arg5: memref<64x128xbf16, #tpu.memory_space<vmem>>, %arg6: memref<1x128xf32, #tpu.memory_space<vmem>>, %arg7: memref<128x1024xbf16, #tpu.memory_space<vmem>>, %arg8: memref<1x1024xf32, #tpu.memory_space<vmem>>, %arg9: memref<1024x512xbf16, #tpu.memory_space<vmem>>, %arg10: memref<1x512xf32, #tpu.memory_space<vmem>>, %arg11: memref<512x256xbf16, #tpu.memory_space<vmem>>, %arg12: memref<1x256xf32, #tpu.memory_space<vmem>>, %arg13: memref<256x128xbf16, #tpu.memory_space<vmem>>, %arg14: memref<1x128xf32, #tpu.memory_space<vmem>>, %arg15: memref<2x128xf32, #tpu.memory_space<vmem>>, %arg16: memref<2x1024xf32, #tpu.memory_space<vmem>>) attributes {dimension_semantics = [#tpu.dimension_semantics<parallel>, #tpu.dimension_semantics<arbitrary>], iteration_bounds = array<i64: 1, 1>, scalar_prefetch = 0 : i64, scratch_operands = 1 : i64, tpu.core_type = #tpu.core_type<tc>, window_params = [{transform_indices = @transform_0, window_bounds = array<i64: 2, 16, 8>}, {pipeline_mode = #tpu.pipeline_mode<synchronous>, transform_indices = @transform_1, window_bounds = array<i64: 8, 64>}, {pipeline_mode = #tpu.pipeline_mode<synchronous>, transform_indices = @transform_2, window_bounds = array<i64: 1, 64>}, {pipeline_mode = #tpu.pipeline_mode<synchronous>, transform_indices = @transform_3, window_bounds = array<i64: 64, 128>}, {pipeline_mode = #tpu.pipeline_mode<synchronous>, transform_indices = @transform_4, window_bounds = array<i64: 1, 128>}, {pipeline_mode = #tpu.pipeline_mode<synchronous>, transform_indices = @transform_5, window_bounds = array<i64: 128, 1024>}, {pipeline_mode = #tpu.pipeline_mode<synchronous>, transform_indices = @transform_6, window_bounds = array<i64: 1, 1024>}, {pipeline_mode = #tpu.pipeline_mode<synchronous>, transform_indices = @transform_7, window_bounds = array<i64: 1024, 512>}, {pipeline_mode = #tpu.pipeline_mode<synchronous>, transform_indices = @transform_8, window_bounds = array<i64: 1, 512>}, {pipeline_mode = #tpu.pipeline_mode<synchronous>, transform_indices = @transform_9, window_bounds = array<i64: 512, 256>}, {pipeline_mode = #tpu.pipeline_mode<synchronous>, transform_indices = @transform_10, window_bounds = array<i64: 1, 256>}, {pipeline_mode = #tpu.pipeline_mode<synchronous>, transform_indices = @transform_11, window_bounds = array<i64: 256, 128>}, {pipeline_mode = #tpu.pipeline_mode<synchronous>, transform_indices = @transform_12, window_bounds = array<i64: 1, 128>}, {transform_indices = @transform_13, window_bounds = array<i64: 2, 128>}]} {
    %c0_i32 = arith.constant 0 : i32
    %0 = arith.cmpi eq, %arg1, %c0_i32 : i32
    %1 = arith.extui %0 : i1 to i32
    %c0_i32_0 = arith.constant 0 : i32
    %2 = arith.cmpi ne, %1, %c0_i32_0 : i32
    scf.if %2 {
      %cst_27 = arith.constant 0xFF800000 : f32
      %36 = vector.broadcast %cst_27 : f32 to vector<2x1024xf32>
      %c0_28 = arith.constant 0 : index
      %c0_29 = arith.constant 0 : index
      %37 = vector.load %arg16[%c0_28, %c0_29] : memref<2x1024xf32, #tpu.memory_space<vmem>>, vector<2x1024xf32>
      tpu.vector_store %arg16[%c0_28, %c0_29], %36 {strides = array<i32>} : memref<2x1024xf32, #tpu.memory_space<vmem>>, vector<2x1024xf32>,
    } else {
    }
    %c0 = arith.constant 0 : index
    %c0_1 = arith.constant 0 : index
    %c0_2 = arith.constant 0 : index
    %3 = vector.load %arg2[%c0, %c0_1, %c0_2] : memref<2x16x8xbf16, #tpu.memory_space<vmem>>, vector<2x16x8xbf16>
    %4 = vector.shape_cast %3 : vector<2x16x8xbf16> to vector<32x8xbf16>
    %c0_3 = arith.constant 0 : index
    %c0_4 = arith.constant 0 : index
    %5 = vector.load %arg3[%c0_3, %c0_4] : memref<8x64xbf16, #tpu.memory_space<vmem>>, vector<8x64xbf16>
    %cst = arith.constant dense<0.000000e+00> : vector<32x64xf32>
    %6 = tpu.matmul %4, %5, %cst {dimension_numbers = #tpu.dot_dimension_numbers<[1], [0], [0], [1], [0, 0, 1, 1], [], []>} : vector<32x8xbf16>, vector<8x64xbf16>, vector<32x64xf32> -> vector<32x64xf32>
    %c0_5 = arith.constant 0 : index
    %c0_6 = arith.constant 0 : index
    %7 = vector.load %arg4[%c0_5, %c0_6] : memref<1x64xf32, #tpu.memory_space<vmem>>, vector<1x64xf32>
    %8 = vector.broadcast %7 : vector<1x64xf32> to vector<32x64xf32>
    %9 = arith.addf %6, %8 : vector<32x64xf32>
    %cst_7 = arith.constant 0.000000e+00 : f32
    %10 = vector.broadcast %cst_7 : f32 to vector<32x64xf32>
    %11 = arith.maximumf %9, %10 : vector<32x64xf32>
    %12 = arith.truncf %11 : vector<32x64xf32> to vector<32x64xbf16>
    %c0_8 = arith.constant 0 : index
    %c0_9 = arith.constant 0 : index
    %13 = vector.load %arg5[%c0_8, %c0_9] : memref<64x128xbf16, #tpu.memory_space<vmem>>, vector<64x128xbf16>
    %cst_10 = arith.constant dense<0.000000e+00> : vector<32x128xf32>
    %14 = tpu.matmul %12, %13, %cst_10 {dimension_numbers = #tpu.dot_dimension_numbers<[1], [0], [0], [1], [0, 0, 1, 1], [], []>} : vector<32x64xbf16>, vector<64x128xbf16>, vector<32x128xf32> -> vector<32x128xf32>
    %c0_11 = arith.constant 0 : index
    %c0_12 = arith.constant 0 : index
    %15 = vector.load %arg6[%c0_11, %c0_12] : memref<1x128xf32, #tpu.memory_space<vmem>>, vector<1x128xf32>
    %16 = vector.broadcast %15 : vector<1x128xf32> to vector<32x128xf32>
    %17 = arith.addf %14, %16 : vector<32x128xf32>
    %cst_13 = arith.constant 0.000000e+00 : f32
    %18 = vector.broadcast %cst_13 : f32 to vector<32x128xf32>
    %19 = arith.maximumf %17, %18 : vector<32x128xf32>
    %20 = arith.truncf %19 : vector<32x128xf32> to vector<32x128xbf16>
    %c0_14 = arith.constant 0 : index
    %c0_15 = arith.constant 0 : index
    %21 = vector.load %arg7[%c0_14, %c0_15] : memref<128x1024xbf16, #tpu.memory_space<vmem>>, vector<128x1024xbf16>
    %cst_16 = arith.constant dense<0.000000e+00> : vector<32x1024xf32>
    %22 = tpu.matmul %20, %21, %cst_16 {dimension_numbers = #tpu.dot_dimension_numbers<[1], [0], [0], [1], [0, 0, 1, 1], [], []>} : vector<32x128xbf16>, vector<128x1024xbf16>, vector<32x1024xf32> -> vector<32x1024xf32>
    %c0_17 = arith.constant 0 : index
    %c0_18 = arith.constant 0 : index
    %23 = vector.load %arg8[%c0_17, %c0_18] : memref<1x1024xf32, #tpu.memory_space<vmem>>, vector<1x1024xf32>
    %24 = vector.broadcast %23 : vector<1x1024xf32> to vector<32x1024xf32>
    %25 = arith.addf %22, %24 : vector<32x1024xf32>
    %cst_19 = arith.constant 0.000000e+00 : f32
    %26 = vector.broadcast %cst_19 : f32 to vector<32x1024xf32>
    %27 = arith.maximumf %25, %26 : vector<32x1024xf32>
    %c0_20 = arith.constant 0 : index
    %c0_21 = arith.constant 0 : index
    %28 = vector.load %arg16[%c0_20, %c0_21] : memref<2x1024xf32, #tpu.memory_space<vmem>>, vector<2x1024xf32>
    %29 = vector.shape_cast %27 : vector<32x1024xf32> to vector<2x16x1024xf32>
    %cst_22 = arith.constant dense<0xFF800000> : vector<2x1024xf32>
    %30 = vector.multi_reduction <maximumf>, %29, %cst_22 [1] : vector<2x16x1024xf32> to vector<2x1024xf32>
    %31 = arith.maximumf %28, %30 : vector<2x1024xf32>
    %c0_23 = arith.constant 0 : index
    %c0_24 = arith.constant 0 : index
    %32 = vector.load %arg16[%c0_23, %c0_24] : memref<2x1024xf32, #tpu.memory_space<vmem>>, vector<2x1024xf32>
    tpu.vector_store %arg16[%c0_23, %c0_24], %31 {strides = array<i32>} : memref<2x1024xf32, #tpu.memory_space<vmem>>, vector<2x1024xf32>,
    %c0_i32_25 = arith.constant 0 : i32
    %33 = arith.cmpi eq, %arg1, %c0_i32_25 : i32
    %34 = arith.extui %33 : i1 to i32
    %c0_i32_26 = arith.constant 0 : i32
    %35 = arith.cmpi ne, %34, %c0_i32_26 : i32
    scf.if %35 {
      %c0_27 = arith.constant 0 : index
      %c0_28 = arith.constant 0 : index
      %36 = vector.load %arg16[%c0_27, %c0_28] : memref<2x1024xf32, #tpu.memory_space<vmem>>, vector<2x1024xf32>
      %37 = arith.truncf %36 : vector<2x1024xf32> to vector<2x1024xbf16>
      %c0_29 = arith.constant 0 : index
      %c0_30 = arith.constant 0 : index
      %38 = vector.load %arg9[%c0_29, %c0_30] : memref<1024x512xbf16, #tpu.memory_space<vmem>>, vector<1024x512xbf16>
      %cst_31 = arith.constant dense<0.000000e+00> : vector<2x512xf32>
      %39 = tpu.matmul %37, %38, %cst_31 {dimension_numbers = #tpu.dot_dimension_numbers<[1], [0], [0], [1], [0, 0, 1, 1], [], []>} : vector<2x1024xbf16>, vector<1024x512xbf16>, vector<2x512xf32> -> vector<2x512xf32>
      %c0_32 = arith.constant 0 : index
      %c0_33 = arith.constant 0 : index
      %40 = vector.load %arg10[%c0_32, %c0_33] : memref<1x512xf32, #tpu.memory_space<vmem>>, vector<1x512xf32>
      %41 = vector.broadcast %40 : vector<1x512xf32> to vector<2x512xf32>
      %42 = arith.addf %39, %41 : vector<2x512xf32>
      %cst_34 = arith.constant 0.000000e+00 : f32
      %43 = vector.broadcast %cst_34 : f32 to vector<2x512xf32>
      %44 = arith.maximumf %42, %43 : vector<2x512xf32>
      %45 = arith.truncf %44 : vector<2x512xf32> to vector<2x512xbf16>
      %c0_35 = arith.constant 0 : index
      %c0_36 = arith.constant 0 : index
      %46 = vector.load %arg11[%c0_35, %c0_36] : memref<512x256xbf16, #tpu.memory_space<vmem>>, vector<512x256xbf16>
      %cst_37 = arith.constant dense<0.000000e+00> : vector<2x256xf32>
      %47 = tpu.matmul %45, %46, %cst_37 {dimension_numbers = #tpu.dot_dimension_numbers<[1], [0], [0], [1], [0, 0, 1, 1], [], []>} : vector<2x512xbf16>, vector<512x256xbf16>, vector<2x256xf32> -> vector<2x256xf32>
      %c0_38 = arith.constant 0 : index
      %c0_39 = arith.constant 0 : index
      %48 = vector.load %arg12[%c0_38, %c0_39] : memref<1x256xf32, #tpu.memory_space<vmem>>, vector<1x256xf32>
      %49 = vector.broadcast %48 : vector<1x256xf32> to vector<2x256xf32>
      %50 = arith.addf %47, %49 : vector<2x256xf32>
      %cst_40 = arith.constant 0.000000e+00 : f32
      %51 = vector.broadcast %cst_40 : f32 to vector<2x256xf32>
      %52 = arith.maximumf %50, %51 : vector<2x256xf32>
      %53 = arith.truncf %52 : vector<2x256xf32> to vector<2x256xbf16>
      %c0_41 = arith.constant 0 : index
      %c0_42 = arith.constant 0 : index
      %54 = vector.load %arg13[%c0_41, %c0_42] : memref<256x128xbf16, #tpu.memory_space<vmem>>, vector<256x128xbf16>
      %cst_43 = arith.constant dense<0.000000e+00> : vector<2x128xf32>
      %55 = tpu.matmul %53, %54, %cst_43 {dimension_numbers = #tpu.dot_dimension_numbers<[1], [0], [0], [1], [0, 0, 1, 1], [], []>} : vector<2x256xbf16>, vector<256x128xbf16>, vector<2x128xf32> -> vector<2x128xf32>
      %c0_44 = arith.constant 0 : index
      %c0_45 = arith.constant 0 : index
      %56 = vector.load %arg14[%c0_44, %c0_45] : memref<1x128xf32, #tpu.memory_space<vmem>>, vector<1x128xf32>
      %57 = vector.broadcast %56 : vector<1x128xf32> to vector<2x128xf32>
      %58 = arith.addf %55, %57 : vector<2x128xf32>
      %c0_46 = arith.constant 0 : index
      %c0_47 = arith.constant 0 : index
      %59 = vector.load %arg15[%c0_46, %c0_47] : memref<2x128xf32, #tpu.memory_space<vmem>>, vector<2x128xf32>
      tpu.vector_store %arg15[%c0_46, %c0_47], %58 {strides = array<i32>} : memref<2x128xf32, #tpu.memory_space<vmem>>, vector<2x128xf32>,
    } else {
    }
    return
  }
  func.func @transform_0(%arg0: i32, %arg1: i32) -> (i32, i32, i32) {
    %c0_i32 = arith.constant 0 : i32
    %c0_i32_0 = arith.constant 0 : i32
    return %arg0, %arg1, %c0_i32 : i32, i32, i32
  }
  func.func @transform_1(%arg0: i32, %arg1: i32) -> (i32, i32) {
    %c0_i32 = arith.constant 0 : i32
    %c0_i32_0 = arith.constant 0 : i32
    %c0_i32_1 = arith.constant 0 : i32
    return %c0_i32, %c0_i32_0 : i32, i32
  }
  func.func @transform_2(%arg0: i32, %arg1: i32) -> (i32, i32) {
    %c0_i32 = arith.constant 0 : i32
    %c0_i32_0 = arith.constant 0 : i32
    %c0_i32_1 = arith.constant 0 : i32
    return %c0_i32, %c0_i32_0 : i32, i32
  }
  func.func @transform_3(%arg0: i32, %arg1: i32) -> (i32, i32) {
    %c0_i32 = arith.constant 0 : i32
    %c0_i32_0 = arith.constant 0 : i32
    %c0_i32_1 = arith.constant 0 : i32
    return %c0_i32, %c0_i32_0 : i32, i32
  }
  func.func @transform_4(%arg0: i32, %arg1: i32) -> (i32, i32) {
    %c0_i32 = arith.constant 0 : i32
    %c0_i32_0 = arith.constant 0 : i32
    %c0_i32_1 = arith.constant 0 : i32
    return %c0_i32, %c0_i32_0 : i32, i32
  }
  func.func @transform_5(%arg0: i32, %arg1: i32) -> (i32, i32) {
    %c0_i32 = arith.constant 0 : i32
    %c0_i32_0 = arith.constant 0 : i32
    %c0_i32_1 = arith.constant 0 : i32
    return %c0_i32, %c0_i32_0 : i32, i32
  }
  func.func @transform_6(%arg0: i32, %arg1: i32) -> (i32, i32) {
    %c0_i32 = arith.constant 0 : i32
    %c0_i32_0 = arith.constant 0 : i32
    %c0_i32_1 = arith.constant 0 : i32
    return %c0_i32, %c0_i32_0 : i32, i32
  }
  func.func @transform_7(%arg0: i32, %arg1: i32) -> (i32, i32) {
    %c0_i32 = arith.constant 0 : i32
    %c0_i32_0 = arith.constant 0 : i32
    %c0_i32_1 = arith.constant 0 : i32
    return %c0_i32, %c0_i32_0 : i32, i32
  }
  func.func @transform_8(%arg0: i32, %arg1: i32) -> (i32, i32) {
    %c0_i32 = arith.constant 0 : i32
    %c0_i32_0 = arith.constant 0 : i32
    %c0_i32_1 = arith.constant 0 : i32
    return %c0_i32, %c0_i32_0 : i32, i32
  }
  func.func @transform_9(%arg0: i32, %arg1: i32) -> (i32, i32) {
    %c0_i32 = arith.constant 0 : i32
    %c0_i32_0 = arith.constant 0 : i32
    %c0_i32_1 = arith.constant 0 : i32
    return %c0_i32, %c0_i32_0 : i32, i32
  }
  func.func @transform_10(%arg0: i32, %arg1: i32) -> (i32, i32) {
    %c0_i32 = arith.constant 0 : i32
    %c0_i32_0 = arith.constant 0 : i32
    %c0_i32_1 = arith.constant 0 : i32
    return %c0_i32, %c0_i32_0 : i32, i32
  }
  func.func @transform_11(%arg0: i32, %arg1: i32) -> (i32, i32) {
    %c0_i32 = arith.constant 0 : i32
    %c0_i32_0 = arith.constant 0 : i32
    %c0_i32_1 = arith.constant 0 : i32
    return %c0_i32, %c0_i32_0 : i32, i32
  }
  func.func @transform_12(%arg0: i32, %arg1: i32) -> (i32, i32) {
    %c0_i32 = arith.constant 0 : i32
    %c0_i32_0 = arith.constant 0 : i32
    %c0_i32_1 = arith.constant 0 : i32
    return %c0_i32, %c0_i32_0 : i32, i32
  }
  func.func @transform_13(%arg0: i32, %arg1: i32) -> (i32, i32) {
    %c0_i32 = arith.constant 0 : i32
    %c0_i32_0 = arith.constant 0 : i32
    return %arg0, %c0_i32 : i32, i32
  }
}

</mosaic_0001>

<llo_original>
// kernel: tpu_custom_call.1
$region0: #{tpu_custom_call.1}
  #allocation0 [shape = 'u32[]', space=smem, size = 0x4, offset = 0x4, fixed_abs, tag = 'smem constant byte address 0x4 - core index']
  #allocation1 [shape = 'u32[144,128]{1,0:T(1,128)}', space=vmem, size = 0x12000, scoped, tag = 'internal scratch']
  #allocation2 [shape = 'f32[2,1024]{1,0:T(2,128)}', space=vmem, size = 0x2000, scoped, tag = 'scratch operand']
  %s0 = inlined_call_operand.vmem [shape: bf16[2,16,8], index: 0, kind: input, shape index: {}]
  %s1 = inlined_call_operand.vmem [shape: bf16[8,64], index: 1, kind: input, shape index: {}]
  %s2 = inlined_call_operand.vmem [shape: f32[1,64], index: 2, kind: input, shape index: {}]
  %s3 = inlined_call_operand.hbm [shape: bf16[64,128], index: 3, kind: input, shape index: {}]
  %s4 = inlined_call_operand.vmem [shape: f32[1,128], index: 4, kind: input, shape index: {}]
  %s5 = inlined_call_operand.hbm [shape: bf16[128,1024], index: 5, kind: input, shape index: {}]
  %s6 = inlined_call_operand.vmem [shape: f32[1,1024], index: 6, kind: input, shape index: {}]
  %s7 = inlined_call_operand.hbm [shape: bf16[1024,512], index: 7, kind: input, shape index: {}]
  %s8 = inlined_call_operand.vmem [shape: f32[1,512], index: 8, kind: input, shape index: {}]
  %s9 = inlined_call_operand.hbm [shape: bf16[512,256], index: 9, kind: input, shape index: {}]
  %s10 = inlined_call_operand.vmem [shape: f32[1,256], index: 10, kind: input, shape index: {}]
  %s11 = inlined_call_operand.hbm [shape: bf16[256,128], index: 11, kind: input, shape index: {}]
  %s12 = inlined_call_operand.vmem [shape: f32[1,128], index: 12, kind: input, shape index: {}]
  %s13 = inlined_call_operand.hbm [shape: f32[2,128], index: 13, kind: output, shape index: {}]
  %s14 = sld [smem:[#allocation0]]
  $region90: #{tpu_custom_call.1} parent=0
    _
  %s16 = ssub.s32 1, %s14
  %s17 = scalar_select 0, %s16, %s14
  $region1: #{tpu_custom_call.1} parent=0
    #allocation3 [shape = 'u8[16384]{0}', space=vmem, size = 0x4000, scoped, tag = 'input window, operand 3, single buffered']
    #allocation4 [shape = 's32[1]{0}', space=sflag, size = 0x4, scoped, tag = 'scoped memory for tpu_custom_call.1']
    #allocation5 [shape = 's32[1]{0}', space=sflag, size = 0x4, scoped, tag = 'scoped memory for tpu_custom_call.1']
    #allocation6 [shape = 'u8[262144]{0}', space=vmem, size = 0x40000, scoped, tag = 'input window, operand 5, single buffered']
    #allocation7 [shape = 's32[1]{0}', space=sflag, size = 0x4, scoped, tag = 'scoped memory for tpu_custom_call.1']
    #allocation8 [shape = 'u8[1048576]{0}', space=vmem, size = 0x100000, scoped, tag = 'input window, operand 7, single buffered']
    #allocation9 [shape = 'u8[262144]{0}', space=vmem, size = 0x40000, scoped, tag = 'input window, operand 9, single buffered']
    #allocation10 [shape = 's32[1]{0}', space=sflag, size = 0x4, scoped, tag = 'scoped memory for tpu_custom_call.1']
    #allocation11 [shape = 'u8[65536]{0}', space=vmem, size = 0x10000, scoped, tag = 'input window, operand 11, single buffered']
    #allocation12 [shape = 'u8[1024]{0}', space=vmem, size = 0x400, scoped, tag = 'output window, operand 0, single buffered']
    %18 = vsyncpa [#allocation4], 0
    %19 = vsyncpa [#allocation7], 0
    %20 = vsyncpa [#allocation10], 0
    %21 = vsyncpa [#allocation5], 0
    // Predicated region
    $region2: #{tpu_custom_call.1} parent=1 // pred_check
      _
    $region3: #{tpu_custom_call.1} parent=1 // pred_check_branch
      %23 = sbr.rel (0) target = $region5
    $region4: #{tpu_custom_call.1} parent=1 // pred_region
      _
    $region5: #{tpu_custom_call.1} parent=1 // pred_fallthru
      _
    // Predicated region
    $region6: #{tpu_custom_call.1} parent=1 // pred_check
      _
    $region7: #{tpu_custom_call.1} parent=1 // pred_check_branch
      %25 = sbr.rel (0) target = $region9
    $region8: #{tpu_custom_call.1} parent=1 // pred_region
      _
    $region9: #{tpu_custom_call.1} parent=1 // pred_fallthru
      _
    // Predicated region
    $region10: #{tpu_custom_call.1} parent=1 // pred_check
      _
    $region11: #{tpu_custom_call.1} parent=1 // pred_check_branch
      %27 = sbr.rel (0) target = $region13
    $region12: #{tpu_custom_call.1} parent=1 // pred_region
      _
    $region13: #{tpu_custom_call.1} parent=1 // pred_fallthru
      _
    // Predicated region
    $region14: #{tpu_custom_call.1} parent=1 // pred_check
      _
    $region15: #{tpu_custom_call.1} parent=1 // pred_check_branch
      %29 = sbr.rel (0) target = $region17
    $region16: #{tpu_custom_call.1} parent=1 // pred_region
      %s31 = ssub.s32 512, 512
      %32 = vsyncadd [#allocation4], %s31
      %s33 = sshll.u32 [#allocation3], 4
      %s34 = int_to_ptr.vmem [resolvable:$true] %s33
      %39 = dma.hbm_to_vmem [thread:$0]  %s3, 512, %s34, [#allocation4], 64, 64, 4
    $region17: #{tpu_custom_call.1} parent=1 // pred_fallthru
      _
    // Predicated region
    $region18: #{tpu_custom_call.1} parent=1 // pred_check
      _
    $region19: #{tpu_custom_call.1} parent=1 // pred_check_branch
      %41 = sbr.rel (0) target = $region21
    $region20: #{tpu_custom_call.1} parent=1 // pred_region
      _
    $region21: #{tpu_custom_call.1} parent=1 // pred_fallthru
      _
    // Predicated region
    $region22: #{tpu_custom_call.1} parent=1 // pred_check
      _
    $region23: #{tpu_custom_call.1} parent=1 // pred_check_branch
      %43 = sbr.rel (0) target = $region25
    $region24: #{tpu_custom_call.1} parent=1 // pred_region
      %s45 = ssub.s32 8192, 8192
      %46 = vsyncadd [#allocation7], %s45
      %s47 = sshll.u32 [#allocation6], 4
      %s48 = int_to_ptr.vmem [resolvable:$true] %s47
      %53 = dma.hbm_to_vmem [thread:$0]  %s5, 8192, %s48, [#allocation7], 512, 512, 32
    $region25: #{tpu_custom_call.1} parent=1 // pred_fallthru
      _
    // Predicated region
    $region26: #{tpu_custom_call.1} parent=1 // pred_check
      _
    $region27: #{tpu_custom_call.1} parent=1 // pred_check_branch
      %55 = sbr.rel (0) target = $region29
    $region28: #{tpu_custom_call.1} parent=1 // pred_region
      _
    $region29: #{tpu_custom_call.1} parent=1 // pred_fallthru
      _
    // Predicated region
    $region30: #{tpu_custom_call.1} parent=1 // pred_check
      _
    $region31: #{tpu_custom_call.1} parent=1 // pred_check_branch
      %57 = sbr.rel (0) target = $region33
    $region32: #{tpu_custom_call.1} parent=1 // pred_region
      %s59 = ssub.s32 32768, 32768
      %60 = vsyncadd [#allocation7], %s59
      %s61 = sshll.u32 [#allocation8], 4
      %s62 = int_to_ptr.vmem [resolvable:$true] %s61
      %67 = dma.hbm_to_vmem [thread:$0]  %s7, 32768, %s62, [#allocation7], 256, 256, 16
    $region33: #{tpu_custom_call.1} parent=1 // pred_fallthru
      _
    // Predicated region
    $region34: #{tpu_custom_call.1} parent=1 // pred_check
      _
    $region35: #{tpu_custom_call.1} parent=1 // pred_check_branch
      %69 = sbr.rel (0) target = $region37
    $region36: #{tpu_custom_call.1} parent=1 // pred_region
      _
    $region37: #{tpu_custom_call.1} parent=1 // pred_fallthru
      _
    // Predicated region
    $region38: #{tpu_custom_call.1} parent=1 // pred_check
      _
    $region39: #{tpu_custom_call.1} parent=1 // pred_check_branch
      %71 = sbr.rel (0) target = $region41
    $region40: #{tpu_custom_call.1} parent=1 // pred_region
      %s73 = ssub.s32 8192, 8192
      %74 = vsyncadd [#allocation10], %s73
      %s75 = sshll.u32 [#allocation9], 4
      %s76 = int_to_ptr.vmem [resolvable:$true] %s75
      %81 = dma.hbm_to_vmem [thread:$0]  %s9, 8192, %s76, [#allocation10], 128, 128, 8
    $region41: #{tpu_custom_call.1} parent=1 // pred_fallthru
      _
    // Predicated region
    $region42: #{tpu_custom_call.1} parent=1 // pred_check
      _
    $region43: #{tpu_custom_call.1} parent=1 // pred_check_branch
      %83 = sbr.rel (0) target = $region45
    $region44: #{tpu_custom_call.1} parent=1 // pred_region
      _
    $region45: #{tpu_custom_call.1} parent=1 // pred_fallthru
      _
    // Predicated region
    $region46: #{tpu_custom_call.1} parent=1 // pred_check
      _
    $region47: #{tpu_custom_call.1} parent=1 // pred_check_branch
      %85 = sbr.rel (0) target = $region49
    $region48: #{tpu_custom_call.1} parent=1 // pred_region
      %s87 = ssub.s32 2048, 2048
      %88 = vsyncadd [#allocation10], %s87
      %s89 = sshll.u32 [#allocation11], 4
      %s90 = int_to_ptr.vmem [resolvable:$true] %s89
      %95 = dma.hbm_to_vmem [thread:$0]  %s11, 2048, %s90, [#allocation10], 64, 64, 4
    $region49: #{tpu_custom_call.1} parent=1 // pred_fallthru
      _
    // Predicated region
    $region50: #{tpu_custom_call.1} parent=1 // pred_check
      _
    $region51: #{tpu_custom_call.1} parent=1 // pred_check_branch
      %97 = sbr.rel (0) target = $region53
    $region52: #{tpu_custom_call.1} parent=1 // pred_region
      _
    $region53: #{tpu_custom_call.1} parent=1 // pred_fallthru
      _
    // Predicated region
    $region54: #{tpu_custom_call.1} parent=1 // pred_check
      _
    $region55: #{tpu_custom_call.1} parent=1 // pred_check_branch
      %99 = sbr.rel (0) target = $region57
    $region56: #{tpu_custom_call.1} parent=1 // pred_region
      %100 = dma.done [#allocation4], 512
    $region57: #{tpu_custom_call.1} parent=1 // pred_fallthru
      _
    // Predicated region
    $region58: #{tpu_custom_call.1} parent=1 // pred_check
      _
    $region59: #{tpu_custom_call.1} parent=1 // pred_check_branch
      %102 = sbr.rel (0) target = $region61
    $region60: #{tpu_custom_call.1} parent=1 // pred_region
      %103 = dma.done [#allocation7], 8192
    $region61: #{tpu_custom_call.1} parent=1 // pred_fallthru
      _
    // Predicated region
    $region62: #{tpu_custom_call.1} parent=1 // pred_check
      _
    $region63: #{tpu_custom_call.1} parent=1 // pred_check_branch
      %105 = sbr.rel (0) target = $region65
    $region64: #{tpu_custom_call.1} parent=1 // pred_region
      %106 = dma.done [#allocation7], 32768
    $region65: #{tpu_custom_call.1} parent=1 // pred_fallthru
      _
    // Predicated region
    $region66: #{tpu_custom_call.1} parent=1 // pred_check
      _
    $region67: #{tpu_custom_call.1} parent=1 // pred_check_branch
      %108 = sbr.rel (0) target = $region69
    $region68: #{tpu_custom_call.1} parent=1 // pred_region
      %109 = dma.done [#allocation10], 8192
    $region69: #{tpu_custom_call.1} parent=1 // pred_fallthru
      _
    // Predicated region
    $region70: #{tpu_custom_call.1} parent=1 // pred_check
      _
    $region71: #{tpu_custom_call.1} parent=1 // pred_check_branch
      %111 = sbr.rel (0) target = $region73
    $region72: #{tpu_custom_call.1} parent=1 // pred_region
      %112 = dma.done [#allocation10], 2048
    $region73: #{tpu_custom_call.1} parent=1 // pred_fallthru
      _
    %p114 = scmp.eq.s32.totalorder 0, 0
    // Predicated region
    $region74: #{tpu_custom_call.1} parent=1 // pred_check
      %p115 = pneg %p114
    $region75: #{tpu_custom_call.1} parent=1 // pred_check_branch
      %117 = sbr.rel (%p115) target = $region77
    $region76: #{tpu_custom_call.1} parent=1 // pred_region
      %118 = vst [vmem:[#allocation2] sm:$0xff] -inf
      %119 = vst [vmem:[#allocation2 + $0x8] sm:$0xff] -inf
    $region77: #{tpu_custom_call.1} parent=1 // pred_fallthru
      _
    %v120 = vld [vmem:[%s0] sm:$0xf]
    %v121 = vld [vmem:[%s0 + $0x4] sm:$0xf]
    %v122 = vld [vmem:[%s0 + $0x8] sm:$0xf]
    %v123 = vld [vmem:[%s0 + $0xc] sm:$0xf]
    %v124 = vld [vmem:[%s1] sm:$0xf]
    %v125 = vld [vmem:[%s2] sm:$0x1]
    %v127 = vlaneseq
    %v128 = vshrl.u32 %v127, 7
    %v129 = vsub.s32 0, %v128
    %v130 = vrot.slane %v125, %v129
    %v136 = vunpack.c.l.b16 %v120
    %v137 = vunpack.c.l.b16 %v121
    %v138 = vunpack.c.l.b16 %v122
    %v139 = vunpack.c.l.b16 %v123
    %v140 = vpack.c.b16 %v137, %v136
    %v141 = vpack.c.b16 %v139, %v138
    %vm142 = vcmask 64512
    %v144 = vsel %vm142, %v140, 0
    %v147 = vsel %vm142, %v141, 0
    %vm149 = vcmask 1043456
    %v151 = vsel %vm149, %v124, 0
    %153 = vmatprep.subr.bf16.mxu0 0
    %154 = vmatpush1.bf16.msra.mxu0 0
    %155 = vmatprep.subr.bf16.mxu0 0
    %156 = vmatpush1.bf16.msra.mxu0 0
    %157 = vmatprep.subr.bf16.mxu0 0
    %158 = vmatpush1.bf16.msra.mxu0 0
    %159 = vmatprep.subr.bf16.mxu0 0
    %160 = vmatpush1.bf16.msra.mxu0 0
    %161 = vmatprep.subr.bf16.mxu0 0
    %162 = vmatpush1.bf16.msra.mxu0 0
    %163 = vmatprep.subr.bf16.mxu0 0
    %164 = vmatpush1.bf16.msra.mxu0 0
    %165 = vmatprep.subr.bf16.mxu0 0
    %166 = vmatpush1.bf16.msra.mxu0 0
    %167 = vmatprep.subr.bf16.mxu0 0
    %168 = vmatpush1.bf16.msra.mxu0 %v151
    %169 = vmatprep.subr.bf16.mxu0 0
    %170 = vmatpush2.bf16.msra.mxu0 0
    %171 = vmatprep.subr.bf16.mxu0 0
    %172 = vmatpush2.bf16.msra.mxu0 0
    %173 = vmatprep.subr.bf16.mxu0 0
    %174 = vmatpush2.bf16.msra.mxu0 0
    %175 = vmatprep.subr.bf16.mxu0 0
    %176 = vmatpush2.bf16.msra.mxu0 0
    %177 = vmatprep.subr.bf16.mxu0 0
    %178 = vmatpush2.bf16.msra.mxu0 0
    %179 = vmatprep.subr.bf16.mxu0 0
    %180 = vmatpush2.bf16.msra.mxu0 0
    %181 = vmatprep.subr.bf16.mxu0 0
    %182 = vmatpush2.bf16.msra.mxu0 0
    %183 = vmatprep.subr.bf16.mxu0 0
    %184 = vmatpush2.bf16.msra.mxu0 0
    %185 = vmatprep.mubr.bf16.mxu0 0
    %186 = vmatmul.mubr.bf16.gmra.mxu0 %v144
    %v187 = vpop.f32.mrf.mxu0
    %v188 = vadd.f32 %v130, %v187
    %v189 = vpop.f32.mrf.mxu0
    %v190 = vpop.f32.mrf.mxu0
    %v191 = vadd.f32 %v130, %v190
    %v192 = vpop.f32.mrf.mxu0
    %193 = vmatprep.mubr.bf16.mxu0 0
    %194 = vmatmul.mubr.bf16.gmra.mxu0 %v147
    %v195 = vpop.f32.mrf.mxu0
    %v196 = vadd.f32 %v130, %v195
    %v197 = vpop.f32.mrf.mxu0
    %v198 = vpop.f32.mrf.mxu0
    %v199 = vadd.f32 %v130, %v198
    %v200 = vpop.f32.mrf.mxu0
    %201 = vdwg.mxu0
    %v202 = vmax.f32 %v188, 0.0
    %v203 = vmax.f32 %v191, 0.0
    %v204 = vmax.f32 %v196, 0.0
    %v205 = vmax.f32 %v199, 0.0
    %v206 = vpack.c.bf16 %v203, %v202
    %v207 = vpack.c.bf16 %v205, %v204
    %v208 = vld [vmem:[#allocation3] sm:$0xf]
    %v209 = vld [vmem:[#allocation3 + $0x4] sm:$0xf]
    %v210 = vld [vmem:[#allocation3 + $0x8] sm:$0xf]
    %v211 = vld [vmem:[#allocation3 + $0xc] sm:$0xf]
    %v212 = vld [vmem:[#allocation3 + $0x10] sm:$0xf]
    %v213 = vld [vmem:[#allocation3 + $0x14] sm:$0xf]
    %v214 = vld [vmem:[#allocation3 + $0x18] sm:$0xf]
    %v215 = vld [vmem:[#allocation3 + $0x1c] sm:$0xf]
    %v216 = vld [vmem:[%s4] sm:$0x1]
    %v218 = vlaneseq
    %v219 = vshrl.u32 %v218, 7
    %v220 = vsub.s32 0, %v219
    %v221 = vrot.slane %v216, %v220
    %v231 = vunpack.c.l.b16 %v208
    %v232 = vunpack.c.l.b16 %v209
    %v233 = vunpack.c.l.b16 %v210
    %v234 = vunpack.c.l.b16 %v211
    %v235 = vunpack.c.l.b16 %v212
    %v236 = vunpack.c.l.b16 %v213
    %v237 = vunpack.c.l.b16 %v214
    %v238 = vunpack.c.l.b16 %v215
    %v239 = vpack.c.b16 %v232, %v231
    %v240 = vpack.c.b16 %v234, %v233
    %v241 = vpack.c.b16 %v236, %v235
    %v242 = vpack.c.b16 %v238, %v237
    %vm247 = vcmask 523264
    %v249 = vsel %vm247, %v206, 0
    %v252 = vsel %vm247, %v207, 0
    %254 = vmatprep.subr.bf16.mxu0 0
    %255 = vmatpush1.bf16.msra.mxu0 0
    %256 = vmatprep.subr.bf16.mxu0 0
    %257 = vmatpush1.bf16.msra.mxu0 0
    %258 = vmatprep.subr.bf16.mxu0 0
    %259 = vmatpush1.bf16.msra.mxu0 0
    %260 = vmatprep.subr.bf16.mxu0 0
    %261 = vmatpush1.bf16.msra.mxu0 0
    %262 = vmatprep.subr.bf16.mxu0 0
    %263 = vmatpush1.bf16.msra.mxu0 %v242
    %264 = vmatprep.subr.bf16.mxu0 0
    %265 = vmatpush1.bf16.msra.mxu0 %v241
    %266 = vmatprep.subr.bf16.mxu0 0
    %267 = vmatpush1.bf16.msra.mxu0 %v240
    %268 = vmatprep.subr.bf16.mxu0 0
    %269 = vmatpush1.bf16.msra.mxu0 %v239
    %270 = vmatprep.subr.bf16.mxu0 0
    %271 = vmatpush2.bf16.msra.mxu0 0
    %272 = vmatprep.subr.bf16.mxu0 0
    %273 = vmatpush2.bf16.msra.mxu0 0
    %274 = vmatprep.subr.bf16.mxu0 0
    %275 = vmatpush2.bf16.msra.mxu0 0
    %276 = vmatprep.subr.bf16.mxu0 0
    %277 = vmatpush2.bf16.msra.mxu0 0
    %278 = vmatprep.subr.bf16.mxu0 0
    %279 = vmatpush2.bf16.msra.mxu0 0
    %280 = vmatprep.subr.bf16.mxu0 0
    %281 = vmatpush2.bf16.msra.mxu0 0
    %282 = vmatprep.subr.bf16.mxu0 0
    %283 = vmatpush2.bf16.msra.mxu0 0
    %284 = vmatprep.subr.bf16.mxu0 0
    %285 = vmatpush2.bf16.msra.mxu0 0
    %286 = vmatprep.mubr.bf16.mxu0 0
    %287 = vmatmul.mubr.bf16.gmra.mxu0 %v249
    %v288 = vpop.f32.mrf.mxu0
    %v289 = vadd.f32 %v221, %v288
    %v290 = vpop.f32.mrf.mxu0
    %v291 = vpop.f32.mrf.mxu0
    %v292 = vadd.f32 %v221, %v291
    %v293 = vpop.f32.mrf.mxu0
    %294 = vmatprep.mubr.bf16.mxu0 0
    %295 = vmatmul.mubr.bf16.gmra.mxu0 %v252
    %v296 = vpop.f32.mrf.mxu0
    %v297 = vadd.f32 %v221, %v296
    %v298 = vpop.f32.mrf.mxu0
    %v299 = vpop.f32.mrf.mxu0
    %v300 = vadd.f32 %v221, %v299
    %v301 = vpop.f32.mrf.mxu0
    %302 = vdwg.mxu0
    %v303 = vmax.f32 %v289, 0.0
    %v304 = vmax.f32 %v292, 0.0
    %v305 = vmax.f32 %v297, 0.0
    %v306 = vmax.f32 %v300, 0.0
    %v307 = vpack.c.bf16 %v304, %v303
    %v308 = vpack.c.bf16 %v306, %v305
    %v309 = vld [vmem:[#allocation6] sm:$0xff]
    %v310 = vld [vmem:[#allocation6 + $0x8] sm:$0xff]
    %v311 = vld [vmem:[#allocation6 + $0x10] sm:$0xff]
    %v312 = vld [vmem:[#allocation6 + $0x18] sm:$0xff]
    %v313 = vld [vmem:[#allocation6 + $0x20] sm:$0xff]
    %v314 = vld [vmem:[#allocation6 + $0x28] sm:$0xff]
    %v315 = vld [vmem:[#allocation6 + $0x30] sm:$0xff]
    %v316 = vld [vmem:[#allocation6 + $0x38] sm:$0xff]
    %v317 = vld [vmem:[#allocation6 + $0x40] sm:$0xff]
    %v318 = vld [vmem:[#allocation6 + $0x48] sm:$0xff]
    %v319 = vld [vmem:[#allocation6 + $0x50] sm:$0xff]
    %v320 = vld [vmem:[#allocation6 + $0x58] sm:$0xff]
    %v321 = vld [vmem:[#allocation6 + $0x60] sm:$0xff]
    %v322 = vld [vmem:[#allocation6 + $0x68] sm:$0xff]
    %v323 = vld [vmem:[#allocation6 + $0x70] sm:$0xff]
    %v324 = vld [vmem:[#allocation6 + $0x78] sm:$0xff]
    %v325 = vld [vmem:[#allocation6 + $0x80] sm:$0xff]
    %v326 = vld [vmem:[#allocation6 + $0x88] sm:$0xff]
    %v327 = vld [vmem:[#allocation6 + $0x90] sm:$0xff]
    %v328 = vld [vmem:[#allocation6 + $0x98] sm:$0xff]
    %v329 = vld [vmem:[#allocation6 + $0xa0] sm:$0xff]
    %v330 = vld [vmem:[#allocation6 + $0xa8] sm:$0xff]
    %v331 = vld [vmem:[#allocation6 + $0xb0] sm:$0xff]
    %v332 = vld [vmem:[#allocation6 + $0xb8] sm:$0xff]
    %v333 = vld [vmem:[#allocation6 + $0xc0] sm:$0xff]
    %v334 = vld [vmem:[#allocation6 + $0xc8] sm:$0xff]
    %v335 = vld [vmem:[#allocation6 + $0xd0] sm:$0xff]
    %v336 = vld [vmem:[#allocation6 + $0xd8] sm:$0xff]
    %v337 = vld [vmem:[#allocation6 + $0xe0] sm:$0xff]
    %v338 = vld [vmem:[#allocation6 + $0xe8] sm:$0xff]
    %v339 = vld [vmem:[#allocation6 + $0xf0] sm:$0xff]
    %v340 = vld [vmem:[#allocation6 + $0xf8] sm:$0xff]
    %v341 = vld [vmem:[#allocation6 + $0x100] sm:$0xff]
    %v342 = vld [vmem:[#allocation6 + $0x108] sm:$0xff]
    %v343 = vld [vmem:[#allocation6 + $0x110] sm:$0xff]
    %v344 = vld [vmem:[#allocation6 + $0x118] sm:$0xff]
    %v345 = vld [vmem:[#allocation6 + $0x120] sm:$0xff]
    %v346 = vld [vmem:[#allocation6 + $0x128] sm:$0xff]
    %v347 = vld [vmem:[#allocation6 + $0x130] sm:$0xff]
    %v348 = vld [vmem:[#allocation6 + $0x138] sm:$0xff]
    %v349 = vld [vmem:[#allocation6 + $0x140] sm:$0xff]
    %v350 = vld [vmem:[#allocation6 + $0x148] sm:$0xff]
    %v351 = vld [vmem:[#allocation6 + $0x150] sm:$0xff]
    %v352 = vld [vmem:[#allocation6 + $0x158] sm:$0xff]
    %v353 = vld [vmem:[#allocation6 + $0x160] sm:$0xff]
    %v354 = vld [vmem:[#allocation6 + $0x168] sm:$0xff]
    %v355 = vld [vmem:[#allocation6 + $0x170] sm:$0xff]
    %v356 = vld [vmem:[#allocation6 + $0x178] sm:$0xff]
    %v357 = vld [vmem:[#allocation6 + $0x180] sm:$0xff]
    %v358 = vld [vmem:[#allocation6 + $0x188] sm:$0xff]
    %v359 = vld [vmem:[#allocation6 + $0x190] sm:$0xff]
    %v360 = vld [vmem:[#allocation6 + $0x198] sm:$0xff]
    %v361 = vld [vmem:[#allocation6 + $0x1a0] sm:$0xff]
    %v362 = vld [vmem:[#allocation6 + $0x1a8] sm:$0xff]
    %v363 = vld [vmem:[#allocation6 + $0x1b0] sm:$0xff]
    %v364 = vld [vmem:[#allocation6 + $0x1b8] sm:$0xff]
    %v365 = vld [vmem:[#allocation6 + $0x1c0] sm:$0xff]
    %v366 = vld [vmem:[#allocation6 + $0x1c8] sm:$0xff]
    %v367 = vld [vmem:[#allocation6 + $0x1d0] sm:$0xff]
    %v368 = vld [vmem:[#allocation6 + $0x1d8] sm:$0xff]
    %v369 = vld [vmem:[#allocation6 + $0x1e0] sm:$0xff]
    %v370 = vld [vmem:[#allocation6 + $0x1e8] sm:$0xff]
    %v371 = vld [vmem:[#allocation6 + $0x1f0] sm:$0xff]
    %v372 = vld [vmem:[#allocation6 + $0x1f8] sm:$0xff]
    %v373 = vld [vmem:[%s6] sm:$0xff]
    %v375 = vlaneseq
    %v376 = vshrl.u32 %v375, 7
    %v377 = vsub.s32 0, %v376
    %v378 = vrot.slane %v373, %v377
    %v379 = vlaneseq
    %v380 = vshrl.u32 %v379, 7
    %v381 = vsub.s32 1, %v380
    %v382 = vrot.slane %v373, %v381
    %v383 = vlaneseq
    %v384 = vshrl.u32 %v383, 7
    %v385 = vsub.s32 2, %v384
    %v386 = vrot.slane %v373, %v385
    %v387 = vlaneseq
    %v388 = vshrl.u32 %v387, 7
    %v389 = vsub.s32 3, %v388
    %v390 = vrot.slane %v373, %v389
    %v391 = vlaneseq
    %v392 = vshrl.u32 %v391, 7
    %v393 = vsub.s32 4, %v392
    %v394 = vrot.slane %v373, %v393
    %v395 = vlaneseq
    %v396 = vshrl.u32 %v395, 7
    %v397 = vsub.s32 5, %v396
    %v398 = vrot.slane %v373, %v397
    %v399 = vlaneseq
    %v400 = vshrl.u32 %v399, 7
    %v401 = vsub.s32 6, %v400
    %v402 = vrot.slane %v373, %v401
    %v403 = vlaneseq
    %v404 = vshrl.u32 %v403, 7
    %v405 = vsub.s32 7, %v404
    %v406 = vrot.slane %v373, %v405
    %v479 = vunpack.c.l.b16 %v309
    %v480 = vunpack.c.h.b16 %v309
    %v481 = vunpack.c.l.b16 %v310
    %v482 = vunpack.c.h.b16 %v310
    %v483 = vunpack.c.l.b16 %v311
    %v484 = vunpack.c.h.b16 %v311
    %v485 = vunpack.c.l.b16 %v312
    %v486 = vunpack.c.h.b16 %v312
    %v487 = vunpack.c.l.b16 %v313
    %v488 = vunpack.c.h.b16 %v313
    %v489 = vunpack.c.l.b16 %v314
    %v490 = vunpack.c.h.b16 %v314
    %v491 = vunpack.c.l.b16 %v315
    %v492 = vunpack.c.h.b16 %v315
    %v493 = vunpack.c.l.b16 %v316
    %v494 = vunpack.c.h.b16 %v316
    %v495 = vunpack.c.l.b16 %v317
    %v496 = vunpack.c.h.b16 %v317
    %v497 = vunpack.c.l.b16 %v318
    %v498 = vunpack.c.h.b16 %v318
    %v499 = vunpack.c.l.b16 %v319
    %v500 = vunpack.c.h.b16 %v319
    %v501 = vunpack.c.l.b16 %v320
    %v502 = vunpack.c.h.b16 %v320
    %v503 = vunpack.c.l.b16 %v321
    %v504 = vunpack.c.h.b16 %v321
    %v505 = vunpack.c.l.b16 %v322
    %v506 = vunpack.c.h.b16 %v322
    %v507 = vunpack.c.l.b16 %v323
    %v508 = vunpack.c.h.b16 %v323
    %v509 = vunpack.c.l.b16 %v324
    %v510 = vunpack.c.h.b16 %v324
    %v511 = vunpack.c.l.b16 %v325
    %v512 = vunpack.c.h.b16 %v325
    %v513 = vunpack.c.l.b16 %v326
    %v514 = vunpack.c.h.b16 %v326
    %v515 = vunpack.c.l.b16 %v327
    %v516 = vunpack.c.h.b16 %v327
    %v517 = vunpack.c.l.b16 %v328
    %v518 = vunpack.c.h.b16 %v328
    %v519 = vunpack.c.l.b16 %v329
    %v520 = vunpack.c.h.b16 %v329
    %v521 = vunpack.c.l.b16 %v330
    %v522 = vunpack.c.h.b16 %v330
    %v523 = vunpack.c.l.b16 %v331
    %v524 = vunpack.c.h.b16 %v331
    %v525 = vunpack.c.l.b16 %v332
    %v526 = vunpack.c.h.b16 %v332
    %v527 = vunpack.c.l.b16 %v333
    %v528 = vunpack.c.h.b16 %v333
    %v529 = vunpack.c.l.b16 %v334
    %v530 = vunpack.c.h.b16 %v334
    %v531 = vunpack.c.l.b16 %v335
    %v532 = vunpack.c.h.b16 %v335
    %v533 = vunpack.c.l.b16 %v336
    %v534 = vunpack.c.h.b16 %v336
    %v535 = vunpack.c.l.b16 %v337
    %v536 = vunpack.c.h.b16 %v337
    %v537 = vunpack.c.l.b16 %v338
    %v538 = vunpack.c.h.b16 %v338
    %v539 = vunpack.c.l.b16 %v339
    %v540 = vunpack.c.h.b16 %v339
    %v541 = vunpack.c.l.b16 %v340
    %v542 = vunpack.c.h.b16 %v340
    %v543 = vunpack.c.l.b16 %v341
    %v544 = vunpack.c.h.b16 %v341
    %v545 = vunpack.c.l.b16 %v342
    %v546 = vunpack.c.h.b16 %v342
    %v547 = vunpack.c.l.b16 %v343
    %v548 = vunpack.c.h.b16 %v343
    %v549 = vunpack.c.l.b16 %v344
    %v550 = vunpack.c.h.b16 %v344
    %v551 = vunpack.c.l.b16 %v345
    %v552 = vunpack.c.h.b16 %v345
    %v553 = vunpack.c.l.b16 %v346
    %v554 = vunpack.c.h.b16 %v346
    %v555 = vunpack.c.l.b16 %v347
    %v556 = vunpack.c.h.b16 %v347
    %v557 = vunpack.c.l.b16 %v348
    %v558 = vunpack.c.h.b16 %v348
    %v559 = vunpack.c.l.b16 %v349
    %v560 = vunpack.c.h.b16 %v349
    %v561 = vunpack.c.l.b16 %v350
    %v562 = vunpack.c.h.b16 %v350
    %v563 = vunpack.c.l.b16 %v351
    %v564 = vunpack.c.h.b16 %v351
    %v565 = vunpack.c.l.b16 %v352
    %v566 = vunpack.c.h.b16 %v352
    %v567 = vunpack.c.l.b16 %v353
    %v568 = vunpack.c.h.b16 %v353
    %v569 = vunpack.c.l.b16 %v354
    %v570 = vunpack.c.h.b16 %v354
    %v571 = vunpack.c.l.b16 %v355
    %v572 = vunpack.c.h.b16 %v355
    %v573 = vunpack.c.l.b16 %v356
    %v574 = vunpack.c.h.b16 %v356
    %v575 = vunpack.c.l.b16 %v357
    %v576 = vunpack.c.h.b16 %v357
    %v577 = vunpack.c.l.b16 %v358
    %v578 = vunpack.c.h.b16 %v358
    %v579 = vunpack.c.l.b16 %v359
    %v580 = vunpack.c.h.b16 %v359
    %v581 = vunpack.c.l.b16 %v360
    %v582 = vunpack.c.h.b16 %v360
    %v583 = vunpack.c.l.b16 %v361
    %v584 = vunpack.c.h.b16 %v361
    %v585 = vunpack.c.l.b16 %v362
    %v586 = vunpack.c.h.b16 %v362
    %v587 = vunpack.c.l.b16 %v363
    %v588 = vunpack.c.h.b16 %v363
    %v589 = vunpack.c.l.b16 %v364
    %v590 = vunpack.c.h.b16 %v364
    %v591 = vunpack.c.l.b16 %v365
    %v592 = vunpack.c.h.b16 %v365
    %v593 = vunpack.c.l.b16 %v366
    %v594 = vunpack.c.h.b16 %v366
    %v595 = vunpack.c.l.b16 %v367
    %v596 = vunpack.c.h.b16 %v367
    %v597 = vunpack.c.l.b16 %v368
    %v598 = vunpack.c.h.b16 %v368
    %v599 = vunpack.c.l.b16 %v369
    %v600 = vunpack.c.h.b16 %v369
    %v601 = vunpack.c.l.b16 %v370
    %v602 = vunpack.c.h.b16 %v370
    %v603 = vunpack.c.l.b16 %v371
    %v604 = vunpack.c.h.b16 %v371
    %v605 = vunpack.c.l.b16 %v372
    %v606 = vunpack.c.h.b16 %v372
    %v607 = vpack.c.b16 %v487, %v479
    %v608 = vpack.c.b16 %v488, %v480
    %v609 = vpack.c.b16 %v489, %v481
    %v610 = vpack.c.b16 %v490, %v482
    %v611 = vpack.c.b16 %v491, %v483
    %v612 = vpack.c.b16 %v492, %v484
    %v613 = vpack.c.b16 %v493, %v485
    %v614 = vpack.c.b16 %v494, %v486
    %v615 = vpack.c.b16 %v503, %v495
    %v616 = vpack.c.b16 %v504, %v496
    %v617 = vpack.c.b16 %v505, %v497
    %v618 = vpack.c.b16 %v506, %v498
    %v619 = vpack.c.b16 %v507, %v499
    %v620 = vpack.c.b16 %v508, %v500
    %v621 = vpack.c.b16 %v509, %v501
    %v622 = vpack.c.b16 %v510, %v502
    %v623 = vpack.c.b16 %v519, %v511
    %v624 = vpack.c.b16 %v520, %v512
    %v625 = vpack.c.b16 %v521, %v513
    %v626 = vpack.c.b16 %v522, %v514
    %v627 = vpack.c.b16 %v523, %v515
    %v628 = vpack.c.b16 %v524, %v516
    %v629 = vpack.c.b16 %v525, %v517
    %v630 = vpack.c.b16 %v526, %v518
    %v631 = vpack.c.b16 %v535, %v527
    %v632 = vpack.c.b16 %v536, %v528
    %v633 = vpack.c.b16 %v537, %v529
    %v634 = vpack.c.b16 %v538, %v530
    %v635 = vpack.c.b16 %v539, %v531
    %v636 = vpack.c.b16 %v540, %v532
    %v637 = vpack.c.b16 %v541, %v533
    %v638 = vpack.c.b16 %v542, %v534
    %v639 = vpack.c.b16 %v551, %v543
    %v640 = vpack.c.b16 %v552, %v544
    %v641 = vpack.c.b16 %v553, %v545
    %v642 = vpack.c.b16 %v554, %v546
    %v643 = vpack.c.b16 %v555, %v547
    %v644 = vpack.c.b16 %v556, %v548
    %v645 = vpack.c.b16 %v557, %v549
    %v646 = vpack.c.b16 %v558, %v550
    %v647 = vpack.c.b16 %v567, %v559
    %v648 = vpack.c.b16 %v568, %v560
    %v649 = vpack.c.b16 %v569, %v561
    %v650 = vpack.c.b16 %v570, %v562
    %v651 = vpack.c.b16 %v571, %v563
    %v652 = vpack.c.b16 %v572, %v564
    %v653 = vpack.c.b16 %v573, %v565
    %v654 = vpack.c.b16 %v574, %v566
    %v655 = vpack.c.b16 %v583, %v575
    %v656 = vpack.c.b16 %v584, %v576
    %v657 = vpack.c.b16 %v585, %v577
    %v658 = vpack.c.b16 %v586, %v578
    %v659 = vpack.c.b16 %v587, %v579
    %v660 = vpack.c.b16 %v588, %v580
    %v661 = vpack.c.b16 %v589, %v581
    %v662 = vpack.c.b16 %v590, %v582
    %v663 = vpack.c.b16 %v599, %v591
    %v664 = vpack.c.b16 %v600, %v592
    %v665 = vpack.c.b16 %v601, %v593
    %v666 = vpack.c.b16 %v602, %v594
    %v667 = vpack.c.b16 %v603, %v595
    %v668 = vpack.c.b16 %v604, %v596
    %v669 = vpack.c.b16 %v605, %v597
    %v670 = vpack.c.b16 %v606, %v598
    %735 = vmatprep.subr.bf16.mxu0 %v664
    %736 = vmatpush1.bf16.msra.mxu0 %v663
    %737 = vmatprep.subr.bf16.mxu0 %v656
    %738 = vmatpush1.bf16.msra.mxu0 %v655
    %739 = vmatprep.subr.bf16.mxu0 %v648
    %740 = vmatpush1.bf16.msra.mxu0 %v647
    %741 = vmatprep.subr.bf16.mxu0 %v640
    %742 = vmatpush1.bf16.msra.mxu0 %v639
    %743 = vmatprep.subr.bf16.mxu0 %v632
    %744 = vmatpush1.bf16.msra.mxu0 %v631
    %745 = vmatprep.subr.bf16.mxu0 %v624
    %746 = vmatpush1.bf16.msra.mxu0 %v623
    %747 = vmatprep.subr.bf16.mxu0 %v616
    %748 = vmatpush1.bf16.msra.mxu0 %v615
    %749 = vmatprep.subr.bf16.mxu0 %v608
    %750 = vmatpush1.bf16.msra.mxu0 %v607
    %751 = vmatprep.subr.bf16.mxu0 0
    %752 = vmatpush2.bf16.msra.mxu0 0
    %753 = vmatprep.subr.bf16.mxu0 0
    %754 = vmatpush2.bf16.msra.mxu0 0
    %755 = vmatprep.subr.bf16.mxu0 0
    %756 = vmatpush2.bf16.msra.mxu0 0
    %757 = vmatprep.subr.bf16.mxu0 0
    %758 = vmatpush2.bf16.msra.mxu0 0
    %759 = vmatprep.subr.bf16.mxu0 0
    %760 = vmatpush2.bf16.msra.mxu0 0
    %761 = vmatprep.subr.bf16.mxu0 0
    %762 = vmatpush2.bf16.msra.mxu0 0
    %763 = vmatprep.subr.bf16.mxu0 0
    %764 = vmatpush2.bf16.msra.mxu0 0
    %765 = vmatprep.subr.bf16.mxu0 0
    %766 = vmatpush2.bf16.msra.mxu0 0
    %767 = vmatprep.mubr.bf16.mxu0 0
    %768 = vmatmul.mubr.bf16.gmra.mxu0 %v307
    %v769 = vpop.f32.mrf.mxu0
    %v770 = vadd.f32 %v378, %v769
    %v771 = vpop.f32.mrf.mxu0
    %v772 = vadd.f32 %v382, %v771
    %v773 = vpop.f32.mrf.mxu0
    %v774 = vadd.f32 %v378, %v773
    %v775 = vpop.f32.mrf.mxu0
    %v776 = vadd.f32 %v382, %v775
    %777 = vmatprep.mubr.bf16.mxu0 0
    %778 = vmatmul.mubr.bf16.gmra.mxu0 %v308
    %v779 = vpop.f32.mrf.mxu0
    %v780 = vadd.f32 %v378, %v779
    %v781 = vpop.f32.mrf.mxu0
    %v782 = vadd.f32 %v382, %v781
    %v783 = vpop.f32.mrf.mxu0
    %v784 = vadd.f32 %v378, %v783
    %v785 = vpop.f32.mrf.mxu0
    %v786 = vadd.f32 %v382, %v785
    %787 = vdwg.mxu0
    %788 = vmatprep.subr.bf16.mxu0 %v666
    %789 = vmatpush1.bf16.msra.mxu0 %v665
    %790 = vmatprep.subr.bf16.mxu0 %v658
    %791 = vmatpush1.bf16.msra.mxu0 %v657
    %792 = vmatprep.subr.bf16.mxu0 %v650
    %793 = vmatpush1.bf16.msra.mxu0 %v649
    %794 = vmatprep.subr.bf16.mxu0 %v642
    %795 = vmatpush1.bf16.msra.mxu0 %v641
    %796 = vmatprep.subr.bf16.mxu0 %v634
    %797 = vmatpush1.bf16.msra.mxu0 %v633
    %798 = vmatprep.subr.bf16.mxu0 %v626
    %799 = vmatpush1.bf16.msra.mxu0 %v625
    %800 = vmatprep.subr.bf16.mxu0 %v618
    %801 = vmatpush1.bf16.msra.mxu0 %v617
    %802 = vmatprep.subr.bf16.mxu0 %v610
    %803 = vmatpush1.bf16.msra.mxu0 %v609
    %804 = vmatprep.subr.bf16.mxu0 0
    %805 = vmatpush2.bf16.msra.mxu0 0
    %806 = vmatprep.subr.bf16.mxu0 0
    %807 = vmatpush2.bf16.msra.mxu0 0
    %808 = vmatprep.subr.bf16.mxu0 0
    %809 = vmatpush2.bf16.msra.mxu0 0
    %810 = vmatprep.subr.bf16.mxu0 0
    %811 = vmatpush2.bf16.msra.mxu0 0
    %812 = vmatprep.subr.bf16.mxu0 0
    %813 = vmatpush2.bf16.msra.mxu0 0
    %814 = vmatprep.subr.bf16.mxu0 0
    %815 = vmatpush2.bf16.msra.mxu0 0
    %816 = vmatprep.subr.bf16.mxu0 0
    %817 = vmatpush2.bf16.msra.mxu0 0
    %818 = vmatprep.subr.bf16.mxu0 0
    %819 = vmatpush2.bf16.msra.mxu0 0
    %820 = vmatprep.mubr.bf16.mxu0 0
    %821 = vmatmul.mubr.bf16.gmra.mxu0 %v307
    %v822 = vpop.f32.mrf.mxu0
    %v823 = vadd.f32 %v386, %v822
    %v824 = vpop.f32.mrf.mxu0
    %v825 = vadd.f32 %v390, %v824
    %v826 = vpop.f32.mrf.mxu0
    %v827 = vadd.f32 %v386, %v826
    %v828 = vpop.f32.mrf.mxu0
    %v829 = vadd.f32 %v390, %v828
    %830 = vmatprep.mubr.bf16.mxu0 0
    %831 = vmatmul.mubr.bf16.gmra.mxu0 %v308
    %v832 = vpop.f32.mrf.mxu0
    %v833 = vadd.f32 %v386, %v832
    %v834 = vpop.f32.mrf.mxu0
    %v835 = vadd.f32 %v390, %v834
    %v836 = vpop.f32.mrf.mxu0
    %v837 = vadd.f32 %v386, %v836
    %v838 = vpop.f32.mrf.mxu0
    %v839 = vadd.f32 %v390, %v838
    %840 = vdwg.mxu0
    %841 = vmatprep.subr.bf16.mxu0 %v668
    %842 = vmatpush1.bf16.msra.mxu0 %v667
    %843 = vmatprep.subr.bf16.mxu0 %v660
    %844 = vmatpush1.bf16.msra.mxu0 %v659
    %845 = vmatprep.subr.bf16.mxu0 %v652
    %846 = vmatpush1.bf16.msra.mxu0 %v651
    %847 = vmatprep.subr.bf16.mxu0 %v644
    %848 = vmatpush1.bf16.msra.mxu0 %v643
    %849 = vmatprep.subr.bf16.mxu0 %v636
    %850 = vmatpush1.bf16.msra.mxu0 %v635
    %851 = vmatprep.subr.bf16.mxu0 %v628
    %852 = vmatpush1.bf16.msra.mxu0 %v627
    %853 = vmatprep.subr.bf16.mxu0 %v620
    %854 = vmatpush1.bf16.msra.mxu0 %v619
    %855 = vmatprep.subr.bf16.mxu0 %v612
    %856 = vmatpush1.bf16.msra.mxu0 %v611
    %857 = vmatprep.subr.bf16.mxu0 0
    %858 = vmatpush2.bf16.msra.mxu0 0
    %859 = vmatprep.subr.bf16.mxu0 0
    %860 = vmatpush2.bf16.msra.mxu0 0
    %861 = vmatprep.subr.bf16.mxu0 0
    %862 = vmatpush2.bf16.msra.mxu0 0
    %863 = vmatprep.subr.bf16.mxu0 0
    %864 = vmatpush2.bf16.msra.mxu0 0
    %865 = vmatprep.subr.bf16.mxu0 0
    %866 = vmatpush2.bf16.msra.mxu0 0
    %867 = vmatprep.subr.bf16.mxu0 0
    %868 = vmatpush2.bf16.msra.mxu0 0
    %869 = vmatprep.subr.bf16.mxu0 0
    %870 = vmatpush2.bf16.msra.mxu0 0
    %871 = vmatprep.subr.bf16.mxu0 0
    %872 = vmatpush2.bf16.msra.mxu0 0
    %873 = vmatprep.mubr.bf16.mxu0 0
    %874 = vmatmul.mubr.bf16.gmra.mxu0 %v307
    %v875 = vpop.f32.mrf.mxu0
    %v876 = vadd.f32 %v394, %v875
    %v877 = vpop.f32.mrf.mxu0
    %v878 = vadd.f32 %v398, %v877
    %v879 = vpop.f32.mrf.mxu0
    %v880 = vadd.f32 %v394, %v879
    %v881 = vpop.f32.mrf.mxu0
    %v882 = vadd.f32 %v398, %v881
    %883 = vmatprep.mubr.bf16.mxu0 0
    %884 = vmatmul.mubr.bf16.gmra.mxu0 %v308
    %v885 = vpop.f32.mrf.mxu0
    %v886 = vadd.f32 %v394, %v885
    %v887 = vpop.f32.mrf.mxu0
    %v888 = vadd.f32 %v398, %v887
    %v889 = vpop.f32.mrf.mxu0
    %v890 = vadd.f32 %v394, %v889
    %v891 = vpop.f32.mrf.mxu0
    %v892 = vadd.f32 %v398, %v891
    %893 = vdwg.mxu0
    %894 = vmatprep.subr.bf16.mxu0 %v670
    %895 = vmatpush1.bf16.msra.mxu0 %v669
    %896 = vmatprep.subr.bf16.mxu0 %v662
    %897 = vmatpush1.bf16.msra.mxu0 %v661
    %898 = vmatprep.subr.bf16.mxu0 %v654
    %899 = vmatpush1.bf16.msra.mxu0 %v653
    %900 = vmatprep.subr.bf16.mxu0 %v646
    %901 = vmatpush1.bf16.msra.mxu0 %v645
    %902 = vmatprep.subr.bf16.mxu0 %v638
    %903 = vmatpush1.bf16.msra.mxu0 %v637
    %904 = vmatprep.subr.bf16.mxu0 %v630
    %905 = vmatpush1.bf16.msra.mxu0 %v629
    %906 = vmatprep.subr.bf16.mxu0 %v622
    %907 = vmatpush1.bf16.msra.mxu0 %v621
    %908 = vmatprep.subr.bf16.mxu0 %v614
    %909 = vmatpush1.bf16.msra.mxu0 %v613
    %910 = vmatprep.subr.bf16.mxu0 0
    %911 = vmatpush2.bf16.msra.mxu0 0
    %912 = vmatprep.subr.bf16.mxu0 0
    %913 = vmatpush2.bf16.msra.mxu0 0
    %914 = vmatprep.subr.bf16.mxu0 0
    %915 = vmatpush2.bf16.msra.mxu0 0
    %916 = vmatprep.subr.bf16.mxu0 0
    %917 = vmatpush2.bf16.msra.mxu0 0
    %918 = vmatprep.subr.bf16.mxu0 0
    %919 = vmatpush2.bf16.msra.mxu0 0
    %920 = vmatprep.subr.bf16.mxu0 0
    %921 = vmatpush2.bf16.msra.mxu0 0
    %922 = vmatprep.subr.bf16.mxu0 0
    %923 = vmatpush2.bf16.msra.mxu0 0
    %924 = vmatprep.subr.bf16.mxu0 0
    %925 = vmatpush2.bf16.msra.mxu0 0
    %926 = vmatprep.mubr.bf16.mxu0 0
    %927 = vmatmul.mubr.bf16.gmra.mxu0 %v307
    %v928 = vpop.f32.mrf.mxu0
    %v929 = vadd.f32 %v402, %v928
    %v930 = vpop.f32.mrf.mxu0
    %v931 = vadd.f32 %v406, %v930
    %v932 = vpop.f32.mrf.mxu0
    %v933 = vadd.f32 %v402, %v932
    %v934 = vpop.f32.mrf.mxu0
    %v935 = vadd.f32 %v406, %v934
    %936 = vmatprep.mubr.bf16.mxu0 0
    %937 = vmatmul.mubr.bf16.gmra.mxu0 %v308
    %v938 = vpop.f32.mrf.mxu0
    %v939 = vadd.f32 %v402, %v938
    %v940 = vpop.f32.mrf.mxu0
    %v941 = vadd.f32 %v406, %v940
    %v942 = vpop.f32.mrf.mxu0
    %v943 = vadd.f32 %v402, %v942
    %v944 = vpop.f32.mrf.mxu0
    %v945 = vadd.f32 %v406, %v944
    %946 = vdwg.mxu0
    %v947 = vmax.f32 %v770, 0.0
    %v948 = vmax.f32 %v772, 0.0
    %v949 = vmax.f32 %v823, 0.0
    %v950 = vmax.f32 %v825, 0.0
    %v951 = vmax.f32 %v876, 0.0
    %v952 = vmax.f32 %v878, 0.0
    %v953 = vmax.f32 %v929, 0.0
    %v954 = vmax.f32 %v931, 0.0
    %v955 = vmax.f32 %v774, 0.0
    %v956 = vmax.f32 %v776, 0.0
    %v957 = vmax.f32 %v827, 0.0
    %v958 = vmax.f32 %v829, 0.0
    %v959 = vmax.f32 %v880, 0.0
    %v960 = vmax.f32 %v882, 0.0
    %v961 = vmax.f32 %v933, 0.0
    %v962 = vmax.f32 %v935, 0.0
    %v963 = vmax.f32 %v780, 0.0
    %v964 = vmax.f32 %v782, 0.0
    %v965 = vmax.f32 %v833, 0.0
    %v966 = vmax.f32 %v835, 0.0
    %v967 = vmax.f32 %v886, 0.0
    %v968 = vmax.f32 %v888, 0.0
    %v969 = vmax.f32 %v939, 0.0
    %v970 = vmax.f32 %v941, 0.0
    %v971 = vmax.f32 %v784, 0.0
    %v972 = vmax.f32 %v786, 0.0
    %v973 = vmax.f32 %v837, 0.0
    %v974 = vmax.f32 %v839, 0.0
    %v975 = vmax.f32 %v890, 0.0
    %v976 = vmax.f32 %v892, 0.0
    %v977 = vmax.f32 %v943, 0.0
    %v978 = vmax.f32 %v945, 0.0
    %v979 = vld [vmem:[#allocation2] sm:$0xff]
    %v980 = vld [vmem:[#allocation2 + $0x8] sm:$0xff]
    %v981 = vmax.f32 %v947, %v955
    %v982 = vrot.slane %v981, 4
    %v983 = vmax.f32 %v981, %v982
    %v984 = vrot.slane %v983, 2
    %v985 = vmax.f32 %v983, %v984
    %v986 = vrot.slane %v985, 1
    %v987 = vmax.f32 %v985, %v986
    %v988 = vmax.f32 %v948, %v956
    %v989 = vrot.slane %v988, 4
    %v990 = vmax.f32 %v988, %v989
    %v991 = vrot.slane %v990, 2
    %v992 = vmax.f32 %v990, %v991
    %v993 = vrot.slane %v992, 1
    %v994 = vmax.f32 %v992, %v993
    %v995 = vmax.f32 %v949, %v957
    %v996 = vrot.slane %v995, 4
    %v997 = vmax.f32 %v995, %v996
    %v998 = vrot.slane %v997, 2
    %v999 = vmax.f32 %v997, %v998
    %v1000 = vrot.slane %v999, 1
    %v1001 = vmax.f32 %v999, %v1000
    %v1002 = vmax.f32 %v950, %v958
    %v1003 = vrot.slane %v1002, 4
    %v1004 = vmax.f32 %v1002, %v1003
    %v1005 = vrot.slane %v1004, 2
    %v1006 = vmax.f32 %v1004, %v1005
    %v1007 = vrot.slane %v1006, 1
    %v1008 = vmax.f32 %v1006, %v1007
    %v1009 = vmax.f32 %v951, %v959
    %v1010 = vrot.slane %v1009, 4
    %v1011 = vmax.f32 %v1009, %v1010
    %v1012 = vrot.slane %v1011, 2
    %v1013 = vmax.f32 %v1011, %v1012
    %v1014 = vrot.slane %v1013, 1
    %v1015 = vmax.f32 %v1013, %v1014
    %v1016 = vmax.f32 %v952, %v960
    %v1017 = vrot.slane %v1016, 4
    %v1018 = vmax.f32 %v1016, %v1017
    %v1019 = vrot.slane %v1018, 2
    %v1020 = vmax.f32 %v1018, %v1019
    %v1021 = vrot.slane %v1020, 1
    %v1022 = vmax.f32 %v1020, %v1021
    %v1023 = vmax.f32 %v953, %v961
    %v1024 = vrot.slane %v1023, 4
    %v1025 = vmax.f32 %v1023, %v1024
    %v1026 = vrot.slane %v1025, 2
    %v1027 = vmax.f32 %v1025, %v1026
    %v1028 = vrot.slane %v1027, 1
    %v1029 = vmax.f32 %v1027, %v1028
    %v1030 = vmax.f32 %v954, %v962
    %v1031 = vrot.slane %v1030, 4
    %v1032 = vmax.f32 %v1030, %v1031
    %v1033 = vrot.slane %v1032, 2
    %v1034 = vmax.f32 %v1032, %v1033
    %v1035 = vrot.slane %v1034, 1
    %v1036 = vmax.f32 %v1034, %v1035
    %v1037 = vmax.f32 %v963, %v971
    %v1038 = vrot.slane %v1037, 4
    %v1039 = vmax.f32 %v1037, %v1038
    %v1040 = vrot.slane %v1039, 2
    %v1041 = vmax.f32 %v1039, %v1040
    %v1042 = vrot.slane %v1041, 1
    %v1043 = vmax.f32 %v1041, %v1042
    %v1044 = vmax.f32 %v964, %v972
    %v1045 = vrot.slane %v1044, 4
    %v1046 = vmax.f32 %v1044, %v1045
    %v1047 = vrot.slane %v1046, 2
    %v1048 = vmax.f32 %v1046, %v1047
    %v1049 = vrot.slane %v1048, 1
    %v1050 = vmax.f32 %v1048, %v1049
    %v1051 = vmax.f32 %v965, %v973
    %v1052 = vrot.slane %v1051, 4
    %v1053 = vmax.f32 %v1051, %v1052
    %v1054 = vrot.slane %v1053, 2
    %v1055 = vmax.f32 %v1053, %v1054
    %v1056 = vrot.slane %v1055, 1
    %v1057 = vmax.f32 %v1055, %v1056
    %v1058 = vmax.f32 %v966, %v974
    %v1059 = vrot.slane %v1058, 4
    %v1060 = vmax.f32 %v1058, %v1059
    %v1061 = vrot.slane %v1060, 2
    %v1062 = vmax.f32 %v1060, %v1061
    %v1063 = vrot.slane %v1062, 1
    %v1064 = vmax.f32 %v1062, %v1063
    %v1065 = vmax.f32 %v967, %v975
    %v1066 = vrot.slane %v1065, 4
    %v1067 = vmax.f32 %v1065, %v1066
    %v1068 = vrot.slane %v1067, 2
    %v1069 = vmax.f32 %v1067, %v1068
    %v1070 = vrot.slane %v1069, 1
    %v1071 = vmax.f32 %v1069, %v1070
    %v1072 = vmax.f32 %v968, %v976
    %v1073 = vrot.slane %v1072, 4
    %v1074 = vmax.f32 %v1072, %v1073
    %v1075 = vrot.slane %v1074, 2
    %v1076 = vmax.f32 %v1074, %v1075
    %v1077 = vrot.slane %v1076, 1
    %v1078 = vmax.f32 %v1076, %v1077
    %v1079 = vmax.f32 %v969, %v977
    %v1080 = vrot.slane %v1079, 4
    %v1081 = vmax.f32 %v1079, %v1080
    %v1082 = vrot.slane %v1081, 2
    %v1083 = vmax.f32 %v1081, %v1082
    %v1084 = vrot.slane %v1083, 1
    %v1085 = vmax.f32 %v1083, %v1084
    %v1086 = vmax.f32 %v970, %v978
    %v1087 = vrot.slane %v1086, 4
    %v1088 = vmax.f32 %v1086, %v1087
    %v1089 = vrot.slane %v1088, 2
    %v1090 = vmax.f32 %v1088, %v1089
    %v1091 = vrot.slane %v1090, 1
    %v1092 = vmax.f32 %v1090, %v1091
    %v1109 = vcombine.low %v987, %v994
    %v1110 = vcombine.low %v1001, %v1008
    %v1112 = vunpack.c.l.s4 1983009808
    %v1113 = vunpack.c.0.s8 %v1112
    %v1114 = vlaneseq
    %v1115 = vshrl.u32 %v1114, 7
    %v1116 = vsub.s32 %v1113, %v1115
    %v1117 = vrot.slane %v1109, %v1116
    %v1119 = vunpack.c.l.s4 1983009808
    %v1120 = vunpack.c.0.s8 %v1119
    %v1121 = vlaneseq
    %v1122 = vshrl.u32 %v1121, 7
    %v1123 = vsub.s32 %v1120, %v1122
    %v1124 = vrot.slane %v1110, %v1123
    %v1125 = vcombine.low %v1117, %v1124
    %v1126 = vcombine.low %v1015, %v1022
    %v1127 = vcombine.low %v1029, %v1036
    %v1129 = vunpack.c.l.s4 1983009808
    %v1130 = vunpack.c.0.s8 %v1129
    %v1131 = vlaneseq
    %v1132 = vshrl.u32 %v1131, 7
    %v1133 = vsub.s32 %v1130, %v1132
    %v1134 = vrot.slane %v1126, %v1133
    %v1136 = vunpack.c.l.s4 1983009808
    %v1137 = vunpack.c.0.s8 %v1136
    %v1138 = vlaneseq
    %v1139 = vshrl.u32 %v1138, 7
    %v1140 = vsub.s32 %v1137, %v1139
    %v1141 = vrot.slane %v1127, %v1140
    %v1142 = vcombine.low %v1134, %v1141
    %v1143 = vcombine.low %v1043, %v1050
    %v1144 = vcombine.low %v1057, %v1064
    %v1146 = vunpack.c.l.s4 1983009808
    %v1147 = vunpack.c.0.s8 %v1146
    %v1148 = vlaneseq
    %v1149 = vshrl.u32 %v1148, 7
    %v1150 = vsub.s32 %v1147, %v1149
    %v1151 = vrot.slane %v1143, %v1150
    %v1153 = vunpack.c.l.s4 1983009808
    %v1154 = vunpack.c.0.s8 %v1153
    %v1155 = vlaneseq
    %v1156 = vshrl.u32 %v1155, 7
    %v1157 = vsub.s32 %v1154, %v1156
    %v1158 = vrot.slane %v1144, %v1157
    %v1159 = vcombine.low %v1151, %v1158
    %v1160 = vcombine.low %v1071, %v1078
    %v1161 = vcombine.low %v1085, %v1092
    %v1163 = vunpack.c.l.s4 1983009808
    %v1164 = vunpack.c.0.s8 %v1163
    %v1165 = vlaneseq
    %v1166 = vshrl.u32 %v1165, 7
    %v1167 = vsub.s32 %v1164, %v1166
    %v1168 = vrot.slane %v1160, %v1167
    %v1170 = vunpack.c.l.s4 1983009808
    %v1171 = vunpack.c.0.s8 %v1170
    %v1172 = vlaneseq
    %v1173 = vshrl.u32 %v1172, 7
    %v1174 = vsub.s32 %v1171, %v1173
    %v1175 = vrot.slane %v1161, %v1174
    %v1176 = vcombine.low %v1168, %v1175
    %vm1177 = vcmask 1044484
    %v1178 = vsel %vm1177, %v1125, %v1125
    %vm1179 = vcmask 1046534
    %v1180 = vsel %vm1179, %v1125, %v1178
    %v1181 = vrot.slane %v1159, 7
    %vm1182 = vcmask 1041409
    %v1183 = vsel %vm1182, %v1181, %v1180
    %vm1184 = vcmask 1043459
    %v1185 = vsel %vm1184, %v1181, %v1183
    %vm1186 = vcmask 1045509
    %v1187 = vsel %vm1186, %v1181, %v1185
    %vm1188 = vcmask 1047559
    %v1189 = vsel %vm1188, %v1181, %v1187
    %v1190 = vsel %vm1177, %v1142, %v1142
    %v1191 = vsel %vm1179, %v1142, %v1190
    %v1192 = vrot.slane %v1176, 7
    %v1193 = vsel %vm1182, %v1192, %v1191
    %v1194 = vsel %vm1184, %v1192, %v1193
    %v1195 = vsel %vm1186, %v1192, %v1194
    %v1196 = vsel %vm1188, %v1192, %v1195
    %v1199 = vmax.f32 %v979, %v1189
    %v1200 = vmax.f32 %v980, %v1196
    %1201 = vst [vmem:[#allocation2] sm:$0xff] %v1199
    %1202 = vst [vmem:[#allocation2 + $0x8] sm:$0xff] %v1200
    // Predicated region
    $region78: #{tpu_custom_call.1} parent=1 // pred_check
      %p1203 = pneg %p114
    $region79: #{tpu_custom_call.1} parent=1 // pred_check_branch
      %1205 = sbr.rel (%p1203) target = $region81
    $region80: #{tpu_custom_call.1} parent=1 // pred_region
      %v1206 = vld [vmem:[#allocation2] sm:$0xff]
      %v1207 = vld [vmem:[#allocation2 + $0x8] sm:$0xff]
      %v1210 = vcombine.high %v1206, %v1206
      %v1212 = vunpack.c.l.s4 1983009808
      %v1213 = vunpack.c.0.s8 %v1212
      %v1214 = vlaneseq
      %v1215 = vshrl.u32 %v1214, 7
      %v1216 = vsub.s32 %v1213, %v1215
      %v1217 = vrot.slane %v1206, %v1216
      %v1219 = vunpack.c.l.s4 1983009808
      %v1220 = vunpack.c.0.s8 %v1219
      %v1221 = vlaneseq
      %v1222 = vshrl.u32 %v1221, 7
      %v1223 = vsub.s32 %v1220, %v1222
      %v1224 = vrot.slane %v1210, %v1223
      %v1225 = vcombine.high %v1217, %v1217
      %v1226 = vcombine.high %v1224, %v1224
      %v1227 = vcombine.high %v1207, %v1207
      %v1229 = vunpack.c.l.s4 1983009808
      %v1230 = vunpack.c.0.s8 %v1229
      %v1231 = vlaneseq
      %v1232 = vshrl.u32 %v1231, 7
      %v1233 = vsub.s32 %v1230, %v1232
      %v1234 = vrot.slane %v1207, %v1233
      %v1236 = vunpack.c.l.s4 1983009808
      %v1237 = vunpack.c.0.s8 %v1236
      %v1238 = vlaneseq
      %v1239 = vshrl.u32 %v1238, 7
      %v1240 = vsub.s32 %v1237, %v1239
      %v1241 = vrot.slane %v1227, %v1240
      %v1242 = vcombine.high %v1234, %v1234
      %v1243 = vcombine.high %v1241, %v1241
      %v1252 = vpack.c.bf16 %v1217, %v1217
      %v1253 = vpack.c.bf16 %v1225, %v1225
      %v1254 = vpack.c.bf16 %v1224, %v1224
      %v1255 = vpack.c.bf16 %v1226, %v1226
      %v1256 = vpack.c.bf16 %v1234, %v1234
      %v1257 = vpack.c.bf16 %v1242, %v1242
      %v1258 = vpack.c.bf16 %v1241, %v1241
      %v1259 = vpack.c.bf16 %v1243, %v1243
      %v1260 = vld [vmem:[#allocation8] sm:$0xff]
      %v1261 = vld [vmem:[#allocation8 + $0x8] sm:$0xff]
      %v1262 = vld [vmem:[#allocation8 + $0x10] sm:$0xff]
      %v1263 = vld [vmem:[#allocation8 + $0x18] sm:$0xff]
      %v1264 = vld [vmem:[#allocation8 + $0x20] sm:$0xff]
      %v1265 = vld [vmem:[#allocation8 + $0x28] sm:$0xff]
      %v1266 = vld [vmem:[#allocation8 + $0x30] sm:$0xff]
      %v1267 = vld [vmem:[#allocation8 + $0x38] sm:$0xff]
      %v1268 = vld [vmem:[#allocation8 + $0x40] sm:$0xff]
      %v1269 = vld [vmem:[#allocation8 + $0x48] sm:$0xff]
      %v1270 = vld [vmem:[#allocation8 + $0x50] sm:$0xff]
      %v1271 = vld [vmem:[#allocation8 + $0x58] sm:$0xff]
      %v1272 = vld [vmem:[#allocation8 + $0x60] sm:$0xff]
      %v1273 = vld [vmem:[#allocation8 + $0x68] sm:$0xff]
      %v1274 = vld [vmem:[#allocation8 + $0x70] sm:$0xff]
      %v1275 = vld [vmem:[#allocation8 + $0x78] sm:$0xff]
      %v1276 = vld [vmem:[#allocation8 + $0x80] sm:$0xff]
      %v1277 = vld [vmem:[#allocation8 + $0x88] sm:$0xff]
      %v1278 = vld [vmem:[#allocation8 + $0x90] sm:$0xff]
      %v1279 = vld [vmem:[#allocation8 + $0x98] sm:$0xff]
      %v1280 = vld [vmem:[#allocation8 + $0xa0] sm:$0xff]
      %v1281 = vld [vmem:[#allocation8 + $0xa8] sm:$0xff]
      %v1282 = vld [vmem:[#allocation8 + $0xb0] sm:$0xff]
      %v1283 = vld [vmem:[#allocation8 + $0xb8] sm:$0xff]
      %v1284 = vld [vmem:[#allocation8 + $0xc0] sm:$0xff]
      %v1285 = vld [vmem:[#allocation8 + $0xc8] sm:$0xff]
      %v1286 = vld [vmem:[#allocation8 + $0xd0] sm:$0xff]
      %v1287 = vld [vmem:[#allocation8 + $0xd8] sm:$0xff]
      %v1288 = vld [vmem:[#allocation8 + $0xe0] sm:$0xff]
      %v1289 = vld [vmem:[#allocation8 + $0xe8] sm:$0xff]
      %v1290 = vld [vmem:[#allocation8 + $0xf0] sm:$0xff]
      %v1291 = vld [vmem:[#allocation8 + $0xf8] sm:$0xff]
      %v1292 = vld [vmem:[#allocation8 + $0x100] sm:$0xff]
      %v1293 = vld [vmem:[#allocation8 + $0x108] sm:$0xff]
      %v1294 = vld [vmem:[#allocation8 + $0x110] sm:$0xff]
      %v1295 = vld [vmem:[#allocation8 + $0x118] sm:$0xff]
      %v1296 = vld [vmem:[#allocation8 + $0x120] sm:$0xff]
      %v1297 = vld [vmem:[#allocation8 + $0x128] sm:$0xff]
      %v1298 = vld [vmem:[#allocation8 + $0x130] sm:$0xff]
      %v1299 = vld [vmem:[#allocation8 + $0x138] sm:$0xff]
      %v1300 = vld [vmem:[#allocation8 + $0x140] sm:$0xff]
      %v1301 = vld [vmem:[#allocation8 + $0x148] sm:$0xff]
      %v1302 = vld [vmem:[#allocation8 + $0x150] sm:$0xff]
      %v1303 = vld [vmem:[#allocation8 + $0x158] sm:$0xff]
      %v1304 = vld [vmem:[#allocation8 + $0x160] sm:$0xff]
      %v1305 = vld [vmem:[#allocation8 + $0x168] sm:$0xff]
      %v1306 = vld [vmem:[#allocation8 + $0x170] sm:$0xff]
      %v1307 = vld [vmem:[#allocation8 + $0x178] sm:$0xff]
      %v1308 = vld [vmem:[#allocation8 + $0x180] sm:$0xff]
      %v1309 = vld [vmem:[#allocation8 + $0x188] sm:$0xff]
      %v1310 = vld [vmem:[#allocation8 + $0x190] sm:$0xff]
      %v1311 = vld [vmem:[#allocation8 + $0x198] sm:$0xff]
      %v1312 = vld [vmem:[#allocation8 + $0x1a0] sm:$0xff]
      %v1313 = vld [vmem:[#allocation8 + $0x1a8] sm:$0xff]
      %v1314 = vld [vmem:[#allocation8 + $0x1b0] sm:$0xff]
      %v1315 = vld [vmem:[#allocation8 + $0x1b8] sm:$0xff]
      %v1316 = vld [vmem:[#allocation8 + $0x1c0] sm:$0xff]
      %v1317 = vld [vmem:[#allocation8 + $0x1c8] sm:$0xff]
      %v1318 = vld [vmem:[#allocation8 + $0x1d0] sm:$0xff]
      %v1319 = vld [vmem:[#allocation8 + $0x1d8] sm:$0xff]
      %v1320 = vld [vmem:[#allocation8 + $0x1e0] sm:$0xff]
      %v1321 = vld [vmem:[#allocation8 + $0x1e8] sm:$0xff]
      %v1322 = vld [vmem:[#allocation8 + $0x1f0] sm:$0xff]
      %v1323 = vld [vmem:[#allocation8 + $0x1f8] sm:$0xff]
      %v1324 = vld [vmem:[#allocation8 + $0x200] sm:$0xff]
      %v1325 = vld [vmem:[#allocation8 + $0x208] sm:$0xff]
      %v1326 = vld [vmem:[#allocation8 + $0x210] sm:$0xff]
      %v1327 = vld [vmem:[#allocation8 + $0x218] sm:$0xff]
      %v1328 = vld [vmem:[#allocation8 + $0x220] sm:$0xff]
      %v1329 = vld [vmem:[#allocation8 + $0x228] sm:$0xff]
      %v1330 = vld [vmem:[#allocation8 + $0x230] sm:$0xff]
      %v1331 = vld [vmem:[#allocation8 + $0x238] sm:$0xff]
      %v1332 = vld [vmem:[#allocation8 + $0x240] sm:$0xff]
      %v1333 = vld [vmem:[#allocation8 + $0x248] sm:$0xff]
      %v1334 = vld [vmem:[#allocation8 + $0x250] sm:$0xff]
      %v1335 = vld [vmem:[#allocation8 + $0x258] sm:$0xff]
      %v1336 = vld [vmem:[#allocation8 + $0x260] sm:$0xff]
      %v1337 = vld [vmem:[#allocation8 + $0x268] sm:$0xff]
      %v1338 = vld [vmem:[#allocation8 + $0x270] sm:$0xff]
      %v1339 = vld [vmem:[#allocation8 + $0x278] sm:$0xff]
      %v1340 = vld [vmem:[#allocation8 + $0x280] sm:$0xff]
      %v1341 = vld [vmem:[#allocation8 + $0x288] sm:$0xff]
      %v1342 = vld [vmem:[#allocation8 + $0x290] sm:$0xff]
      %v1343 = vld [vmem:[#allocation8 + $0x298] sm:$0xff]
      %v1344 = vld [vmem:[#allocation8 + $0x2a0] sm:$0xff]
      %v1345 = vld [vmem:[#allocation8 + $0x2a8] sm:$0xff]
      %v1346 = vld [vmem:[#allocation8 + $0x2b0] sm:$0xff]
      %v1347 = vld [vmem:[#allocation8 + $0x2b8] sm:$0xff]
      %v1348 = vld [vmem:[#allocation8 + $0x2c0] sm:$0xff]
      %v1349 = vld [vmem:[#allocation8 + $0x2c8] sm:$0xff]
      %v1350 = vld [vmem:[#allocation8 + $0x2d0] sm:$0xff]
      %v1351 = vld [vmem:[#allocation8 + $0x2d8] sm:$0xff]
      %v1352 = vld [vmem:[#allocation8 + $0x2e0] sm:$0xff]
      %v1353 = vld [vmem:[#allocation8 + $0x2e8] sm:$0xff]
      %v1354 = vld [vmem:[#allocation8 + $0x2f0] sm:$0xff]
      %v1355 = vld [vmem:[#allocation8 + $0x2f8] sm:$0xff]
      %v1356 = vld [vmem:[#allocation8 + $0x300] sm:$0xff]
      %v1357 = vld [vmem:[#allocation8 + $0x308] sm:$0xff]
      %v1358 = vld [vmem:[#allocation8 + $0x310] sm:$0xff]
      %v1359 = vld [vmem:[#allocation8 + $0x318] sm:$0xff]
      %v1360 = vld [vmem:[#allocation8 + $0x320] sm:$0xff]
      %v1361 = vld [vmem:[#allocation8 + $0x328] sm:$0xff]
      %v1362 = vld [vmem:[#allocation8 + $0x330] sm:$0xff]
      %v1363 = vld [vmem:[#allocation8 + $0x338] sm:$0xff]
      %v1364 = vld [vmem:[#allocation8 + $0x340] sm:$0xff]
      %v1365 = vld [vmem:[#allocation8 + $0x348] sm:$0xff]
      %v1366 = vld [vmem:[#allocation8 + $0x350] sm:$0xff]
      %v1367 = vld [vmem:[#allocation8 + $0x358] sm:$0xff]
      %v1368 = vld [vmem:[#allocation8 + $0x360] sm:$0xff]
      %v1369 = vld [vmem:[#allocation8 + $0x368] sm:$0xff]
      %v1370 = vld [vmem:[#allocation8 + $0x370] sm:$0xff]
      %v1371 = vld [vmem:[#allocation8 + $0x378] sm:$0xff]
      %v1372 = vld [vmem:[#allocation8 + $0x380] sm:$0xff]
      %v1373 = vld [vmem:[#allocation8 + $0x388] sm:$0xff]
      %v1374 = vld [vmem:[#allocation8 + $0x390] sm:$0xff]
      %v1375 = vld [vmem:[#allocation8 + $0x398] sm:$0xff]
      %v1376 = vld [vmem:[#allocation8 + $0x3a0] sm:$0xff]
      %v1377 = vld [vmem:[#allocation8 + $0x3a8] sm:$0xff]
      %v1378 = vld [vmem:[#allocation8 + $0x3b0] sm:$0xff]
      %v1379 = vld [vmem:[#allocation8 + $0x3b8] sm:$0xff]
      %v1380 = vld [vmem:[#allocation8 + $0x3c0] sm:$0xff]
      %v1381 = vld [vmem:[#allocation8 + $0x3c8] sm:$0xff]
      %v1382 = vld [vmem:[#allocation8 + $0x3d0] sm:$0xff]
      %v1383 = vld [vmem:[#allocation8 + $0x3d8] sm:$0xff]
      %v1384 = vld [vmem:[#allocation8 + $0x3e0] sm:$0xff]
      %v1385 = vld [vmem:[#allocation8 + $0x3e8] sm:$0xff]
      %v1386 = vld [vmem:[#allocation8 + $0x3f0] sm:$0xff]
      %v1387 = vld [vmem:[#allocation8 + $0x3f8] sm:$0xff]
      %v1388 = vld [vmem:[#allocation8 + $0x400] sm:$0xff]
      %v1389 = vld [vmem:[#allocation8 + $0x408] sm:$0xff]
      %v1390 = vld [vmem:[#allocation8 + $0x410] sm:$0xff]
      %v1391 = vld [vmem:[#allocation8 + $0x418] sm:$0xff]
      %v1392 = vld [vmem:[#allocation8 + $0x420] sm:$0xff]
      %v1393 = vld [vmem:[#allocation8 + $0x428] sm:$0xff]
      %v1394 = vld [vmem:[#allocation8 + $0x430] sm:$0xff]
      %v1395 = vld [vmem:[#allocation8 + $0x438] sm:$0xff]
      %v1396 = vld [vmem:[#allocation8 + $0x440] sm:$0xff]
      %v1397 = vld [vmem:[#allocation8 + $0x448] sm:$0xff]
      %v1398 = vld [vmem:[#allocation8 + $0x450] sm:$0xff]
      %v1399 = vld [vmem:[#allocation8 + $0x458] sm:$0xff]
      %v1400 = vld [vmem:[#allocation8 + $0x460] sm:$0xff]
      %v1401 = vld [vmem:[#allocation8 + $0x468] sm:$0xff]
      %v1402 = vld [vmem:[#allocation8 + $0x470] sm:$0xff]
      %v1403 = vld [vmem:[#allocation8 + $0x478] sm:$0xff]
      %v1404 = vld [vmem:[#allocation8 + $0x480] sm:$0xff]
      %v1405 = vld [vmem:[#allocation8 + $0x488] sm:$0xff]
      %v1406 = vld [vmem:[#allocation8 + $0x490] sm:$0xff]
      %v1407 = vld [vmem:[#allocation8 + $0x498] sm:$0xff]
      %v1408 = vld [vmem:[#allocation8 + $0x4a0] sm:$0xff]
      %v1409 = vld [vmem:[#allocation8 + $0x4a8] sm:$0xff]
      %v1410 = vld [vmem:[#allocation8 + $0x4b0] sm:$0xff]
      %v1411 = vld [vmem:[#allocation8 + $0x4b8] sm:$0xff]
      %v1412 = vld [vmem:[#allocation8 + $0x4c0] sm:$0xff]
      %v1413 = vld [vmem:[#allocation8 + $0x4c8] sm:$0xff]
      %v1414 = vld [vmem:[#allocation8 + $0x4d0] sm:$0xff]
      %v1415 = vld [vmem:[#allocation8 + $0x4d8] sm:$0xff]
      %v1416 = vld [vmem:[#allocation8 + $0x4e0] sm:$0xff]
      %v1417 = vld [vmem:[#allocation8 + $0x4e8] sm:$0xff]
      %v1418 = vld [vmem:[#allocation8 + $0x4f0] sm:$0xff]
      %v1419 = vld [vmem:[#allocation8 + $0x4f8] sm:$0xff]
      %v1420 = vld [vmem:[#allocation8 + $0x500] sm:$0xff]
      %v1421 = vld [vmem:[#allocation8 + $0x508] sm:$0xff]
      %v1422 = vld [vmem:[#allocation8 + $0x510] sm:$0xff]
      %v1423 = vld [vmem:[#allocation8 + $0x518] sm:$0xff]
      %v1424 = vld [vmem:[#allocation8 + $0x520] sm:$0xff]
      %v1425 = vld [vmem:[#allocation8 + $0x528] sm:$0xff]
      %v1426 = vld [vmem:[#allocation8 + $0x530] sm:$0xff]
      %v1427 = vld [vmem:[#allocation8 + $0x538] sm:$0xff]
      %v1428 = vld [vmem:[#allocation8 + $0x540] sm:$0xff]
      %v1429 = vld [vmem:[#allocation8 + $0x548] sm:$0xff]
      %v1430 = vld [vmem:[#allocation8 + $0x550] sm:$0xff]
      %v1431 = vld [vmem:[#allocation8 + $0x558] sm:$0xff]
      %v1432 = vld [vmem:[#allocation8 + $0x560] sm:$0xff]
      %v1433 = vld [vmem:[#allocation8 + $0x568] sm:$0xff]
      %v1434 = vld [vmem:[#allocation8 + $0x570] sm:$0xff]
      %v1435 = vld [vmem:[#allocation8 + $0x578] sm:$0xff]
      %v1436 = vld [vmem:[#allocation8 + $0x580] sm:$0xff]
      %v1437 = vld [vmem:[#allocation8 + $0x588] sm:$0xff]
      %v1438 = vld [vmem:[#allocation8 + $0x590] sm:$0xff]
      %v1439 = vld [vmem:[#allocation8 + $0x598] sm:$0xff]
      %v1440 = vld [vmem:[#allocation8 + $0x5a0] sm:$0xff]
      %v1441 = vld [vmem:[#allocation8 + $0x5a8] sm:$0xff]
      %v1442 = vld [vmem:[#allocation8 + $0x5b0] sm:$0xff]
      %v1443 = vld [vmem:[#allocation8 + $0x5b8] sm:$0xff]
      %v1444 = vld [vmem:[#allocation8 + $0x5c0] sm:$0xff]
      %v1445 = vld [vmem:[#allocation8 + $0x5c8] sm:$0xff]
      %v1446 = vld [vmem:[#allocation8 + $0x5d0] sm:$0xff]
      %v1447 = vld [vmem:[#allocation8 + $0x5d8] sm:$0xff]
      %v1448 = vld [vmem:[#allocation8 + $0x5e0] sm:$0xff]
      %v1449 = vld [vmem:[#allocation8 + $0x5e8] sm:$0xff]
      %v1450 = vld [vmem:[#allocation8 + $0x5f0] sm:$0xff]
      %v1451 = vld [vmem:[#allocation8 + $0x5f8] sm:$0xff]
      %v1452 = vld [vmem:[#allocation8 + $0x600] sm:$0xff]
      %v1453 = vld [vmem:[#allocation8 + $0x608] sm:$0xff]
      %v1454 = vld [vmem:[#allocation8 + $0x610] sm:$0xff]
      %v1455 = vld [vmem:[#allocation8 + $0x618] sm:$0xff]
      %v1456 = vld [vmem:[#allocation8 + $0x620] sm:$0xff]
      %v1457 = vld [vmem:[#allocation8 + $0x628] sm:$0xff]
      %v1458 = vld [vmem:[#allocation8 + $0x630] sm:$0xff]
      %v1459 = vld [vmem:[#allocation8 + $0x638] sm:$0xff]
      %v1460 = vld [vmem:[#allocation8 + $0x640] sm:$0xff]
      %v1461 = vld [vmem:[#allocation8 + $0x648] sm:$0xff]
      %v1462 = vld [vmem:[#allocation8 + $0x650] sm:$0xff]
      %v1463 = vld [vmem:[#allocation8 + $0x658] sm:$0xff]
      %v1464 = vld [vmem:[#allocation8 + $0x660] sm:$0xff]
      %v1465 = vld [vmem:[#allocation8 + $0x668] sm:$0xff]
      %v1466 = vld [vmem:[#allocation8 + $0x670] sm:$0xff]
      %v1467 = vld [vmem:[#allocation8 + $0x678] sm:$0xff]
      %v1468 = vld [vmem:[#allocation8 + $0x680] sm:$0xff]
      %v1469 = vld [vmem:[#allocation8 + $0x688] sm:$0xff]
      %v1470 = vld [vmem:[#allocation8 + $0x690] sm:$0xff]
      %v1471 = vld [vmem:[#allocation8 + $0x698] sm:$0xff]
      %v1472 = vld [vmem:[#allocation8 + $0x6a0] sm:$0xff]
      %v1473 = vld [vmem:[#allocation8 + $0x6a8] sm:$0xff]
      %v1474 = vld [vmem:[#allocation8 + $0x6b0] sm:$0xff]
      %v1475 = vld [vmem:[#allocation8 + $0x6b8] sm:$0xff]
      %v1476 = vld [vmem:[#allocation8 + $0x6c0] sm:$0xff]
      %v1477 = vld [vmem:[#allocation8 + $0x6c8] sm:$0xff]
      %v1478 = vld [vmem:[#allocation8 + $0x6d0] sm:$0xff]
      %v1479 = vld [vmem:[#allocation8 + $0x6d8] sm:$0xff]
      %v1480 = vld [vmem:[#allocation8 + $0x6e0] sm:$0xff]
      %v1481 = vld [vmem:[#allocation8 + $0x6e8] sm:$0xff]
      %v1482 = vld [vmem:[#allocation8 + $0x6f0] sm:$0xff]
      %v1483 = vld [vmem:[#allocation8 + $0x6f8] sm:$0xff]
      %v1484 = vld [vmem:[#allocation8 + $0x700] sm:$0xff]
      %v1485 = vld [vmem:[#allocation8 + $0x708] sm:$0xff]
      %v1486 = vld [vmem:[#allocation8 + $0x710] sm:$0xff]
      %v1487 = vld [vmem:[#allocation8 + $0x718] sm:$0xff]
      %v1488 = vld [vmem:[#allocation8 + $0x720] sm:$0xff]
      %v1489 = vld [vmem:[#allocation8 + $0x728] sm:$0xff]
      %v1490 = vld [vmem:[#allocation8 + $0x730] sm:$0xff]
      %v1491 = vld [vmem:[#allocation8 + $0x738] sm:$0xff]
      %v1492 = vld [vmem:[#allocation8 + $0x740] sm:$0xff]
      %v1493 = vld [vmem:[#allocation8 + $0x748] sm:$0xff]
      %v1494 = vld [vmem:[#allocation8 + $0x750] sm:$0xff]
      %v1495 = vld [vmem:[#allocation8 + $0x758] sm:$0xff]
      %v1496 = vld [vmem:[#allocation8 + $0x760] sm:$0xff]
      %v1497 = vld [vmem:[#allocation8 + $0x768] sm:$0xff]
      %v1498 = vld [vmem:[#allocation8 + $0x770] sm:$0xff]
      %v1499 = vld [vmem:[#allocation8 + $0x778] sm:$0xff]
      %v1500 = vld [vmem:[#allocation8 + $0x780] sm:$0xff]
      %v1501 = vld [vmem:[#allocation8 + $0x788] sm:$0xff]
      %v1502 = vld [vmem:[#allocation8 + $0x790] sm:$0xff]
      %v1503 = vld [vmem:[#allocation8 + $0x798] sm:$0xff]
      %v1504 = vld [vmem:[#allocation8 + $0x7a0] sm:$0xff]
      %v1505 = vld [vmem:[#allocation8 + $0x7a8] sm:$0xff]
      %v1506 = vld [vmem:[#allocation8 + $0x7b0] sm:$0xff]
      %v1507 = vld [vmem:[#allocation8 + $0x7b8] sm:$0xff]
      %v1508 = vld [vmem:[#allocation8 + $0x7c0] sm:$0xff]
      %v1509 = vld [vmem:[#allocation8 + $0x7c8] sm:$0xff]
      %v1510 = vld [vmem:[#allocation8 + $0x7d0] sm:$0xff]
      %v1511 = vld [vmem:[#allocation8 + $0x7d8] sm:$0xff]
      %v1512 = vld [vmem:[#allocation8 + $0x7e0] sm:$0xff]
      %v1513 = vld [vmem:[#allocation8 + $0x7e8] sm:$0xff]
      %v1514 = vld [vmem:[#allocation8 + $0x7f0] sm:$0xff]
      %v1515 = vld [vmem:[#allocation8 + $0x7f8] sm:$0xff]
      %v1516 = vld [vmem:[%s8] sm:$0xf]
      %v1518 = vlaneseq
      %v1519 = vshrl.u32 %v1518, 7
      %v1520 = vsub.s32 0, %v1519
      %v1521 = vrot.slane %v1516, %v1520
      %v1522 = vlaneseq
      %v1523 = vshrl.u32 %v1522, 7
      %v1524 = vsub.s32 1, %v1523
      %v1525 = vrot.slane %v1516, %v1524
      %v1526 = vlaneseq
      %v1527 = vshrl.u32 %v1526, 7
      %v1528 = vsub.s32 2, %v1527
      %v1529 = vrot.slane %v1516, %v1528
      %v1530 = vlaneseq
      %v1531 = vshrl.u32 %v1530, 7
      %v1532 = vsub.s32 3, %v1531
      %v1533 = vrot.slane %v1516, %v1532
      %v1794 = vunpack.c.l.b16 %v1260
      %v1795 = vunpack.c.h.b16 %v1260
      %v1796 = vunpack.c.l.b16 %v1261
      %v1797 = vunpack.c.h.b16 %v1261
      %v1798 = vunpack.c.l.b16 %v1262
      %v1799 = vunpack.c.h.b16 %v1262
      %v1800 = vunpack.c.l.b16 %v1263
      %v1801 = vunpack.c.h.b16 %v1263
      %v1802 = vunpack.c.l.b16 %v1264
      %v1803 = vunpack.c.h.b16 %v1264
      %v1804 = vunpack.c.l.b16 %v1265
      %v1805 = vunpack.c.h.b16 %v1265
      %v1806 = vunpack.c.l.b16 %v1266
      %v1807 = vunpack.c.h.b16 %v1266
      %v1808 = vunpack.c.l.b16 %v1267
      %v1809 = vunpack.c.h.b16 %v1267
      %v1810 = vunpack.c.l.b16 %v1268
      %v1811 = vunpack.c.h.b16 %v1268
      %v1812 = vunpack.c.l.b16 %v1269
      %v1813 = vunpack.c.h.b16 %v1269
      %v1814 = vunpack.c.l.b16 %v1270
      %v1815 = vunpack.c.h.b16 %v1270
      %v1816 = vunpack.c.l.b16 %v1271
      %v1817 = vunpack.c.h.b16 %v1271
      %v1818 = vunpack.c.l.b16 %v1272
      %v1819 = vunpack.c.h.b16 %v1272
      %v1820 = vunpack.c.l.b16 %v1273
      %v1821 = vunpack.c.h.b16 %v1273
      %v1822 = vunpack.c.l.b16 %v1274
      %v1823 = vunpack.c.h.b16 %v1274
      %v1824 = vunpack.c.l.b16 %v1275
      %v1825 = vunpack.c.h.b16 %v1275
      %v1826 = vunpack.c.l.b16 %v1276
      %v1827 = vunpack.c.h.b16 %v1276
      %v1828 = vunpack.c.l.b16 %v1277
      %v1829 = vunpack.c.h.b16 %v1277
      %v1830 = vunpack.c.l.b16 %v1278
      %v1831 = vunpack.c.h.b16 %v1278
      %v1832 = vunpack.c.l.b16 %v1279
      %v1833 = vunpack.c.h.b16 %v1279
      %v1834 = vunpack.c.l.b16 %v1280
      %v1835 = vunpack.c.h.b16 %v1280
      %v1836 = vunpack.c.l.b16 %v1281
      %v1837 = vunpack.c.h.b16 %v1281
      %v1838 = vunpack.c.l.b16 %v1282
      %v1839 = vunpack.c.h.b16 %v1282
      %v1840 = vunpack.c.l.b16 %v1283
      %v1841 = vunpack.c.h.b16 %v1283
      %v1842 = vunpack.c.l.b16 %v1284
      %v1843 = vunpack.c.h.b16 %v1284
      %v1844 = vunpack.c.l.b16 %v1285
      %v1845 = vunpack.c.h.b16 %v1285
      %v1846 = vunpack.c.l.b16 %v1286
      %v1847 = vunpack.c.h.b16 %v1286
      %v1848 = vunpack.c.l.b16 %v1287
      %v1849 = vunpack.c.h.b16 %v1287
      %v1850 = vunpack.c.l.b16 %v1288
      %v1851 = vunpack.c.h.b16 %v1288
      %v1852 = vunpack.c.l.b16 %v1289
      %v1853 = vunpack.c.h.b16 %v1289
      %v1854 = vunpack.c.l.b16 %v1290
      %v1855 = vunpack.c.h.b16 %v1290
      %v1856 = vunpack.c.l.b16 %v1291
      %v1857 = vunpack.c.h.b16 %v1291
      %v1858 = vunpack.c.l.b16 %v1292
      %v1859 = vunpack.c.h.b16 %v1292
      %v1860 = vunpack.c.l.b16 %v1293
      %v1861 = vunpack.c.h.b16 %v1293
      %v1862 = vunpack.c.l.b16 %v1294
      %v1863 = vunpack.c.h.b16 %v1294
      %v1864 = vunpack.c.l.b16 %v1295
      %v1865 = vunpack.c.h.b16 %v1295
      %v1866 = vunpack.c.l.b16 %v1296
      %v1867 = vunpack.c.h.b16 %v1296
      %v1868 = vunpack.c.l.b16 %v1297
      %v1869 = vunpack.c.h.b16 %v1297
      %v1870 = vunpack.c.l.b16 %v1298
      %v1871 = vunpack.c.h.b16 %v1298
      %v1872 = vunpack.c.l.b16 %v1299
      %v1873 = vunpack.c.h.b16 %v1299
      %v1874 = vunpack.c.l.b16 %v1300
      %v1875 = vunpack.c.h.b16 %v1300
      %v1876 = vunpack.c.l.b16 %v1301
      %v1877 = vunpack.c.h.b16 %v1301
      %v1878 = vunpack.c.l.b16 %v1302
      %v1879 = vunpack.c.h.b16 %v1302
      %v1880 = vunpack.c.l.b16 %v1303
      %v1881 = vunpack.c.h.b16 %v1303
      %v1882 = vunpack.c.l.b16 %v1304
      %v1883 = vunpack.c.h.b16 %v1304
      %v1884 = vunpack.c.l.b16 %v1305
      %v1885 = vunpack.c.h.b16 %v1305
      %v1886 = vunpack.c.l.b16 %v1306
      %v1887 = vunpack.c.h.b16 %v1306
      %v1888 = vunpack.c.l.b16 %v1307
      %v1889 = vunpack.c.h.b16 %v1307
      %v1890 = vunpack.c.l.b16 %v1308
      %v1891 = vunpack.c.h.b16 %v1308
      %v1892 = vunpack.c.l.b16 %v1309
      %v1893 = vunpack.c.h.b16 %v1309
      %v1894 = vunpack.c.l.b16 %v1310
      %v1895 = vunpack.c.h.b16 %v1310
      %v1896 = vunpack.c.l.b16 %v1311
      %v1897 = vunpack.c.h.b16 %v1311
      %v1898 = vunpack.c.l.b16 %v1312
      %v1899 = vunpack.c.h.b16 %v1312
      %v1900 = vunpack.c.l.b16 %v1313
      %v1901 = vunpack.c.h.b16 %v1313
      %v1902 = vunpack.c.l.b16 %v1314
      %v1903 = vunpack.c.h.b16 %v1314
      %v1904 = vunpack.c.l.b16 %v1315
      %v1905 = vunpack.c.h.b16 %v1315
      %v1906 = vunpack.c.l.b16 %v1316
      %v1907 = vunpack.c.h.b16 %v1316
      %v1908 = vunpack.c.l.b16 %v1317
      %v1909 = vunpack.c.h.b16 %v1317
      %v1910 = vunpack.c.l.b16 %v1318
      %v1911 = vunpack.c.h.b16 %v1318
      %v1912 = vunpack.c.l.b16 %v1319
      %v1913 = vunpack.c.h.b16 %v1319
      %v1914 = vunpack.c.l.b16 %v1320
      %v1915 = vunpack.c.h.b16 %v1320
      %v1916 = vunpack.c.l.b16 %v1321
      %v1917 = vunpack.c.h.b16 %v1321
      %v1918 = vunpack.c.l.b16 %v1322
      %v1919 = vunpack.c.h.b16 %v1322
      %v1920 = vunpack.c.l.b16 %v1323
      %v1921 = vunpack.c.h.b16 %v1323
      %v1922 = vunpack.c.l.b16 %v1324
      %v1923 = vunpack.c.h.b16 %v1324
      %v1924 = vunpack.c.l.b16 %v1325
      %v1925 = vunpack.c.h.b16 %v1325
      %v1926 = vunpack.c.l.b16 %v1326
      %v1927 = vunpack.c.h.b16 %v1326
      %v1928 = vunpack.c.l.b16 %v1327
      %v1929 = vunpack.c.h.b16 %v1327
      %v1930 = vunpack.c.l.b16 %v1328
      %v1931 = vunpack.c.h.b16 %v1328
      %v1932 = vunpack.c.l.b16 %v1329
      %v1933 = vunpack.c.h.b16 %v1329
      %v1934 = vunpack.c.l.b16 %v1330
      %v1935 = vunpack.c.h.b16 %v1330
      %v1936 = vunpack.c.l.b16 %v1331
      %v1937 = vunpack.c.h.b16 %v1331
      %v1938 = vunpack.c.l.b16 %v1332
      %v1939 = vunpack.c.h.b16 %v1332
      %v1940 = vunpack.c.l.b16 %v1333
      %v1941 = vunpack.c.h.b16 %v1333
      %v1942 = vunpack.c.l.b16 %v1334
      %v1943 = vunpack.c.h.b16 %v1334
      %v1944 = vunpack.c.l.b16 %v1335
      %v1945 = vunpack.c.h.b16 %v1335
      %v1946 = vunpack.c.l.b16 %v1336
      %v1947 = vunpack.c.h.b16 %v1336
      %v1948 = vunpack.c.l.b16 %v1337
      %v1949 = vunpack.c.h.b16 %v1337
      %v1950 = vunpack.c.l.b16 %v1338
      %v1951 = vunpack.c.h.b16 %v1338
      %v1952 = vunpack.c.l.b16 %v1339
      %v1953 = vunpack.c.h.b16 %v1339
      %v1954 = vunpack.c.l.b16 %v1340
      %v1955 = vunpack.c.h.b16 %v1340
      %v1956 = vunpack.c.l.b16 %v1341
      %v1957 = vunpack.c.h.b16 %v1341
      %v1958 = vunpack.c.l.b16 %v1342
      %v1959 = vunpack.c.h.b16 %v1342
      %v1960 = vunpack.c.l.b16 %v1343
      %v1961 = vunpack.c.h.b16 %v1343
      %v1962 = vunpack.c.l.b16 %v1344
      %v1963 = vunpack.c.h.b16 %v1344
      %v1964 = vunpack.c.l.b16 %v1345
      %v1965 = vunpack.c.h.b16 %v1345
      %v1966 = vunpack.c.l.b16 %v1346
      %v1967 = vunpack.c.h.b16 %v1346
      %v1968 = vunpack.c.l.b16 %v1347
      %v1969 = vunpack.c.h.b16 %v1347
      %v1970 = vunpack.c.l.b16 %v1348
      %v1971 = vunpack.c.h.b16 %v1348
      %v1972 = vunpack.c.l.b16 %v1349
      %v1973 = vunpack.c.h.b16 %v1349
      %v1974 = vunpack.c.l.b16 %v1350
      %v1975 = vunpack.c.h.b16 %v1350
      %v1976 = vunpack.c.l.b16 %v1351
      %v1977 = vunpack.c.h.b16 %v1351
      %v1978 = vunpack.c.l.b16 %v1352
      %v1979 = vunpack.c.h.b16 %v1352
      %v1980 = vunpack.c.l.b16 %v1353
      %v1981 = vunpack.c.h.b16 %v1353
      %v1982 = vunpack.c.l.b16 %v1354
      %v1983 = vunpack.c.h.b16 %v1354
      %v1984 = vunpack.c.l.b16 %v1355
      %v1985 = vunpack.c.h.b16 %v1355
      %v1986 = vunpack.c.l.b16 %v1356
      %v1987 = vunpack.c.h.b16 %v1356
      %v1988 = vunpack.c.l.b16 %v1357
      %v1989 = vunpack.c.h.b16 %v1357
      %v1990 = vunpack.c.l.b16 %v1358
      %v1991 = vunpack.c.h.b16 %v1358
      %v1992 = vunpack.c.l.b16 %v1359
      %v1993 = vunpack.c.h.b16 %v1359
      %v1994 = vunpack.c.l.b16 %v1360
      %v1995 = vunpack.c.h.b16 %v1360
      %v1996 = vunpack.c.l.b16 %v1361
      %v1997 = vunpack.c.h.b16 %v1361
      %v1998 = vunpack.c.l.b16 %v1362
      %v1999 = vunpack.c.h.b16 %v1362
      %v2000 = vunpack.c.l.b16 %v1363
      %v2001 = vunpack.c.h.b16 %v1363
      %v2002 = vunpack.c.l.b16 %v1364
      %v2003 = vunpack.c.h.b16 %v1364
      %v2004 = vunpack.c.l.b16 %v1365
      %v2005 = vunpack.c.h.b16 %v1365
      %v2006 = vunpack.c.l.b16 %v1366
      %v2007 = vunpack.c.h.b16 %v1366
      %v2008 = vunpack.c.l.b16 %v1367
      %v2009 = vunpack.c.h.b16 %v1367
      %v2010 = vunpack.c.l.b16 %v1368
      %v2011 = vunpack.c.h.b16 %v1368
      %v2012 = vunpack.c.l.b16 %v1369
      %v2013 = vunpack.c.h.b16 %v1369
      %v2014 = vunpack.c.l.b16 %v1370
      %v2015 = vunpack.c.h.b16 %v1370
      %v2016 = vunpack.c.l.b16 %v1371
      %v2017 = vunpack.c.h.b16 %v1371
      %v2018 = vunpack.c.l.b16 %v1372
      %v2019 = vunpack.c.h.b16 %v1372
      %v2020 = vunpack.c.l.b16 %v1373
      %v2021 = vunpack.c.h.b16 %v1373
      %v2022 = vunpack.c.l.b16 %v1374
      %v2023 = vunpack.c.h.b16 %v1374
      %v2024 = vunpack.c.l.b16 %v1375
      %v2025 = vunpack.c.h.b16 %v1375
      %v2026 = vunpack.c.l.b16 %v1376
      %v2027 = vunpack.c.h.b16 %v1376
      %v2028 = vunpack.c.l.b16 %v1377
      %v2029 = vunpack.c.h.b16 %v1377
      %v2030 = vunpack.c.l.b16 %v1378
      %v2031 = vunpack.c.h.b16 %v1378
      %v2032 = vunpack.c.l.b16 %v1379
      %v2033 = vunpack.c.h.b16 %v1379
      %v2034 = vunpack.c.l.b16 %v1380
      %v2035 = vunpack.c.h.b16 %v1380
      %v2036 = vunpack.c.l.b16 %v1381
      %v2037 = vunpack.c.h.b16 %v1381
      %v2038 = vunpack.c.l.b16 %v1382
      %v2039 = vunpack.c.h.b16 %v1382
      %v2040 = vunpack.c.l.b16 %v1383
      %v2041 = vunpack.c.h.b16 %v1383
      %v2042 = vunpack.c.l.b16 %v1384
      %v2043 = vunpack.c.h.b16 %v1384
      %v2044 = vunpack.c.l.b16 %v1385
      %v2045 = vunpack.c.h.b16 %v1385
      %v2046 = vunpack.c.l.b16 %v1386
      %v2047 = vunpack.c.h.b16 %v1386
      %v2048 = vunpack.c.l.b16 %v1387
      %v2049 = vunpack.c.h.b16 %v1387
      %v2050 = vunpack.c.l.b16 %v1388
      %v2051 = vunpack.c.h.b16 %v1388
      %v2052 = vunpack.c.l.b16 %v1389
      %v2053 = vunpack.c.h.b16 %v1389
      %v2054 = vunpack.c.l.b16 %v1390
      %v2055 = vunpack.c.h.b16 %v1390
      %v2056 = vunpack.c.l.b16 %v1391
      %v2057 = vunpack.c.h.b16 %v1391
      %v2058 = vunpack.c.l.b16 %v1392
      %v2059 = vunpack.c.h.b16 %v1392
      %v2060 = vunpack.c.l.b16 %v1393
      %v2061 = vunpack.c.h.b16 %v1393
      %v2062 = vunpack.c.l.b16 %v1394
      %v2063 = vunpack.c.h.b16 %v1394
      %v2064 = vunpack.c.l.b16 %v1395
      %v2065 = vunpack.c.h.b16 %v1395
      %v2066 = vunpack.c.l.b16 %v1396
      %v2067 = vunpack.c.h.b16 %v1396
      %v2068 = vunpack.c.l.b16 %v1397
      %v2069 = vunpack.c.h.b16 %v1397
      %v2070 = vunpack.c.l.b16 %v1398
      %v2071 = vunpack.c.h.b16 %v1398
      %v2072 = vunpack.c.l.b16 %v1399
      %v2073 = vunpack.c.h.b16 %v1399
      %v2074 = vunpack.c.l.b16 %v1400
      %v2075 = vunpack.c.h.b16 %v1400
      %v2076 = vunpack.c.l.b16 %v1401
      %v2077 = vunpack.c.h.b16 %v1401
      %v2078 = vunpack.c.l.b16 %v1402
      %v2079 = vunpack.c.h.b16 %v1402
      %v2080 = vunpack.c.l.b16 %v1403
      %v2081 = vunpack.c.h.b16 %v1403
      %v2082 = vunpack.c.l.b16 %v1404
      %v2083 = vunpack.c.h.b16 %v1404
      %v2084 = vunpack.c.l.b16 %v1405
      %v2085 = vunpack.c.h.b16 %v1405
      %v2086 = vunpack.c.l.b16 %v1406
      %v2087 = vunpack.c.h.b16 %v1406
      %v2088 = vunpack.c.l.b16 %v1407
      %v2089 = vunpack.c.h.b16 %v1407
      %v2090 = vunpack.c.l.b16 %v1408
      %v2091 = vunpack.c.h.b16 %v1408
      %v2092 = vunpack.c.l.b16 %v1409
      %v2093 = vunpack.c.h.b16 %v1409
      %v2094 = vunpack.c.l.b16 %v1410
      %v2095 = vunpack.c.h.b16 %v1410
      %v2096 = vunpack.c.l.b16 %v1411
      %v2097 = vunpack.c.h.b16 %v1411
      %v2098 = vunpack.c.l.b16 %v1412
      %v2099 = vunpack.c.h.b16 %v1412
      %v2100 = vunpack.c.l.b16 %v1413
      %v2101 = vunpack.c.h.b16 %v1413
      %v2102 = vunpack.c.l.b16 %v1414
      %v2103 = vunpack.c.h.b16 %v1414
      %v2104 = vunpack.c.l.b16 %v1415
      %v2105 = vunpack.c.h.b16 %v1415
      %v2106 = vunpack.c.l.b16 %v1416
      %v2107 = vunpack.c.h.b16 %v1416
      %v2108 = vunpack.c.l.b16 %v1417
      %v2109 = vunpack.c.h.b16 %v1417
      %v2110 = vunpack.c.l.b16 %v1418
      %v2111 = vunpack.c.h.b16 %v1418
      %v2112 = vunpack.c.l.b16 %v1419
      %v2113 = vunpack.c.h.b16 %v1419
      %v2114 = vunpack.c.l.b16 %v1420
      %v2115 = vunpack.c.h.b16 %v1420
      %v2116 = vunpack.c.l.b16 %v1421
      %v2117 = vunpack.c.h.b16 %v1421
      %v2118 = vunpack.c.l.b16 %v1422
      %v2119 = vunpack.c.h.b16 %v1422
      %v2120 = vunpack.c.l.b16 %v1423
      %v2121 = vunpack.c.h.b16 %v1423
      %v2122 = vunpack.c.l.b16 %v1424
      %v2123 = vunpack.c.h.b16 %v1424
      %v2124 = vunpack.c.l.b16 %v1425
      %v2125 = vunpack.c.h.b16 %v1425
      %v2126 = vunpack.c.l.b16 %v1426
      %v2127 = vunpack.c.h.b16 %v1426
      %v2128 = vunpack.c.l.b16 %v1427
      %v2129 = vunpack.c.h.b16 %v1427
      %v2130 = vunpack.c.l.b16 %v1428
      %v2131 = vunpack.c.h.b16 %v1428
      %v2132 = vunpack.c.l.b16 %v1429
      %v2133 = vunpack.c.h.b16 %v1429
      %v2134 = vunpack.c.l.b16 %v1430
      %v2135 = vunpack.c.h.b16 %v1430
      %v2136 = vunpack.c.l.b16 %v1431
      %v2137 = vunpack.c.h.b16 %v1431
      %v2138 = vunpack.c.l.b16 %v1432
      %v2139 = vunpack.c.h.b16 %v1432
      %v2140 = vunpack.c.l.b16 %v1433
      %v2141 = vunpack.c.h.b16 %v1433
      %v2142 = vunpack.c.l.b16 %v1434
      %v2143 = vunpack.c.h.b16 %v1434
      %v2144 = vunpack.c.l.b16 %v1435
      %v2145 = vunpack.c.h.b16 %v1435
      %v2146 = vunpack.c.l.b16 %v1436
      %v2147 = vunpack.c.h.b16 %v1436
      %v2148 = vunpack.c.l.b16 %v1437
      %v2149 = vunpack.c.h.b16 %v1437
      %v2150 = vunpack.c.l.b16 %v1438
      %v2151 = vunpack.c.h.b16 %v1438
      %v2152 = vunpack.c.l.b16 %v1439
      %v2153 = vunpack.c.h.b16 %v1439
      %v2154 = vunpack.c.l.b16 %v1440
      %v2155 = vunpack.c.h.b16 %v1440
      %v2156 = vunpack.c.l.b16 %v1441
      %v2157 = vunpack.c.h.b16 %v1441
      %v2158 = vunpack.c.l.b16 %v1442
      %v2159 = vunpack.c.h.b16 %v1442
      %v2160 = vunpack.c.l.b16 %v1443
      %v2161 = vunpack.c.h.b16 %v1443
      %v2162 = vunpack.c.l.b16 %v1444
      %v2163 = vunpack.c.h.b16 %v1444
      %v2164 = vunpack.c.l.b16 %v1445
      %v2165 = vunpack.c.h.b16 %v1445
      %v2166 = vunpack.c.l.b16 %v1446
      %v2167 = vunpack.c.h.b16 %v1446
      %v2168 = vunpack.c.l.b16 %v1447
      %v2169 = vunpack.c.h.b16 %v1447
      %v2170 = vunpack.c.l.b16 %v1448
      %v2171 = vunpack.c.h.b16 %v1448
      %v2172 = vunpack.c.l.b16 %v1449
      %v2173 = vunpack.c.h.b16 %v1449
      %v2174 = vunpack.c.l.b16 %v1450
      %v2175 = vunpack.c.h.b16 %v1450
      %v2176 = vunpack.c.l.b16 %v1451
      %v2177 = vunpack.c.h.b16 %v1451
      %v2178 = vunpack.c.l.b16 %v1452
      %v2179 = vunpack.c.h.b16 %v1452
      %v2180 = vunpack.c.l.b16 %v1453
      %v2181 = vunpack.c.h.b16 %v1453
      %v2182 = vunpack.c.l.b16 %v1454
      %v2183 = vunpack.c.h.b16 %v1454
      %v2184 = vunpack.c.l.b16 %v1455
      %v2185 = vunpack.c.h.b16 %v1455
      %v2186 = vunpack.c.l.b16 %v1456
      %v2187 = vunpack.c.h.b16 %v1456
      %v2188 = vunpack.c.l.b16 %v1457
      %v2189 = vunpack.c.h.b16 %v1457
      %v2190 = vunpack.c.l.b16 %v1458
      %v2191 = vunpack.c.h.b16 %v1458
      %v2192 = vunpack.c.l.b16 %v1459
      %v2193 = vunpack.c.h.b16 %v1459
      %v2194 = vunpack.c.l.b16 %v1460
      %v2195 = vunpack.c.h.b16 %v1460
      %v2196 = vunpack.c.l.b16 %v1461
      %v2197 = vunpack.c.h.b16 %v1461
      %v2198 = vunpack.c.l.b16 %v1462
      %v2199 = vunpack.c.h.b16 %v1462
      %v2200 = vunpack.c.l.b16 %v1463
      %v2201 = vunpack.c.h.b16 %v1463
      %v2202 = vunpack.c.l.b16 %v1464
      %v2203 = vunpack.c.h.b16 %v1464
      %v2204 = vunpack.c.l.b16 %v1465
      %v2205 = vunpack.c.h.b16 %v1465
      %v2206 = vunpack.c.l.b16 %v1466
      %v2207 = vunpack.c.h.b16 %v1466
      %v2208 = vunpack.c.l.b16 %v1467
      %v2209 = vunpack.c.h.b16 %v1467
      %v2210 = vunpack.c.l.b16 %v1468
      %v2211 = vunpack.c.h.b16 %v1468
      %v2212 = vunpack.c.l.b16 %v1469
      %v2213 = vunpack.c.h.b16 %v1469
      %v2214 = vunpack.c.l.b16 %v1470
      %v2215 = vunpack.c.h.b16 %v1470
      %v2216 = vunpack.c.l.b16 %v1471
      %v2217 = vunpack.c.h.b16 %v1471
      %v2218 = vunpack.c.l.b16 %v1472
      %v2219 = vunpack.c.h.b16 %v1472
      %v2220 = vunpack.c.l.b16 %v1473
      %v2221 = vunpack.c.h.b16 %v1473
      %v2222 = vunpack.c.l.b16 %v1474
      %v2223 = vunpack.c.h.b16 %v1474
      %v2224 = vunpack.c.l.b16 %v1475
      %v2225 = vunpack.c.h.b16 %v1475
      %v2226 = vunpack.c.l.b16 %v1476
      %v2227 = vunpack.c.h.b16 %v1476
      %v2228 = vunpack.c.l.b16 %v1477
      %v2229 = vunpack.c.h.b16 %v1477
      %v2230 = vunpack.c.l.b16 %v1478
      %v2231 = vunpack.c.h.b16 %v1478
      %v2232 = vunpack.c.l.b16 %v1479
      %v2233 = vunpack.c.h.b16 %v1479
      %v2234 = vunpack.c.l.b16 %v1480
      %v2235 = vunpack.c.h.b16 %v1480
      %v2236 = vunpack.c.l.b16 %v1481
      %v2237 = vunpack.c.h.b16 %v1481
      %v2238 = vunpack.c.l.b16 %v1482
      %v2239 = vunpack.c.h.b16 %v1482
      %v2240 = vunpack.c.l.b16 %v1483
      %v2241 = vunpack.c.h.b16 %v1483
      %v2242 = vunpack.c.l.b16 %v1484
      %v2243 = vunpack.c.h.b16 %v1484
      %v2244 = vunpack.c.l.b16 %v1485
      %v2245 = vunpack.c.h.b16 %v1485
      %v2246 = vunpack.c.l.b16 %v1486
      %v2247 = vunpack.c.h.b16 %v1486
      %v2248 = vunpack.c.l.b16 %v1487
      %v2249 = vunpack.c.h.b16 %v1487
      %v2250 = vunpack.c.l.b16 %v1488
      %v2251 = vunpack.c.h.b16 %v1488
      %v2252 = vunpack.c.l.b16 %v1489
      %v2253 = vunpack.c.h.b16 %v1489
      %v2254 = vunpack.c.l.b16 %v1490
      %v2255 = vunpack.c.h.b16 %v1490
      %v2256 = vunpack.c.l.b16 %v1491
      %v2257 = vunpack.c.h.b16 %v1491
      %v2258 = vunpack.c.l.b16 %v1492
      %v2259 = vunpack.c.h.b16 %v1492
      %v2260 = vunpack.c.l.b16 %v1493
      %v2261 = vunpack.c.h.b16 %v1493
      %v2262 = vunpack.c.l.b16 %v1494
      %v2263 = vunpack.c.h.b16 %v1494
      %v2264 = vunpack.c.l.b16 %v1495
      %v2265 = vunpack.c.h.b16 %v1495
      %v2266 = vunpack.c.l.b16 %v1496
      %v2267 = vunpack.c.h.b16 %v1496
      %v2268 = vunpack.c.l.b16 %v1497
      %v2269 = vunpack.c.h.b16 %v1497
      %v2270 = vunpack.c.l.b16 %v1498
      %v2271 = vunpack.c.h.b16 %v1498
      %v2272 = vunpack.c.l.b16 %v1499
      %v2273 = vunpack.c.h.b16 %v1499
      %v2274 = vunpack.c.l.b16 %v1500
      %v2275 = vunpack.c.h.b16 %v1500
      %v2276 = vunpack.c.l.b16 %v1501
      %v2277 = vunpack.c.h.b16 %v1501
      %v2278 = vunpack.c.l.b16 %v1502
      %v2279 = vunpack.c.h.b16 %v1502
      %v2280 = vunpack.c.l.b16 %v1503
      %v2281 = vunpack.c.h.b16 %v1503
      %v2282 = vunpack.c.l.b16 %v1504
      %v2283 = vunpack.c.h.b16 %v1504
      %v2284 = vunpack.c.l.b16 %v1505
      %v2285 = vunpack.c.h.b16 %v1505
      %v2286 = vunpack.c.l.b16 %v1506
      %v2287 = vunpack.c.h.b16 %v1506
      %v2288 = vunpack.c.l.b16 %v1507
      %v2289 = vunpack.c.h.b16 %v1507
      %v2290 = vunpack.c.l.b16 %v1508
      %v2291 = vunpack.c.h.b16 %v1508
      %v2292 = vunpack.c.l.b16 %v1509
      %v2293 = vunpack.c.h.b16 %v1509
      %v2294 = vunpack.c.l.b16 %v1510
      %v2295 = vunpack.c.h.b16 %v1510
      %v2296 = vunpack.c.l.b16 %v1511
      %v2297 = vunpack.c.h.b16 %v1511
      %v2298 = vunpack.c.l.b16 %v1512
      %v2299 = vunpack.c.h.b16 %v1512
      %v2300 = vunpack.c.l.b16 %v1513
      %v2301 = vunpack.c.h.b16 %v1513
      %v2302 = vunpack.c.l.b16 %v1514
      %v2303 = vunpack.c.h.b16 %v1514
      %v2304 = vunpack.c.l.b16 %v1515
      %v2305 = vunpack.c.h.b16 %v1515
      %v2306 = vpack.c.b16 %v1798, %v1794
      %v2307 = vpack.c.b16 %v1799, %v1795
      %v2308 = vpack.c.b16 %v1800, %v1796
      %v2309 = vpack.c.b16 %v1801, %v1797
      %v2310 = vpack.c.b16 %v1806, %v1802
      %v2311 = vpack.c.b16 %v1807, %v1803
      %v2312 = vpack.c.b16 %v1808, %v1804
      %v2313 = vpack.c.b16 %v1809, %v1805
      %v2314 = vpack.c.b16 %v1814, %v1810
      %v2315 = vpack.c.b16 %v1815, %v1811
      %v2316 = vpack.c.b16 %v1816, %v1812
      %v2317 = vpack.c.b16 %v1817, %v1813
      %v2318 = vpack.c.b16 %v1822, %v1818
      %v2319 = vpack.c.b16 %v1823, %v1819
      %v2320 = vpack.c.b16 %v1824, %v1820
      %v2321 = vpack.c.b16 %v1825, %v1821
      %v2322 = vpack.c.b16 %v1830, %v1826
      %v2323 = vpack.c.b16 %v1831, %v1827
      %v2324 = vpack.c.b16 %v1832, %v1828
      %v2325 = vpack.c.b16 %v1833, %v1829
      %v2326 = vpack.c.b16 %v1838, %v1834
      %v2327 = vpack.c.b16 %v1839, %v1835
      %v2328 = vpack.c.b16 %v1840, %v1836
      %v2329 = vpack.c.b16 %v1841, %v1837
      %v2330 = vpack.c.b16 %v1846, %v1842
      %v2331 = vpack.c.b16 %v1847, %v1843
      %v2332 = vpack.c.b16 %v1848, %v1844
      %v2333 = vpack.c.b16 %v1849, %v1845
      %v2334 = vpack.c.b16 %v1854, %v1850
      %v2335 = vpack.c.b16 %v1855, %v1851
      %v2336 = vpack.c.b16 %v1856, %v1852
      %v2337 = vpack.c.b16 %v1857, %v1853
      %v2338 = vpack.c.b16 %v1862, %v1858
      %v2339 = vpack.c.b16 %v1863, %v1859
      %v2340 = vpack.c.b16 %v1864, %v1860
      %v2341 = vpack.c.b16 %v1865, %v1861
      %v2342 = vpack.c.b16 %v1870, %v1866
      %v2343 = vpack.c.b16 %v1871, %v1867
      %v2344 = vpack.c.b16 %v1872, %v1868
      %v2345 = vpack.c.b16 %v1873, %v1869
      %v2346 = vpack.c.b16 %v1878, %v1874
      %v2347 = vpack.c.b16 %v1879, %v1875
      %v2348 = vpack.c.b16 %v1880, %v1876
      %v2349 = vpack.c.b16 %v1881, %v1877
      %v2350 = vpack.c.b16 %v1886, %v1882
      %v2351 = vpack.c.b16 %v1887, %v1883
      %v2352 = vpack.c.b16 %v1888, %v1884
      %v2353 = vpack.c.b16 %v1889, %v1885
      %v2354 = vpack.c.b16 %v1894, %v1890
      %v2355 = vpack.c.b16 %v1895, %v1891
      %v2356 = vpack.c.b16 %v1896, %v1892
      %v2357 = vpack.c.b16 %v1897, %v1893
      %v2358 = vpack.c.b16 %v1902, %v1898
      %v2359 = vpack.c.b16 %v1903, %v1899
      %v2360 = vpack.c.b16 %v1904, %v1900
      %v2361 = vpack.c.b16 %v1905, %v1901
      %v2362 = vpack.c.b16 %v1910, %v1906
      %v2363 = vpack.c.b16 %v1911, %v1907
      %v2364 = vpack.c.b16 %v1912, %v1908
      %v2365 = vpack.c.b16 %v1913, %v1909
      %v2366 = vpack.c.b16 %v1918, %v1914
      %v2367 = vpack.c.b16 %v1919, %v1915
      %v2368 = vpack.c.b16 %v1920, %v1916
      %v2369 = vpack.c.b16 %v1921, %v1917
      %v2370 = vpack.c.b16 %v1926, %v1922
      %v2371 = vpack.c.b16 %v1927, %v1923
      %v2372 = vpack.c.b16 %v1928, %v1924
      %v2373 = vpack.c.b16 %v1929, %v1925
      %v2374 = vpack.c.b16 %v1934, %v1930
      %v2375 = vpack.c.b16 %v1935, %v1931
      %v2376 = vpack.c.b16 %v1936, %v1932
      %v2377 = vpack.c.b16 %v1937, %v1933
      %v2378 = vpack.c.b16 %v1942, %v1938
      %v2379 = vpack.c.b16 %v1943, %v1939
      %v2380 = vpack.c.b16 %v1944, %v1940
      %v2381 = vpack.c.b16 %v1945, %v1941
      %v2382 = vpack.c.b16 %v1950, %v1946
      %v2383 = vpack.c.b16 %v1951, %v1947
      %v2384 = vpack.c.b16 %v1952, %v1948
      %v2385 = vpack.c.b16 %v1953, %v1949
      %v2386 = vpack.c.b16 %v1958, %v1954
      %v2387 = vpack.c.b16 %v1959, %v1955
      %v2388 = vpack.c.b16 %v1960, %v1956
      %v2389 = vpack.c.b16 %v1961, %v1957
      %v2390 = vpack.c.b16 %v1966, %v1962
      %v2391 = vpack.c.b16 %v1967, %v1963
      %v2392 = vpack.c.b16 %v1968, %v1964
      %v2393 = vpack.c.b16 %v1969, %v1965
      %v2394 = vpack.c.b16 %v1974, %v1970
      %v2395 = vpack.c.b16 %v1975, %v1971
      %v2396 = vpack.c.b16 %v1976, %v1972
      %v2397 = vpack.c.b16 %v1977, %v1973
      %v2398 = vpack.c.b16 %v1982, %v1978
      %v2399 = vpack.c.b16 %v1983, %v1979
      %v2400 = vpack.c.b16 %v1984, %v1980
      %v2401 = vpack.c.b16 %v1985, %v1981
      %v2402 = vpack.c.b16 %v1990, %v1986
      %v2403 = vpack.c.b16 %v1991, %v1987
      %v2404 = vpack.c.b16 %v1992, %v1988
      %v2405 = vpack.c.b16 %v1993, %v1989
      %v2406 = vpack.c.b16 %v1998, %v1994
      %v2407 = vpack.c.b16 %v1999, %v1995
      %v2408 = vpack.c.b16 %v2000, %v1996
      %v2409 = vpack.c.b16 %v2001, %v1997
      %v2410 = vpack.c.b16 %v2006, %v2002
      %v2411 = vpack.c.b16 %v2007, %v2003
      %v2412 = vpack.c.b16 %v2008, %v2004
      %v2413 = vpack.c.b16 %v2009, %v2005
      %v2414 = vpack.c.b16 %v2014, %v2010
      %v2415 = vpack.c.b16 %v2015, %v2011
      %v2416 = vpack.c.b16 %v2016, %v2012
      %v2417 = vpack.c.b16 %v2017, %v2013
      %v2418 = vpack.c.b16 %v2022, %v2018
      %v2419 = vpack.c.b16 %v2023, %v2019
      %v2420 = vpack.c.b16 %v2024, %v2020
      %v2421 = vpack.c.b16 %v2025, %v2021
      %v2422 = vpack.c.b16 %v2030, %v2026
      %v2423 = vpack.c.b16 %v2031, %v2027
      %v2424 = vpack.c.b16 %v2032, %v2028
      %v2425 = vpack.c.b16 %v2033, %v2029
      %v2426 = vpack.c.b16 %v2038, %v2034
      %v2427 = vpack.c.b16 %v2039, %v2035
      %v2428 = vpack.c.b16 %v2040, %v2036
      %v2429 = vpack.c.b16 %v2041, %v2037
      %v2430 = vpack.c.b16 %v2046, %v2042
      %v2431 = vpack.c.b16 %v2047, %v2043
      %v2432 = vpack.c.b16 %v2048, %v2044
      %v2433 = vpack.c.b16 %v2049, %v2045
      %v2434 = vpack.c.b16 %v2054, %v2050
      %v2435 = vpack.c.b16 %v2055, %v2051
      %v2436 = vpack.c.b16 %v2056, %v2052
      %v2437 = vpack.c.b16 %v2057, %v2053
      %v2438 = vpack.c.b16 %v2062, %v2058
      %v2439 = vpack.c.b16 %v2063, %v2059
      %v2440 = vpack.c.b16 %v2064, %v2060
      %v2441 = vpack.c.b16 %v2065, %v2061
      %v2442 = vpack.c.b16 %v2070, %v2066
      %v2443 = vpack.c.b16 %v2071, %v2067
      %v2444 = vpack.c.b16 %v2072, %v2068
      %v2445 = vpack.c.b16 %v2073, %v2069
      %v2446 = vpack.c.b16 %v2078, %v2074
      %v2447 = vpack.c.b16 %v2079, %v2075
      %v2448 = vpack.c.b16 %v2080, %v2076
      %v2449 = vpack.c.b16 %v2081, %v2077
      %v2450 = vpack.c.b16 %v2086, %v2082
      %v2451 = vpack.c.b16 %v2087, %v2083
      %v2452 = vpack.c.b16 %v2088, %v2084
      %v2453 = vpack.c.b16 %v2089, %v2085
      %v2454 = vpack.c.b16 %v2094, %v2090
      %v2455 = vpack.c.b16 %v2095, %v2091
      %v2456 = vpack.c.b16 %v2096, %v2092
      %v2457 = vpack.c.b16 %v2097, %v2093
      %v2458 = vpack.c.b16 %v2102, %v2098
      %v2459 = vpack.c.b16 %v2103, %v2099
      %v2460 = vpack.c.b16 %v2104, %v2100
      %v2461 = vpack.c.b16 %v2105, %v2101
      %v2462 = vpack.c.b16 %v2110, %v2106
      %v2463 = vpack.c.b16 %v2111, %v2107
      %v2464 = vpack.c.b16 %v2112, %v2108
      %v2465 = vpack.c.b16 %v2113, %v2109
      %v2466 = vpack.c.b16 %v2118, %v2114
      %v2467 = vpack.c.b16 %v2119, %v2115
      %v2468 = vpack.c.b16 %v2120, %v2116
      %v2469 = vpack.c.b16 %v2121, %v2117
      %v2470 = vpack.c.b16 %v2126, %v2122
      %v2471 = vpack.c.b16 %v2127, %v2123
      %v2472 = vpack.c.b16 %v2128, %v2124
      %v2473 = vpack.c.b16 %v2129, %v2125
      %v2474 = vpack.c.b16 %v2134, %v2130
      %v2475 = vpack.c.b16 %v2135, %v2131
      %v2476 = vpack.c.b16 %v2136, %v2132
      %v2477 = vpack.c.b16 %v2137, %v2133
      %v2478 = vpack.c.b16 %v2142, %v2138
      %v2479 = vpack.c.b16 %v2143, %v2139
      %v2480 = vpack.c.b16 %v2144, %v2140
      %v2481 = vpack.c.b16 %v2145, %v2141
      %v2482 = vpack.c.b16 %v2150, %v2146
      %v2483 = vpack.c.b16 %v2151, %v2147
      %v2484 = vpack.c.b16 %v2152, %v2148
      %v2485 = vpack.c.b16 %v2153, %v2149
      %v2486 = vpack.c.b16 %v2158, %v2154
      %v2487 = vpack.c.b16 %v2159, %v2155
      %v2488 = vpack.c.b16 %v2160, %v2156
      %v2489 = vpack.c.b16 %v2161, %v2157
      %v2490 = vpack.c.b16 %v2166, %v2162
      %v2491 = vpack.c.b16 %v2167, %v2163
      %v2492 = vpack.c.b16 %v2168, %v2164
      %v2493 = vpack.c.b16 %v2169, %v2165
      %v2494 = vpack.c.b16 %v2174, %v2170
      %v2495 = vpack.c.b16 %v2175, %v2171
      %v2496 = vpack.c.b16 %v2176, %v2172
      %v2497 = vpack.c.b16 %v2177, %v2173
      %v2498 = vpack.c.b16 %v2182, %v2178
      %v2499 = vpack.c.b16 %v2183, %v2179
      %v2500 = vpack.c.b16 %v2184, %v2180
      %v2501 = vpack.c.b16 %v2185, %v2181
      %v2502 = vpack.c.b16 %v2190, %v2186
      %v2503 = vpack.c.b16 %v2191, %v2187
      %v2504 = vpack.c.b16 %v2192, %v2188
      %v2505 = vpack.c.b16 %v2193, %v2189
      %v2506 = vpack.c.b16 %v2198, %v2194
      %v2507 = vpack.c.b16 %v2199, %v2195
      %v2508 = vpack.c.b16 %v2200, %v2196
      %v2509 = vpack.c.b16 %v2201, %v2197
      %v2510 = vpack.c.b16 %v2206, %v2202
      %v2511 = vpack.c.b16 %v2207, %v2203
      %v2512 = vpack.c.b16 %v2208, %v2204
      %v2513 = vpack.c.b16 %v2209, %v2205
      %v2514 = vpack.c.b16 %v2214, %v2210
      %v2515 = vpack.c.b16 %v2215, %v2211
      %v2516 = vpack.c.b16 %v2216, %v2212
      %v2517 = vpack.c.b16 %v2217, %v2213
      %v2518 = vpack.c.b16 %v2222, %v2218
      %v2519 = vpack.c.b16 %v2223, %v2219
      %v2520 = vpack.c.b16 %v2224, %v2220
      %v2521 = vpack.c.b16 %v2225, %v2221
      %v2522 = vpack.c.b16 %v2230, %v2226
      %v2523 = vpack.c.b16 %v2231, %v2227
      %v2524 = vpack.c.b16 %v2232, %v2228
      %v2525 = vpack.c.b16 %v2233, %v2229
      %v2526 = vpack.c.b16 %v2238, %v2234
      %v2527 = vpack.c.b16 %v2239, %v2235
      %v2528 = vpack.c.b16 %v2240, %v2236
      %v2529 = vpack.c.b16 %v2241, %v2237
      %v2530 = vpack.c.b16 %v2246, %v2242
      %v2531 = vpack.c.b16 %v2247, %v2243
      %v2532 = vpack.c.b16 %v2248, %v2244
      %v2533 = vpack.c.b16 %v2249, %v2245
      %v2534 = vpack.c.b16 %v2254, %v2250
      %v2535 = vpack.c.b16 %v2255, %v2251
      %v2536 = vpack.c.b16 %v2256, %v2252
      %v2537 = vpack.c.b16 %v2257, %v2253
      %v2538 = vpack.c.b16 %v2262, %v2258
      %v2539 = vpack.c.b16 %v2263, %v2259
      %v2540 = vpack.c.b16 %v2264, %v2260
      %v2541 = vpack.c.b16 %v2265, %v2261
      %v2542 = vpack.c.b16 %v2270, %v2266
      %v2543 = vpack.c.b16 %v2271, %v2267
      %v2544 = vpack.c.b16 %v2272, %v2268
      %v2545 = vpack.c.b16 %v2273, %v2269
      %v2546 = vpack.c.b16 %v2278, %v2274
      %v2547 = vpack.c.b16 %v2279, %v2275
      %v2548 = vpack.c.b16 %v2280, %v2276
      %v2549 = vpack.c.b16 %v2281, %v2277
      %v2550 = vpack.c.b16 %v2286, %v2282
      %v2551 = vpack.c.b16 %v2287, %v2283
      %v2552 = vpack.c.b16 %v2288, %v2284
      %v2553 = vpack.c.b16 %v2289, %v2285
      %v2554 = vpack.c.b16 %v2294, %v2290
      %v2555 = vpack.c.b16 %v2295, %v2291
      %v2556 = vpack.c.b16 %v2296, %v2292
      %v2557 = vpack.c.b16 %v2297, %v2293
      %v2558 = vpack.c.b16 %v2302, %v2298
      %v2559 = vpack.c.b16 %v2303, %v2299
      %v2560 = vpack.c.b16 %v2304, %v2300
      %v2561 = vpack.c.b16 %v2305, %v2301
      %2818 = vmatprep.subr.bf16.mxu0 %v2335
      %2819 = vmatpush1.bf16.msra.mxu0 %v2334
      %2820 = vmatprep.subr.bf16.mxu0 %v2331
      %2821 = vmatpush1.bf16.msra.mxu0 %v2330
      %2822 = vmatprep.subr.bf16.mxu0 %v2327
      %2823 = vmatpush1.bf16.msra.mxu0 %v2326
      %2824 = vmatprep.subr.bf16.mxu0 %v2323
      %2825 = vmatpush1.bf16.msra.mxu0 %v2322
      %2826 = vmatprep.subr.bf16.mxu0 %v2319
      %2827 = vmatpush1.bf16.msra.mxu0 %v2318
      %2828 = vmatprep.subr.bf16.mxu0 %v2315
      %2829 = vmatpush1.bf16.msra.mxu0 %v2314
      %2830 = vmatprep.subr.bf16.mxu0 %v2311
      %2831 = vmatpush1.bf16.msra.mxu0 %v2310
      %2832 = vmatprep.subr.bf16.mxu0 %v2307
      %2833 = vmatpush1.bf16.msra.mxu0 %v2306
      %2834 = vmatprep.subr.bf16.mxu0 %v2367
      %2835 = vmatpush2.bf16.msra.mxu0 %v2366
      %2836 = vmatprep.subr.bf16.mxu0 %v2363
      %2837 = vmatpush2.bf16.msra.mxu0 %v2362
      %2838 = vmatprep.subr.bf16.mxu0 %v2359
      %2839 = vmatpush2.bf16.msra.mxu0 %v2358
      %2840 = vmatprep.subr.bf16.mxu0 %v2355
      %2841 = vmatpush2.bf16.msra.mxu0 %v2354
      %2842 = vmatprep.subr.bf16.mxu0 %v2351
      %2843 = vmatpush2.bf16.msra.mxu0 %v2350
      %2844 = vmatprep.subr.bf16.mxu0 %v2347
      %2845 = vmatpush2.bf16.msra.mxu0 %v2346
      %2846 = vmatprep.subr.bf16.mxu0 %v2343
      %2847 = vmatpush2.bf16.msra.mxu0 %v2342
      %2848 = vmatprep.subr.bf16.mxu0 %v2339
      %2849 = vmatpush2.bf16.msra.mxu0 %v2338
      %2850 = vmatprep.mubr.bf16.mxu0 %v1253
      %2851 = vmatmul.mubr.bf16.gmra.mxu0 %v1252
      %v2852 = vpop.f32.mrf.mxu0
      %v2853 = vadd.f32 %v1521, %v2852
      %v2854 = vpop.f32.mrf.mxu0
      %v2855 = vadd.f32 %v1525, %v2854
      %v2856 = vpop.f32.mrf.mxu0
      %v2857 = vpop.f32.mrf.mxu0
      %2858 = vdwg.mxu0
      %2859 = vmatprep.subr.bf16.mxu0 %v2399
      %2860 = vmatpush1.bf16.msra.mxu0 %v2398
      %2861 = vmatprep.subr.bf16.mxu0 %v2395
      %2862 = vmatpush1.bf16.msra.mxu0 %v2394
      %2863 = vmatprep.subr.bf16.mxu0 %v2391
      %2864 = vmatpush1.bf16.msra.mxu0 %v2390
      %2865 = vmatprep.subr.bf16.mxu0 %v2387
      %2866 = vmatpush1.bf16.msra.mxu0 %v2386
      %2867 = vmatprep.subr.bf16.mxu0 %v2383
      %2868 = vmatpush1.bf16.msra.mxu0 %v2382
      %2869 = vmatprep.subr.bf16.mxu0 %v2379
      %2870 = vmatpush1.bf16.msra.mxu0 %v2378
      %2871 = vmatprep.subr.bf16.mxu0 %v2375
      %2872 = vmatpush1.bf16.msra.mxu0 %v2374
      %2873 = vmatprep.subr.bf16.mxu0 %v2371
      %2874 = vmatpush1.bf16.msra.mxu0 %v2370
      %2875 = vmatprep.subr.bf16.mxu0 %v2431
      %2876 = vmatpush2.bf16.msra.mxu0 %v2430
      %2877 = vmatprep.subr.bf16.mxu0 %v2427
      %2878 = vmatpush2.bf16.msra.mxu0 %v2426
      %2879 = vmatprep.subr.bf16.mxu0 %v2423
      %2880 = vmatpush2.bf16.msra.mxu0 %v2422
      %2881 = vmatprep.subr.bf16.mxu0 %v2419
      %2882 = vmatpush2.bf16.msra.mxu0 %v2418
      %2883 = vmatprep.subr.bf16.mxu0 %v2415
      %2884 = vmatpush2.bf16.msra.mxu0 %v2414
      %2885 = vmatprep.subr.bf16.mxu0 %v2411
      %2886 = vmatpush2.bf16.msra.mxu0 %v2410
      %2887 = vmatprep.subr.bf16.mxu0 %v2407
      %2888 = vmatpush2.bf16.msra.mxu0 %v2406
      %2889 = vmatprep.subr.bf16.mxu0 %v2403
      %2890 = vmatpush2.bf16.msra.mxu0 %v2402
      %2891 = vmatprep.mubr.bf16.mxu0 %v1255
      %2892 = vmatmul.mubr.bf16.gmra.mxu0 %v1254
      %v2893 = vpop.f32.mrf.mxu0
      %v2894 = vadd.f32 %v2853, %v2893
      %v2895 = vpop.f32.mrf.mxu0
      %v2896 = vadd.f32 %v2855, %v2895
      %v2897 = vpop.f32.mrf.mxu0
      %v2898 = vpop.f32.mrf.mxu0
      %2899 = vdwg.mxu0
      %2900 = vmatprep.subr.bf16.mxu0 %v2463
      %2901 = vmatpush1.bf16.msra.mxu0 %v2462
      %2902 = vmatprep.subr.bf16.mxu0 %v2459
      %2903 = vmatpush1.bf16.msra.mxu0 %v2458
      %2904 = vmatprep.subr.bf16.mxu0 %v2455
      %2905 = vmatpush1.bf16.msra.mxu0 %v2454
      %2906 = vmatprep.subr.bf16.mxu0 %v2451
      %2907 = vmatpush1.bf16.msra.mxu0 %v2450
      %2908 = vmatprep.subr.bf16.mxu0 %v2447
      %2909 = vmatpush1.bf16.msra.mxu0 %v2446
      %2910 = vmatprep.subr.bf16.mxu0 %v2443
      %2911 = vmatpush1.bf16.msra.mxu0 %v2442
      %2912 = vmatprep.subr.bf16.mxu0 %v2439
      %2913 = vmatpush1.bf16.msra.mxu0 %v2438
      %2914 = vmatprep.subr.bf16.mxu0 %v2435
      %2915 = vmatpush1.bf16.msra.mxu0 %v2434
      %2916 = vmatprep.subr.bf16.mxu0 %v2495
      %2917 = vmatpush2.bf16.msra.mxu0 %v2494
      %2918 = vmatprep.subr.bf16.mxu0 %v2491
      %2919 = vmatpush2.bf16.msra.mxu0 %v2490
      %2920 = vmatprep.subr.bf16.mxu0 %v2487
      %2921 = vmatpush2.bf16.msra.mxu0 %v2486
      %2922 = vmatprep.subr.bf16.mxu0 %v2483
      %2923 = vmatpush2.bf16.msra.mxu0 %v2482
      %2924 = vmatprep.subr.bf16.mxu0 %v2479
      %2925 = vmatpush2.bf16.msra.mxu0 %v2478
      %2926 = vmatprep.subr.bf16.mxu0 %v2475
      %2927 = vmatpush2.bf16.msra.mxu0 %v2474
      %2928 = vmatprep.subr.bf16.mxu0 %v2471
      %2929 = vmatpush2.bf16.msra.mxu0 %v2470
      %2930 = vmatprep.subr.bf16.mxu0 %v2467
      %2931 = vmatpush2.bf16.msra.mxu0 %v2466
      %2932 = vmatprep.mubr.bf16.mxu0 %v1257
      %2933 = vmatmul.mubr.bf16.gmra.mxu0 %v1256
      %v2934 = vpop.f32.mrf.mxu0
      %v2935 = vadd.f32 %v2894, %v2934
      %v2936 = vpop.f32.mrf.mxu0
      %v2937 = vadd.f32 %v2896, %v2936
      %v2938 = vpop.f32.mrf.mxu0
      %v2939 = vpop.f32.mrf.mxu0
      %2940 = vdwg.mxu0
      %2941 = vmatprep.subr.bf16.mxu0 %v2527
      %2942 = vmatpush1.bf16.msra.mxu0 %v2526
      %2943 = vmatprep.subr.bf16.mxu0 %v2523
      %2944 = vmatpush1.bf16.msra.mxu0 %v2522
      %2945 = vmatprep.subr.bf16.mxu0 %v2519
      %2946 = vmatpush1.bf16.msra.mxu0 %v2518
      %2947 = vmatprep.subr.bf16.mxu0 %v2515
      %2948 = vmatpush1.bf16.msra.mxu0 %v2514
      %2949 = vmatprep.subr.bf16.mxu0 %v2511
      %2950 = vmatpush1.bf16.msra.mxu0 %v2510
      %2951 = vmatprep.subr.bf16.mxu0 %v2507
      %2952 = vmatpush1.bf16.msra.mxu0 %v2506
      %2953 = vmatprep.subr.bf16.mxu0 %v2503
      %2954 = vmatpush1.bf16.msra.mxu0 %v2502
      %2955 = vmatprep.subr.bf16.mxu0 %v2499
      %2956 = vmatpush1.bf16.msra.mxu0 %v2498
      %2957 = vmatprep.subr.bf16.mxu0 %v2559
      %2958 = vmatpush2.bf16.msra.mxu0 %v2558
      %2959 = vmatprep.subr.bf16.mxu0 %v2555
      %2960 = vmatpush2.bf16.msra.mxu0 %v2554
      %2961 = vmatprep.subr.bf16.mxu0 %v2551
      %2962 = vmatpush2.bf16.msra.mxu0 %v2550
      %2963 = vmatprep.subr.bf16.mxu0 %v2547
      %2964 = vmatpush2.bf16.msra.mxu0 %v2546
      %2965 = vmatprep.subr.bf16.mxu0 %v2543
      %2966 = vmatpush2.bf16.msra.mxu0 %v2542
      %2967 = vmatprep.subr.bf16.mxu0 %v2539
      %2968 = vmatpush2.bf16.msra.mxu0 %v2538
      %2969 = vmatprep.subr.bf16.mxu0 %v2535
      %2970 = vmatpush2.bf16.msra.mxu0 %v2534
      %2971 = vmatprep.subr.bf16.mxu0 %v2531
      %2972 = vmatpush2.bf16.msra.mxu0 %v2530
      %2973 = vmatprep.mubr.bf16.mxu0 %v1259
      %2974 = vmatmul.mubr.bf16.gmra.mxu0 %v1258
      %v2975 = vpop.f32.mrf.mxu0
      %v2976 = vadd.f32 %v2935, %v2975
      %v2977 = vpop.f32.mrf.mxu0
      %v2978 = vadd.f32 %v2937, %v2977
      %v2979 = vpop.f32.mrf.mxu0
      %v2980 = vpop.f32.mrf.mxu0
      %2981 = vdwg.mxu0
      %2982 = vmatprep.subr.bf16.mxu0 %v2337
      %2983 = vmatpush1.bf16.msra.mxu0 %v2336
      %2984 = vmatprep.subr.bf16.mxu0 %v2333
      %2985 = vmatpush1.bf16.msra.mxu0 %v2332
      %2986 = vmatprep.subr.bf16.mxu0 %v2329
      %2987 = vmatpush1.bf16.msra.mxu0 %v2328
      %2988 = vmatprep.subr.bf16.mxu0 %v2325
      %2989 = vmatpush1.bf16.msra.mxu0 %v2324
      %2990 = vmatprep.subr.bf16.mxu0 %v2321
      %2991 = vmatpush1.bf16.msra.mxu0 %v2320
      %2992 = vmatprep.subr.bf16.mxu0 %v2317
      %2993 = vmatpush1.bf16.msra.mxu0 %v2316
      %2994 = vmatprep.subr.bf16.mxu0 %v2313
      %2995 = vmatpush1.bf16.msra.mxu0 %v2312
      %2996 = vmatprep.subr.bf16.mxu0 %v2309
      %2997 = vmatpush1.bf16.msra.mxu0 %v2308
      %2998 = vmatprep.subr.bf16.mxu0 %v2369
      %2999 = vmatpush2.bf16.msra.mxu0 %v2368
      %3000 = vmatprep.subr.bf16.mxu0 %v2365
      %3001 = vmatpush2.bf16.msra.mxu0 %v2364
      %3002 = vmatprep.subr.bf16.mxu0 %v2361
      %3003 = vmatpush2.bf16.msra.mxu0 %v2360
      %3004 = vmatprep.subr.bf16.mxu0 %v2357
      %3005 = vmatpush2.bf16.msra.mxu0 %v2356
      %3006 = vmatprep.subr.bf16.mxu0 %v2353
      %3007 = vmatpush2.bf16.msra.mxu0 %v2352
      %3008 = vmatprep.subr.bf16.mxu0 %v2349
      %3009 = vmatpush2.bf16.msra.mxu0 %v2348
      %3010 = vmatprep.subr.bf16.mxu0 %v2345
      %3011 = vmatpush2.bf16.msra.mxu0 %v2344
      %3012 = vmatprep.subr.bf16.mxu0 %v2341
      %3013 = vmatpush2.bf16.msra.mxu0 %v2340
      %3014 = vmatprep.mubr.bf16.mxu0 %v1253
      %3015 = vmatmul.mubr.bf16.gmra.mxu0 %v1252
      %v3016 = vpop.f32.mrf.mxu0
      %v3017 = vadd.f32 %v1529, %v3016
      %v3018 = vpop.f32.mrf.mxu0
      %v3019 = vadd.f32 %v1533, %v3018
      %v3020 = vpop.f32.mrf.mxu0
      %v3021 = vpop.f32.mrf.mxu0
      %3022 = vdwg.mxu0
      %3023 = vmatprep.subr.bf16.mxu0 %v2401
      %3024 = vmatpush1.bf16.msra.mxu0 %v2400
      %3025 = vmatprep.subr.bf16.mxu0 %v2397
      %3026 = vmatpush1.bf16.msra.mxu0 %v2396
      %3027 = vmatprep.subr.bf16.mxu0 %v2393
      %3028 = vmatpush1.bf16.msra.mxu0 %v2392
      %3029 = vmatprep.subr.bf16.mxu0 %v2389
      %3030 = vmatpush1.bf16.msra.mxu0 %v2388
      %3031 = vmatprep.subr.bf16.mxu0 %v2385
      %3032 = vmatpush1.bf16.msra.mxu0 %v2384
      %3033 = vmatprep.subr.bf16.mxu0 %v2381
      %3034 = vmatpush1.bf16.msra.mxu0 %v2380
      %3035 = vmatprep.subr.bf16.mxu0 %v2377
      %3036 = vmatpush1.bf16.msra.mxu0 %v2376
      %3037 = vmatprep.subr.bf16.mxu0 %v2373
      %3038 = vmatpush1.bf16.msra.mxu0 %v2372
      %3039 = vmatprep.subr.bf16.mxu0 %v2433
      %3040 = vmatpush2.bf16.msra.mxu0 %v2432
      %3041 = vmatprep.subr.bf16.mxu0 %v2429
      %3042 = vmatpush2.bf16.msra.mxu0 %v2428
      %3043 = vmatprep.subr.bf16.mxu0 %v2425
      %3044 = vmatpush2.bf16.msra.mxu0 %v2424
      %3045 = vmatprep.subr.bf16.mxu0 %v2421
      %3046 = vmatpush2.bf16.msra.mxu0 %v2420
      %3047 = vmatprep.subr.bf16.mxu0 %v2417
      %3048 = vmatpush2.bf16.msra.mxu0 %v2416
      %3049 = vmatprep.subr.bf16.mxu0 %v2413
      %3050 = vmatpush2.bf16.msra.mxu0 %v2412
      %3051 = vmatprep.subr.bf16.mxu0 %v2409
      %3052 = vmatpush2.bf16.msra.mxu0 %v2408
      %3053 = vmatprep.subr.bf16.mxu0 %v2405
      %3054 = vmatpush2.bf16.msra.mxu0 %v2404
      %3055 = vmatprep.mubr.bf16.mxu0 %v1255
      %3056 = vmatmul.mubr.bf16.gmra.mxu0 %v1254
      %v3057 = vpop.f32.mrf.mxu0
      %v3058 = vadd.f32 %v3017, %v3057
      %v3059 = vpop.f32.mrf.mxu0
      %v3060 = vadd.f32 %v3019, %v3059
      %v3061 = vpop.f32.mrf.mxu0
      %v3062 = vpop.f32.mrf.mxu0
      %3063 = vdwg.mxu0
      %3064 = vmatprep.subr.bf16.mxu0 %v2465
      %3065 = vmatpush1.bf16.msra.mxu0 %v2464
      %3066 = vmatprep.subr.bf16.mxu0 %v2461
      %3067 = vmatpush1.bf16.msra.mxu0 %v2460
      %3068 = vmatprep.subr.bf16.mxu0 %v2457
      %3069 = vmatpush1.bf16.msra.mxu0 %v2456
      %3070 = vmatprep.subr.bf16.mxu0 %v2453
      %3071 = vmatpush1.bf16.msra.mxu0 %v2452
      %3072 = vmatprep.subr.bf16.mxu0 %v2449
      %3073 = vmatpush1.bf16.msra.mxu0 %v2448
      %3074 = vmatprep.subr.bf16.mxu0 %v2445
      %3075 = vmatpush1.bf16.msra.mxu0 %v2444
      %3076 = vmatprep.subr.bf16.mxu0 %v2441
      %3077 = vmatpush1.bf16.msra.mxu0 %v2440
      %3078 = vmatprep.subr.bf16.mxu0 %v2437
      %3079 = vmatpush1.bf16.msra.mxu0 %v2436
      %3080 = vmatprep.subr.bf16.mxu0 %v2497
      %3081 = vmatpush2.bf16.msra.mxu0 %v2496
      %3082 = vmatprep.subr.bf16.mxu0 %v2493
      %3083 = vmatpush2.bf16.msra.mxu0 %v2492
      %3084 = vmatprep.subr.bf16.mxu0 %v2489
      %3085 = vmatpush2.bf16.msra.mxu0 %v2488
      %3086 = vmatprep.subr.bf16.mxu0 %v2485
      %3087 = vmatpush2.bf16.msra.mxu0 %v2484
      %3088 = vmatprep.subr.bf16.mxu0 %v2481
      %3089 = vmatpush2.bf16.msra.mxu0 %v2480
      %3090 = vmatprep.subr.bf16.mxu0 %v2477
      %3091 = vmatpush2.bf16.msra.mxu0 %v2476
      %3092 = vmatprep.subr.bf16.mxu0 %v2473
      %3093 = vmatpush2.bf16.msra.mxu0 %v2472
      %3094 = vmatprep.subr.bf16.mxu0 %v2469
      %3095 = vmatpush2.bf16.msra.mxu0 %v2468
      %3096 = vmatprep.mubr.bf16.mxu0 %v1257
      %3097 = vmatmul.mubr.bf16.gmra.mxu0 %v1256
      %v3098 = vpop.f32.mrf.mxu0
      %v3099 = vadd.f32 %v3058, %v3098
      %v3100 = vpop.f32.mrf.mxu0
      %v3101 = vadd.f32 %v3060, %v3100
      %v3102 = vpop.f32.mrf.mxu0
      %v3103 = vpop.f32.mrf.mxu0
      %3104 = vdwg.mxu0
      %3105 = vmatprep.subr.bf16.mxu0 %v2529
      %3106 = vmatpush1.bf16.msra.mxu0 %v2528
      %3107 = vmatprep.subr.bf16.mxu0 %v2525
      %3108 = vmatpush1.bf16.msra.mxu0 %v2524
      %3109 = vmatprep.subr.bf16.mxu0 %v2521
      %3110 = vmatpush1.bf16.msra.mxu0 %v2520
      %3111 = vmatprep.subr.bf16.mxu0 %v2517
      %3112 = vmatpush1.bf16.msra.mxu0 %v2516
      %3113 = vmatprep.subr.bf16.mxu0 %v2513
      %3114 = vmatpush1.bf16.msra.mxu0 %v2512
      %3115 = vmatprep.subr.bf16.mxu0 %v2509
      %3116 = vmatpush1.bf16.msra.mxu0 %v2508
      %3117 = vmatprep.subr.bf16.mxu0 %v2505
      %3118 = vmatpush1.bf16.msra.mxu0 %v2504
      %3119 = vmatprep.subr.bf16.mxu0 %v2501
      %3120 = vmatpush1.bf16.msra.mxu0 %v2500
      %3121 = vmatprep.subr.bf16.mxu0 %v2561
      %3122 = vmatpush2.bf16.msra.mxu0 %v2560
      %3123 = vmatprep.subr.bf16.mxu0 %v2557
      %3124 = vmatpush2.bf16.msra.mxu0 %v2556
      %3125 = vmatprep.subr.bf16.mxu0 %v2553
      %3126 = vmatpush2.bf16.msra.mxu0 %v2552
      %3127 = vmatprep.subr.bf16.mxu0 %v2549
      %3128 = vmatpush2.bf16.msra.mxu0 %v2548
      %3129 = vmatprep.subr.bf16.mxu0 %v2545
      %3130 = vmatpush2.bf16.msra.mxu0 %v2544
      %3131 = vmatprep.subr.bf16.mxu0 %v2541
      %3132 = vmatpush2.bf16.msra.mxu0 %v2540
      %3133 = vmatprep.subr.bf16.mxu0 %v2537
      %3134 = vmatpush2.bf16.msra.mxu0 %v2536
      %3135 = vmatprep.subr.bf16.mxu0 %v2533
      %3136 = vmatpush2.bf16.msra.mxu0 %v2532
      %3137 = vmatprep.mubr.bf16.mxu0 %v1259
      %3138 = vmatmul.mubr.bf16.gmra.mxu0 %v1258
      %v3139 = vpop.f32.mrf.mxu0
      %v3140 = vadd.f32 %v3099, %v3139
      %v3141 = vpop.f32.mrf.mxu0
      %v3142 = vadd.f32 %v3101, %v3141
      %v3143 = vpop.f32.mrf.mxu0
      %v3144 = vpop.f32.mrf.mxu0
      %3145 = vdwg.mxu0
      %v3146 = vmax.f32 %v2976, 0.0
      %v3147 = vmax.f32 %v2978, 0.0
      %v3148 = vmax.f32 %v3140, 0.0
      %v3149 = vmax.f32 %v3142, 0.0
      %v3150 = vpack.c.bf16 %v3146, %v3146
      %v3151 = vpack.c.bf16 %v3147, %v3147
      %v3152 = vpack.c.bf16 %v3148, %v3148
      %v3153 = vpack.c.bf16 %v3149, %v3149
      %v3154 = vld [vmem:[#allocation9] sm:$0xff]
      %v3155 = vld [vmem:[#allocation9 + $0x8] sm:$0xff]
      %v3156 = vld [vmem:[#allocation9 + $0x10] sm:$0xff]
      %v3157 = vld [vmem:[#allocation9 + $0x18] sm:$0xff]
      %v3158 = vld [vmem:[#allocation9 + $0x20] sm:$0xff]
      %v3159 = vld [vmem:[#allocation9 + $0x28] sm:$0xff]
      %v3160 = vld [vmem:[#allocation9 + $0x30] sm:$0xff]
      %v3161 = vld [vmem:[#allocation9 + $0x38] sm:$0xff]
      %v3162 = vld [vmem:[#allocation9 + $0x40] sm:$0xff]
      %v3163 = vld [vmem:[#allocation9 + $0x48] sm:$0xff]
      %v3164 = vld [vmem:[#allocation9 + $0x50] sm:$0xff]
      %v3165 = vld [vmem:[#allocation9 + $0x58] sm:$0xff]
      %v3166 = vld [vmem:[#allocation9 + $0x60] sm:$0xff]
      %v3167 = vld [vmem:[#allocation9 + $0x68] sm:$0xff]
      %v3168 = vld [vmem:[#allocation9 + $0x70] sm:$0xff]
      %v3169 = vld [vmem:[#allocation9 + $0x78] sm:$0xff]
      %v3170 = vld [vmem:[#allocation9 + $0x80] sm:$0xff]
      %v3171 = vld [vmem:[#allocation9 + $0x88] sm:$0xff]
      %v3172 = vld [vmem:[#allocation9 + $0x90] sm:$0xff]
      %v3173 = vld [vmem:[#allocation9 + $0x98] sm:$0xff]
      %v3174 = vld [vmem:[#allocation9 + $0xa0] sm:$0xff]
      %v3175 = vld [vmem:[#allocation9 + $0xa8] sm:$0xff]
      %v3176 = vld [vmem:[#allocation9 + $0xb0] sm:$0xff]
      %v3177 = vld [vmem:[#allocation9 + $0xb8] sm:$0xff]
      %v3178 = vld [vmem:[#allocation9 + $0xc0] sm:$0xff]
      %v3179 = vld [vmem:[#allocation9 + $0xc8] sm:$0xff]
      %v3180 = vld [vmem:[#allocation9 + $0xd0] sm:$0xff]
      %v3181 = vld [vmem:[#allocation9 + $0xd8] sm:$0xff]
      %v3182 = vld [vmem:[#allocation9 + $0xe0] sm:$0xff]
      %v3183 = vld [vmem:[#allocation9 + $0xe8] sm:$0xff]
      %v3184 = vld [vmem:[#allocation9 + $0xf0] sm:$0xff]
      %v3185 = vld [vmem:[#allocation9 + $0xf8] sm:$0xff]
      %v3186 = vld [vmem:[#allocation9 + $0x100] sm:$0xff]
      %v3187 = vld [vmem:[#allocation9 + $0x108] sm:$0xff]
      %v3188 = vld [vmem:[#allocation9 + $0x110] sm:$0xff]
      %v3189 = vld [vmem:[#allocation9 + $0x118] sm:$0xff]
      %v3190 = vld [vmem:[#allocation9 + $0x120] sm:$0xff]
      %v3191 = vld [vmem:[#allocation9 + $0x128] sm:$0xff]
      %v3192 = vld [vmem:[#allocation9 + $0x130] sm:$0xff]
      %v3193 = vld [vmem:[#allocation9 + $0x138] sm:$0xff]
      %v3194 = vld [vmem:[#allocation9 + $0x140] sm:$0xff]
      %v3195 = vld [vmem:[#allocation9 + $0x148] sm:$0xff]
      %v3196 = vld [vmem:[#allocation9 + $0x150] sm:$0xff]
      %v3197 = vld [vmem:[#allocation9 + $0x158] sm:$0xff]
      %v3198 = vld [vmem:[#allocation9 + $0x160] sm:$0xff]
      %v3199 = vld [vmem:[#allocation9 + $0x168] sm:$0xff]
      %v3200 = vld [vmem:[#allocation9 + $0x170] sm:$0xff]
      %v3201 = vld [vmem:[#allocation9 + $0x178] sm:$0xff]
      %v3202 = vld [vmem:[#allocation9 + $0x180] sm:$0xff]
      %v3203 = vld [vmem:[#allocation9 + $0x188] sm:$0xff]
      %v3204 = vld [vmem:[#allocation9 + $0x190] sm:$0xff]
      %v3205 = vld [vmem:[#allocation9 + $0x198] sm:$0xff]
      %v3206 = vld [vmem:[#allocation9 + $0x1a0] sm:$0xff]
      %v3207 = vld [vmem:[#allocation9 + $0x1a8] sm:$0xff]
      %v3208 = vld [vmem:[#allocation9 + $0x1b0] sm:$0xff]
      %v3209 = vld [vmem:[#allocation9 + $0x1b8] sm:$0xff]
      %v3210 = vld [vmem:[#allocation9 + $0x1c0] sm:$0xff]
      %v3211 = vld [vmem:[#allocation9 + $0x1c8] sm:$0xff]
      %v3212 = vld [vmem:[#allocation9 + $0x1d0] sm:$0xff]
      %v3213 = vld [vmem:[#allocation9 + $0x1d8] sm:$0xff]
      %v3214 = vld [vmem:[#allocation9 + $0x1e0] sm:$0xff]
      %v3215 = vld [vmem:[#allocation9 + $0x1e8] sm:$0xff]
      %v3216 = vld [vmem:[#allocation9 + $0x1f0] sm:$0xff]
      %v3217 = vld [vmem:[#allocation9 + $0x1f8] sm:$0xff]
      %v3218 = vld [vmem:[%s10] sm:$0x3]
      %v3220 = vlaneseq
      %v3221 = vshrl.u32 %v3220, 7
      %v3222 = vsub.s32 0, %v3221
      %v3223 = vrot.slane %v3218, %v3222
      %v3224 = vlaneseq
      %v3225 = vshrl.u32 %v3224, 7
      %v3226 = vsub.s32 1, %v3225
      %v3227 = vrot.slane %v3218, %v3226
      %v3294 = vunpack.c.l.b16 %v3154
      %v3295 = vunpack.c.h.b16 %v3154
      %v3296 = vunpack.c.l.b16 %v3155
      %v3297 = vunpack.c.h.b16 %v3155
      %v3298 = vunpack.c.l.b16 %v3156
      %v3299 = vunpack.c.h.b16 %v3156
      %v3300 = vunpack.c.l.b16 %v3157
      %v3301 = vunpack.c.h.b16 %v3157
      %v3302 = vunpack.c.l.b16 %v3158
      %v3303 = vunpack.c.h.b16 %v3158
      %v3304 = vunpack.c.l.b16 %v3159
      %v3305 = vunpack.c.h.b16 %v3159
      %v3306 = vunpack.c.l.b16 %v3160
      %v3307 = vunpack.c.h.b16 %v3160
      %v3308 = vunpack.c.l.b16 %v3161
      %v3309 = vunpack.c.h.b16 %v3161
      %v3310 = vunpack.c.l.b16 %v3162
      %v3311 = vunpack.c.h.b16 %v3162
      %v3312 = vunpack.c.l.b16 %v3163
      %v3313 = vunpack.c.h.b16 %v3163
      %v3314 = vunpack.c.l.b16 %v3164
      %v3315 = vunpack.c.h.b16 %v3164
      %v3316 = vunpack.c.l.b16 %v3165
      %v3317 = vunpack.c.h.b16 %v3165
      %v3318 = vunpack.c.l.b16 %v3166
      %v3319 = vunpack.c.h.b16 %v3166
      %v3320 = vunpack.c.l.b16 %v3167
      %v3321 = vunpack.c.h.b16 %v3167
      %v3322 = vunpack.c.l.b16 %v3168
      %v3323 = vunpack.c.h.b16 %v3168
      %v3324 = vunpack.c.l.b16 %v3169
      %v3325 = vunpack.c.h.b16 %v3169
      %v3326 = vunpack.c.l.b16 %v3170
      %v3327 = vunpack.c.h.b16 %v3170
      %v3328 = vunpack.c.l.b16 %v3171
      %v3329 = vunpack.c.h.b16 %v3171
      %v3330 = vunpack.c.l.b16 %v3172
      %v3331 = vunpack.c.h.b16 %v3172
      %v3332 = vunpack.c.l.b16 %v3173
      %v3333 = vunpack.c.h.b16 %v3173
      %v3334 = vunpack.c.l.b16 %v3174
      %v3335 = vunpack.c.h.b16 %v3174
      %v3336 = vunpack.c.l.b16 %v3175
      %v3337 = vunpack.c.h.b16 %v3175
      %v3338 = vunpack.c.l.b16 %v3176
      %v3339 = vunpack.c.h.b16 %v3176
      %v3340 = vunpack.c.l.b16 %v3177
      %v3341 = vunpack.c.h.b16 %v3177
      %v3342 = vunpack.c.l.b16 %v3178
      %v3343 = vunpack.c.h.b16 %v3178
      %v3344 = vunpack.c.l.b16 %v3179
      %v3345 = vunpack.c.h.b16 %v3179
      %v3346 = vunpack.c.l.b16 %v3180
      %v3347 = vunpack.c.h.b16 %v3180
      %v3348 = vunpack.c.l.b16 %v3181
      %v3349 = vunpack.c.h.b16 %v3181
      %v3350 = vunpack.c.l.b16 %v3182
      %v3351 = vunpack.c.h.b16 %v3182
      %v3352 = vunpack.c.l.b16 %v3183
      %v3353 = vunpack.c.h.b16 %v3183
      %v3354 = vunpack.c.l.b16 %v3184
      %v3355 = vunpack.c.h.b16 %v3184
      %v3356 = vunpack.c.l.b16 %v3185
      %v3357 = vunpack.c.h.b16 %v3185
      %v3358 = vunpack.c.l.b16 %v3186
      %v3359 = vunpack.c.h.b16 %v3186
      %v3360 = vunpack.c.l.b16 %v3187
      %v3361 = vunpack.c.h.b16 %v3187
      %v3362 = vunpack.c.l.b16 %v3188
      %v3363 = vunpack.c.h.b16 %v3188
      %v3364 = vunpack.c.l.b16 %v3189
      %v3365 = vunpack.c.h.b16 %v3189
      %v3366 = vunpack.c.l.b16 %v3190
      %v3367 = vunpack.c.h.b16 %v3190
      %v3368 = vunpack.c.l.b16 %v3191
      %v3369 = vunpack.c.h.b16 %v3191
      %v3370 = vunpack.c.l.b16 %v3192
      %v3371 = vunpack.c.h.b16 %v3192
      %v3372 = vunpack.c.l.b16 %v3193
      %v3373 = vunpack.c.h.b16 %v3193
      %v3374 = vunpack.c.l.b16 %v3194
      %v3375 = vunpack.c.h.b16 %v3194
      %v3376 = vunpack.c.l.b16 %v3195
      %v3377 = vunpack.c.h.b16 %v3195
      %v3378 = vunpack.c.l.b16 %v3196
      %v3379 = vunpack.c.h.b16 %v3196
      %v3380 = vunpack.c.l.b16 %v3197
      %v3381 = vunpack.c.h.b16 %v3197
      %v3382 = vunpack.c.l.b16 %v3198
      %v3383 = vunpack.c.h.b16 %v3198
      %v3384 = vunpack.c.l.b16 %v3199
      %v3385 = vunpack.c.h.b16 %v3199
      %v3386 = vunpack.c.l.b16 %v3200
      %v3387 = vunpack.c.h.b16 %v3200
      %v3388 = vunpack.c.l.b16 %v3201
      %v3389 = vunpack.c.h.b16 %v3201
      %v3390 = vunpack.c.l.b16 %v3202
      %v3391 = vunpack.c.h.b16 %v3202
      %v3392 = vunpack.c.l.b16 %v3203
      %v3393 = vunpack.c.h.b16 %v3203
      %v3394 = vunpack.c.l.b16 %v3204
      %v3395 = vunpack.c.h.b16 %v3204
      %v3396 = vunpack.c.l.b16 %v3205
      %v3397 = vunpack.c.h.b16 %v3205
      %v3398 = vunpack.c.l.b16 %v3206
      %v3399 = vunpack.c.h.b16 %v3206
      %v3400 = vunpack.c.l.b16 %v3207
      %v3401 = vunpack.c.h.b16 %v3207
      %v3402 = vunpack.c.l.b16 %v3208
      %v3403 = vunpack.c.h.b16 %v3208
      %v3404 = vunpack.c.l.b16 %v3209
      %v3405 = vunpack.c.h.b16 %v3209
      %v3406 = vunpack.c.l.b16 %v3210
      %v3407 = vunpack.c.h.b16 %v3210
      %v3408 = vunpack.c.l.b16 %v3211
      %v3409 = vunpack.c.h.b16 %v3211
      %v3410 = vunpack.c.l.b16 %v3212
      %v3411 = vunpack.c.h.b16 %v3212
      %v3412 = vunpack.c.l.b16 %v3213
      %v3413 = vunpack.c.h.b16 %v3213
      %v3414 = vunpack.c.l.b16 %v3214
      %v3415 = vunpack.c.h.b16 %v3214
      %v3416 = vunpack.c.l.b16 %v3215
      %v3417 = vunpack.c.h.b16 %v3215
      %v3418 = vunpack.c.l.b16 %v3216
      %v3419 = vunpack.c.h.b16 %v3216
      %v3420 = vunpack.c.l.b16 %v3217
      %v3421 = vunpack.c.h.b16 %v3217
      %v3422 = vpack.c.b16 %v3296, %v3294
      %v3423 = vpack.c.b16 %v3297, %v3295
      %v3424 = vpack.c.b16 %v3300, %v3298
      %v3425 = vpack.c.b16 %v3301, %v3299
      %v3426 = vpack.c.b16 %v3304, %v3302
      %v3427 = vpack.c.b16 %v3305, %v3303
      %v3428 = vpack.c.b16 %v3308, %v3306
      %v3429 = vpack.c.b16 %v3309, %v3307
      %v3430 = vpack.c.b16 %v3312, %v3310
      %v3431 = vpack.c.b16 %v3313, %v3311
      %v3432 = vpack.c.b16 %v3316, %v3314
      %v3433 = vpack.c.b16 %v3317, %v3315
      %v3434 = vpack.c.b16 %v3320, %v3318
      %v3435 = vpack.c.b16 %v3321, %v3319
      %v3436 = vpack.c.b16 %v3324, %v3322
      %v3437 = vpack.c.b16 %v3325, %v3323
      %v3438 = vpack.c.b16 %v3328, %v3326
      %v3439 = vpack.c.b16 %v3329, %v3327
      %v3440 = vpack.c.b16 %v3332, %v3330
      %v3441 = vpack.c.b16 %v3333, %v3331
      %v3442 = vpack.c.b16 %v3336, %v3334
      %v3443 = vpack.c.b16 %v3337, %v3335
      %v3444 = vpack.c.b16 %v3340, %v3338
      %v3445 = vpack.c.b16 %v3341, %v3339
      %v3446 = vpack.c.b16 %v3344, %v3342
      %v3447 = vpack.c.b16 %v3345, %v3343
      %v3448 = vpack.c.b16 %v3348, %v3346
      %v3449 = vpack.c.b16 %v3349, %v3347
      %v3450 = vpack.c.b16 %v3352, %v3350
      %v3451 = vpack.c.b16 %v3353, %v3351
      %v3452 = vpack.c.b16 %v3356, %v3354
      %v3453 = vpack.c.b16 %v3357, %v3355
      %v3454 = vpack.c.b16 %v3360, %v3358
      %v3455 = vpack.c.b16 %v3361, %v3359
      %v3456 = vpack.c.b16 %v3364, %v3362
      %v3457 = vpack.c.b16 %v3365, %v3363
      %v3458 = vpack.c.b16 %v3368, %v3366
      %v3459 = vpack.c.b16 %v3369, %v3367
      %v3460 = vpack.c.b16 %v3372, %v3370
      %v3461 = vpack.c.b16 %v3373, %v3371
      %v3462 = vpack.c.b16 %v3376, %v3374
      %v3463 = vpack.c.b16 %v3377, %v3375
      %v3464 = vpack.c.b16 %v3380, %v3378
      %v3465 = vpack.c.b16 %v3381, %v3379
      %v3466 = vpack.c.b16 %v3384, %v3382
      %v3467 = vpack.c.b16 %v3385, %v3383
      %v3468 = vpack.c.b16 %v3388, %v3386
      %v3469 = vpack.c.b16 %v3389, %v3387
      %v3470 = vpack.c.b16 %v3392, %v3390
      %v3471 = vpack.c.b16 %v3393, %v3391
      %v3472 = vpack.c.b16 %v3396, %v3394
      %v3473 = vpack.c.b16 %v3397, %v3395
      %v3474 = vpack.c.b16 %v3400, %v3398
      %v3475 = vpack.c.b16 %v3401, %v3399
      %v3476 = vpack.c.b16 %v3404, %v3402
      %v3477 = vpack.c.b16 %v3405, %v3403
      %v3478 = vpack.c.b16 %v3408, %v3406
      %v3479 = vpack.c.b16 %v3409, %v3407
      %v3480 = vpack.c.b16 %v3412, %v3410
      %v3481 = vpack.c.b16 %v3413, %v3411
      %v3482 = vpack.c.b16 %v3416, %v3414
      %v3483 = vpack.c.b16 %v3417, %v3415
      %v3484 = vpack.c.b16 %v3420, %v3418
      %v3485 = vpack.c.b16 %v3421, %v3419
      %3550 = vmatprep.subr.bf16.mxu0 %v3437
      %3551 = vmatpush1.bf16.msra.mxu0 %v3436
      %3552 = vmatprep.subr.bf16.mxu0 %v3435
      %3553 = vmatpush1.bf16.msra.mxu0 %v3434
      %3554 = vmatprep.subr.bf16.mxu0 %v3433
      %3555 = vmatpush1.bf16.msra.mxu0 %v3432
      %3556 = vmatprep.subr.bf16.mxu0 %v3431
      %3557 = vmatpush1.bf16.msra.mxu0 %v3430
      %3558 = vmatprep.subr.bf16.mxu0 %v3429
      %3559 = vmatpush1.bf16.msra.mxu0 %v3428
      %3560 = vmatprep.subr.bf16.mxu0 %v3427
      %3561 = vmatpush1.bf16.msra.mxu0 %v3426
      %3562 = vmatprep.subr.bf16.mxu0 %v3425
      %3563 = vmatpush1.bf16.msra.mxu0 %v3424
      %3564 = vmatprep.subr.bf16.mxu0 %v3423
      %3565 = vmatpush1.bf16.msra.mxu0 %v3422
      %3566 = vmatprep.subr.bf16.mxu0 %v3453
      %3567 = vmatpush2.bf16.msra.mxu0 %v3452
      %3568 = vmatprep.subr.bf16.mxu0 %v3451
      %3569 = vmatpush2.bf16.msra.mxu0 %v3450
      %3570 = vmatprep.subr.bf16.mxu0 %v3449
      %3571 = vmatpush2.bf16.msra.mxu0 %v3448
      %3572 = vmatprep.subr.bf16.mxu0 %v3447
      %3573 = vmatpush2.bf16.msra.mxu0 %v3446
      %3574 = vmatprep.subr.bf16.mxu0 %v3445
      %3575 = vmatpush2.bf16.msra.mxu0 %v3444
      %3576 = vmatprep.subr.bf16.mxu0 %v3443
      %3577 = vmatpush2.bf16.msra.mxu0 %v3442
      %3578 = vmatprep.subr.bf16.mxu0 %v3441
      %3579 = vmatpush2.bf16.msra.mxu0 %v3440
      %3580 = vmatprep.subr.bf16.mxu0 %v3439
      %3581 = vmatpush2.bf16.msra.mxu0 %v3438
      %3582 = vmatprep.mubr.bf16.mxu0 %v3151
      %3583 = vmatmul.mubr.bf16.gmra.mxu0 %v3150
      %v3584 = vpop.f32.mrf.mxu0
      %v3585 = vadd.f32 %v3223, %v3584
      %v3586 = vpop.f32.mrf.mxu0
      %v3587 = vadd.f32 %v3227, %v3586
      %v3588 = vpop.f32.mrf.mxu0
      %v3589 = vpop.f32.mrf.mxu0
      %3590 = vdwg.mxu0
      %3591 = vmatprep.subr.bf16.mxu0 %v3469
      %3592 = vmatpush1.bf16.msra.mxu0 %v3468
      %3593 = vmatprep.subr.bf16.mxu0 %v3467
      %3594 = vmatpush1.bf16.msra.mxu0 %v3466
      %3595 = vmatprep.subr.bf16.mxu0 %v3465
      %3596 = vmatpush1.bf16.msra.mxu0 %v3464
      %3597 = vmatprep.subr.bf16.mxu0 %v3463
      %3598 = vmatpush1.bf16.msra.mxu0 %v3462
      %3599 = vmatprep.subr.bf16.mxu0 %v3461
      %3600 = vmatpush1.bf16.msra.mxu0 %v3460
      %3601 = vmatprep.subr.bf16.mxu0 %v3459
      %3602 = vmatpush1.bf16.msra.mxu0 %v3458
      %3603 = vmatprep.subr.bf16.mxu0 %v3457
      %3604 = vmatpush1.bf16.msra.mxu0 %v3456
      %3605 = vmatprep.subr.bf16.mxu0 %v3455
      %3606 = vmatpush1.bf16.msra.mxu0 %v3454
      %3607 = vmatprep.subr.bf16.mxu0 %v3485
      %3608 = vmatpush2.bf16.msra.mxu0 %v3484
      %3609 = vmatprep.subr.bf16.mxu0 %v3483
      %3610 = vmatpush2.bf16.msra.mxu0 %v3482
      %3611 = vmatprep.subr.bf16.mxu0 %v3481
      %3612 = vmatpush2.bf16.msra.mxu0 %v3480
      %3613 = vmatprep.subr.bf16.mxu0 %v3479
      %3614 = vmatpush2.bf16.msra.mxu0 %v3478
      %3615 = vmatprep.subr.bf16.mxu0 %v3477
      %3616 = vmatpush2.bf16.msra.mxu0 %v3476
      %3617 = vmatprep.subr.bf16.mxu0 %v3475
      %3618 = vmatpush2.bf16.msra.mxu0 %v3474
      %3619 = vmatprep.subr.bf16.mxu0 %v3473
      %3620 = vmatpush2.bf16.msra.mxu0 %v3472
      %3621 = vmatprep.subr.bf16.mxu0 %v3471
      %3622 = vmatpush2.bf16.msra.mxu0 %v3470
      %3623 = vmatprep.mubr.bf16.mxu0 %v3153
      %3624 = vmatmul.mubr.bf16.gmra.mxu0 %v3152
      %v3625 = vpop.f32.mrf.mxu0
      %v3626 = vadd.f32 %v3585, %v3625
      %v3627 = vpop.f32.mrf.mxu0
      %v3628 = vadd.f32 %v3587, %v3627
      %v3629 = vpop.f32.mrf.mxu0
      %v3630 = vpop.f32.mrf.mxu0
      %3631 = vdwg.mxu0
      %v3632 = vmax.f32 %v3626, 0.0
      %v3633 = vmax.f32 %v3628, 0.0
      %v3634 = vpack.c.bf16 %v3632, %v3632
      %v3635 = vpack.c.bf16 %v3633, %v3633
      %v3636 = vld [vmem:[#allocation11] sm:$0xf]
      %v3637 = vld [vmem:[#allocation11 + $0x4] sm:$0xf]
      %v3638 = vld [vmem:[#allocation11 + $0x8] sm:$0xf]
      %v3639 = vld [vmem:[#allocation11 + $0xc] sm:$0xf]
      %v3640 = vld [vmem:[#allocation11 + $0x10] sm:$0xf]
      %v3641 = vld [vmem:[#allocation11 + $0x14] sm:$0xf]
      %v3642 = vld [vmem:[#allocation11 + $0x18] sm:$0xf]
      %v3643 = vld [vmem:[#allocation11 + $0x1c] sm:$0xf]
      %v3644 = vld [vmem:[#allocation11 + $0x20] sm:$0xf]
      %v3645 = vld [vmem:[#allocation11 + $0x24] sm:$0xf]
      %v3646 = vld [vmem:[#allocation11 + $0x28] sm:$0xf]
      %v3647 = vld [vmem:[#allocation11 + $0x2c] sm:$0xf]
      %v3648 = vld [vmem:[#allocation11 + $0x30] sm:$0xf]
      %v3649 = vld [vmem:[#allocation11 + $0x34] sm:$0xf]
      %v3650 = vld [vmem:[#allocation11 + $0x38] sm:$0xf]
      %v3651 = vld [vmem:[#allocation11 + $0x3c] sm:$0xf]
      %v3652 = vld [vmem:[#allocation11 + $0x40] sm:$0xf]
      %v3653 = vld [vmem:[#allocation11 + $0x44] sm:$0xf]
      %v3654 = vld [vmem:[#allocation11 + $0x48] sm:$0xf]
      %v3655 = vld [vmem:[#allocation11 + $0x4c] sm:$0xf]
      %v3656 = vld [vmem:[#allocation11 + $0x50] sm:$0xf]
      %v3657 = vld [vmem:[#allocation11 + $0x54] sm:$0xf]
      %v3658 = vld [vmem:[#allocation11 + $0x58] sm:$0xf]
      %v3659 = vld [vmem:[#allocation11 + $0x5c] sm:$0xf]
      %v3660 = vld [vmem:[#allocation11 + $0x60] sm:$0xf]
      %v3661 = vld [vmem:[#allocation11 + $0x64] sm:$0xf]
      %v3662 = vld [vmem:[#allocation11 + $0x68] sm:$0xf]
      %v3663 = vld [vmem:[#allocation11 + $0x6c] sm:$0xf]
      %v3664 = vld [vmem:[#allocation11 + $0x70] sm:$0xf]
      %v3665 = vld [vmem:[#allocation11 + $0x74] sm:$0xf]
      %v3666 = vld [vmem:[#allocation11 + $0x78] sm:$0xf]
      %v3667 = vld [vmem:[#allocation11 + $0x7c] sm:$0xf]
      %v3668 = vld [vmem:[%s12] sm:$0x1]
      %v3670 = vlaneseq
      %v3671 = vshrl.u32 %v3670, 7
      %v3672 = vsub.s32 0, %v3671
      %v3673 = vrot.slane %v3668, %v3672
      %v3707 = vunpack.c.l.b16 %v3636
      %v3708 = vunpack.c.l.b16 %v3637
      %v3709 = vunpack.c.l.b16 %v3638
      %v3710 = vunpack.c.l.b16 %v3639
      %v3711 = vunpack.c.l.b16 %v3640
      %v3712 = vunpack.c.l.b16 %v3641
      %v3713 = vunpack.c.l.b16 %v3642
      %v3714 = vunpack.c.l.b16 %v3643
      %v3715 = vunpack.c.l.b16 %v3644
      %v3716 = vunpack.c.l.b16 %v3645
      %v3717 = vunpack.c.l.b16 %v3646
      %v3718 = vunpack.c.l.b16 %v3647
      %v3719 = vunpack.c.l.b16 %v3648
      %v3720 = vunpack.c.l.b16 %v3649
      %v3721 = vunpack.c.l.b16 %v3650
      %v3722 = vunpack.c.l.b16 %v3651
      %v3723 = vunpack.c.l.b16 %v3652
      %v3724 = vunpack.c.l.b16 %v3653
      %v3725 = vunpack.c.l.b16 %v3654
      %v3726 = vunpack.c.l.b16 %v3655
      %v3727 = vunpack.c.l.b16 %v3656
      %v3728 = vunpack.c.l.b16 %v3657
      %v3729 = vunpack.c.l.b16 %v3658
      %v3730 = vunpack.c.l.b16 %v3659
      %v3731 = vunpack.c.l.b16 %v3660
      %v3732 = vunpack.c.l.b16 %v3661
      %v3733 = vunpack.c.l.b16 %v3662
      %v3734 = vunpack.c.l.b16 %v3663
      %v3735 = vunpack.c.l.b16 %v3664
      %v3736 = vunpack.c.l.b16 %v3665
      %v3737 = vunpack.c.l.b16 %v3666
      %v3738 = vunpack.c.l.b16 %v3667
      %v3739 = vpack.c.b16 %v3708, %v3707
      %v3740 = vpack.c.b16 %v3710, %v3709
      %v3741 = vpack.c.b16 %v3712, %v3711
      %v3742 = vpack.c.b16 %v3714, %v3713
      %v3743 = vpack.c.b16 %v3716, %v3715
      %v3744 = vpack.c.b16 %v3718, %v3717
      %v3745 = vpack.c.b16 %v3720, %v3719
      %v3746 = vpack.c.b16 %v3722, %v3721
      %v3747 = vpack.c.b16 %v3724, %v3723
      %v3748 = vpack.c.b16 %v3726, %v3725
      %v3749 = vpack.c.b16 %v3728, %v3727
      %v3750 = vpack.c.b16 %v3730, %v3729
      %v3751 = vpack.c.b16 %v3732, %v3731
      %v3752 = vpack.c.b16 %v3734, %v3733
      %v3753 = vpack.c.b16 %v3736, %v3735
      %v3754 = vpack.c.b16 %v3738, %v3737
      %3771 = vmatprep.subr.bf16.mxu0 0
      %3772 = vmatpush1.bf16.msra.mxu0 %v3746
      %3773 = vmatprep.subr.bf16.mxu0 0
      %3774 = vmatpush1.bf16.msra.mxu0 %v3745
      %3775 = vmatprep.subr.bf16.mxu0 0
      %3776 = vmatpush1.bf16.msra.mxu0 %v3744
      %3777 = vmatprep.subr.bf16.mxu0 0
      %3778 = vmatpush1.bf16.msra.mxu0 %v3743
      %3779 = vmatprep.subr.bf16.mxu0 0
      %3780 = vmatpush1.bf16.msra.mxu0 %v3742
      %3781 = vmatprep.subr.bf16.mxu0 0
      %3782 = vmatpush1.bf16.msra.mxu0 %v3741
      %3783 = vmatprep.subr.bf16.mxu0 0
      %3784 = vmatpush1.bf16.msra.mxu0 %v3740
      %3785 = vmatprep.subr.bf16.mxu0 0
      %3786 = vmatpush1.bf16.msra.mxu0 %v3739
      %3787 = vmatprep.subr.bf16.mxu0 0
      %3788 = vmatpush2.bf16.msra.mxu0 %v3754
      %3789 = vmatprep.subr.bf16.mxu0 0
      %3790 = vmatpush2.bf16.msra.mxu0 %v3753
      %3791 = vmatprep.subr.bf16.mxu0 0
      %3792 = vmatpush2.bf16.msra.mxu0 %v3752
      %3793 = vmatprep.subr.bf16.mxu0 0
      %3794 = vmatpush2.bf16.msra.mxu0 %v3751
      %3795 = vmatprep.subr.bf16.mxu0 0
      %3796 = vmatpush2.bf16.msra.mxu0 %v3750
      %3797 = vmatprep.subr.bf16.mxu0 0
      %3798 = vmatpush2.bf16.msra.mxu0 %v3749
      %3799 = vmatprep.subr.bf16.mxu0 0
      %3800 = vmatpush2.bf16.msra.mxu0 %v3748
      %3801 = vmatprep.subr.bf16.mxu0 0
      %3802 = vmatpush2.bf16.msra.mxu0 %v3747
      %3803 = vmatprep.mubr.bf16.mxu0 %v3635
      %3804 = vmatmul.mubr.bf16.gmra.mxu0 %v3634
      %v3805 = vpop.f32.mrf.mxu0
      %v3806 = vadd.f32 %v3673, %v3805
      %v3807 = vpop.f32.mrf.mxu0
      %v3808 = vpop.f32.mrf.mxu0
      %v3809 = vpop.f32.mrf.mxu0
      %3810 = vdwg.mxu0
      %3811 = vst [vmem:[#allocation12] sm:$0x3] %v3806
    $region81: #{tpu_custom_call.1} parent=1 // pred_fallthru
      _
    // Predicated region
    $region82: #{tpu_custom_call.1} parent=1 // pred_check
      _
    $region83: #{tpu_custom_call.1} parent=1 // pred_check_branch
      %3813 = sbr.rel (0) target = $region85
    $region84: #{tpu_custom_call.1} parent=1 // pred_region
      %s3815 = ssub.s32 32, 32
      %3816 = vsyncadd [#allocation5], %s3815
      %s3818 = sshll.u32 [#allocation12], 4
      %s3819 = int_to_ptr.vmem [resolvable:$true] %s3818
      %3821 = dma.vmem_to_hbm [thread:$0]  %s3819, 32, %s13, [#allocation5]
    $region85: #{tpu_custom_call.1} parent=1 // pred_fallthru
      _
    // Predicated region
    $region86: #{tpu_custom_call.1} parent=1 // pred_check
      _
    $region87: #{tpu_custom_call.1} parent=1 // pred_check_branch
      %3823 = sbr.rel (0) target = $region89
    $region88: #{tpu_custom_call.1} parent=1 // pred_region
      %3824 = dma.done [#allocation5], 32
    $region89: #{tpu_custom_call.1} parent=1 // pred_fallthru
      _
    %3825 = vsyncpa [#allocation4], 1
    %3826 = vsyncpa [#allocation7], 1
    %3827 = vsyncpa [#allocation10], 1
    %3828 = vsyncpa [#allocation5], 1

</llo_original>
